<compile_context>
chip_gen: v7x
topology: tpu7x:2x2x1
jax: 0.10.0
libtpu: 0.0.40
codegen_flags: <defaults>
</compile_context>

<pallas_src>
import functools

import jax
import jax.numpy as jnp
from jax import lax
from jax.experimental import pallas as pl
from jax.experimental.pallas import tpu as pltpu


def _shift_lanes(x, off):
    """y[:, p] = x[:, p + off], zero-filled past the ends (static off)."""
    if off == 0:
        return x
    n = x.shape[-1]
    zeros = jnp.zeros(x.shape[:-1] + (abs(off),), x.dtype)
    if off > 0:
        return jnp.concatenate([x[:, off:], zeros], axis=-1)
    return jnp.concatenate([zeros, x[:, : n + off]], axis=-1)


# ----------------------------------------------------------------------------
# Fused kernel: conv stack + avg-pool + fc head.  One grid step per B images.
# ----------------------------------------------------------------------------
def _dncnn_kernel(x_ref, mask_ref, w0t_ref, wmidt_ref, bias_ref, wlt_ref,
                  fc1w_ref, fc1b_ref, fc2w_ref, fc2b_ref, o_ref, act_ref, *,
                  B, H, W, PIX, n_mid):
    f32 = jnp.float32
    bf16 = jnp.bfloat16
    Wp = W + 2
    LB = B * PIX
    # Tap offsets in flattened padded-pixel coordinates (per image block).
    offs = [(dy - 1) * Wp + (dx - 1) for dy in range(3) for dx in range(3)]

    mask = mask_ref[...]                                     # (1, LB) f32

    # -- layer 0: conv 1 -> F as one small MXU matmul (K padded 9 -> 16).
    x_row = x_ref[0]                                         # (1, LB) f32
    rhs0 = jnp.concatenate(
        [_shift_lanes(x_row, o) for o in offs]
        + [jnp.zeros((7, LB), f32)], axis=0)                 # (16, LB)
    acc0 = jnp.dot(w0t_ref[...], rhs0, preferred_element_type=f32)  # (F, LB)
    act_ref[0] = (jnp.maximum(acc0, 0.0) * mask).astype(bf16)

    # -- middle layers: one (F, 9F) x (9F, LB) bf16 MXU matmul per layer with
    #    f32 accumulation; BN scale is pre-folded into the weights, the bias is
    #    added here; ReLU and the interior-pixel mask (= conv zero padding for
    #    the next layer) are fused into the store.
    def mid_layer(l, s_in, s_out):
        src = act_ref[s_in]                                  # (F, LB) bf16
        rhs = jnp.concatenate([_shift_lanes(src, o) for o in offs], axis=0)
        acc = jnp.dot(wmidt_ref[l], rhs, preferred_element_type=f32)
        out = jnp.maximum(acc + bias_ref[l], 0.0) * mask
        act_ref[s_out] = out.astype(bf16)

    def pair_body(i, carry):
        mid_layer(2 * i, 0, 1)
        mid_layer(2 * i + 1, 1, 0)
        return carry

    lax.fori_loop(0, n_mid // 2, pair_body, 0)
    final_slot = 0
    if n_mid % 2 == 1:                                       # static peel
        mid_layer(n_mid - 1, 0, 1)
        final_slot = 1

    # -- last conv (F -> 1, no BN/ReLU) fused with the global average pool and
    #    the fc head; the lane-sparse C_out=1 map never leaves VMEM/vregs.
    src = act_ref[final_slot]
    rhsl = jnp.concatenate([_shift_lanes(src, o) for o in offs], axis=0)
    y = jnp.dot(wlt_ref[...], rhsl, preferred_element_type=f32)      # (8, LB)
    y_row = y[0:1] * mask                                            # (1, LB)
    pooled = jnp.sum(y_row.reshape(B, PIX), axis=-1, keepdims=True) * (
        1.0 / (H * W))                                               # (B, 1)

    h1 = pooled * fc1w_ref[...] + fc1b_ref[...]                      # (B, 32)
    h1 = jnp.where(h1 > 0, h1, 0.01 * h1)                            # LeakyReLU
    o = jnp.sum(h1 * fc2w_ref[...], axis=-1, keepdims=True) + fc2b_ref[...]
    o = 4.0 / (1.0 + jnp.exp(-o))                                    # sigmoid*4
    o_ref[...] = o.reshape(1, 1, B)


def _pick_batch_block(n):
    # Batch several images per grid step (amortizes the ~0.35us per-step cost
    # and grows the matmul N dim), but keep >= 2 grid steps when possible so
    # both v7x TensorCores get work under dimension_semantics=("parallel",).
    for b in (8, 4, 2):
        if n % b == 0 and n // b >= 2:
            return b
    return 1 if n >= 2 else n


# ----------------------------------------------------------------------------
# Wrapper: accepts NCHW (PyTorch convention), returns (N, 1).
# ----------------------------------------------------------------------------
@functools.partial(jax.jit, static_argnames=("batch_block",))
def dncnn_forward(x_nchw, params, batch_block=None):
    N, C, H, W = x_nchw.shape
    assert C == 1, "fused pool/head assumes channels == 1 (DnCNN default)"
    F = params["w_first"].shape[-1]
    n_mid = params["w_mid"].shape[0]
    Hp, Wp = H + 2, W + 2
    PIX = pl.cdiv(Hp * Wp, 128) * 128          # per-image lane block (128-aligned)
    B = batch_block if batch_block is not None else _pick_batch_block(N)
    assert N % B == 0
    G = N // B
    LB = B * PIX

    # Planar input: each image's zero-padded (Hp, Wp) pixels flattened into an
    # aligned 128-multiple lane block; the size-1 channel dim is squeezed.
    x = x_nchw.astype(jnp.float32).reshape(N, H, W)
    x = jnp.pad(x, ((0, 0), (1, 1), (1, 1)))                 # (N, Hp, Wp)
    x = jnp.pad(x.reshape(N, Hp * Wp), ((0, 0), (0, PIX - Hp * Wp)))
    x = x.reshape(G, 1, LB)

    # Interior-pixel mask: 1.0 on the H*W valid pixels, 0 on the padding ring
    # and on the lane-alignment slack (this *is* the conv zero padding).
    m = jnp.zeros((Hp, Wp), jnp.float32).at[1:H + 1, 1:W + 1].set(1.0)
    m = jnp.pad(m.reshape(Hp * Wp), (0, PIX - Hp * Wp))
    mask = jnp.tile(m, (B,)).reshape(1, LB)

    # Weight repacking (tiny, traced once).
    w0t = jnp.pad(params["w_first"].reshape(9, F).T, ((0, 0), (0, 7)))  # (F,16)
    w_fold = params["w_mid"] * params["scales"][:, None, None, None, :]
    wmidt = jnp.transpose(w_fold, (0, 4, 1, 2, 3)).reshape(n_mid, F, 9 * F)
    wmidt = wmidt.astype(jnp.bfloat16)                       # (n_mid, F, 9F)
    biases = params["shifts"].reshape(n_mid, F, 1).astype(jnp.float32)
    wlt = jnp.pad(params["w_last"].reshape(9 * F, 1).T, ((0, 7), (0, 0)))
    wlt = wlt.astype(jnp.bfloat16)                           # (8, 9F)
    fc1w = params["fc1_w"].reshape(1, 32)
    fc1b = params["fc1_b"].reshape(1, 32)
    fc2w = params["fc2_w"].reshape(1, 32)
    fc2b = params["fc2_b"].reshape(1, 1)

    kernel = functools.partial(_dncnn_kernel, B=B, H=H, W=W, PIX=PIX,
                               n_mid=n_mid)
    out = pl.pallas_call(
        kernel,
        out_shape=jax.ShapeDtypeStruct((G, 1, B), jnp.float32),
        grid_spec=pltpu.PrefetchScalarGridSpec(
            num_scalar_prefetch=0,
            grid=(G,),
            in_specs=[
                pl.BlockSpec((1, 1, LB), lambda g: (g, 0, 0)),
                pl.BlockSpec((1, LB), lambda g: (0, 0)),
                pl.BlockSpec((F, 16), lambda g: (0, 0)),
                pl.BlockSpec((n_mid, F, 9 * F), lambda g: (0, 0, 0)),
                pl.BlockSpec((n_mid, F, 1), lambda g: (0, 0, 0)),
                pl.BlockSpec((8, 9 * F), lambda g: (0, 0)),
                pl.BlockSpec((1, 32), lambda g: (0, 0)),
                pl.BlockSpec((1, 32), lambda g: (0, 0)),
                pl.BlockSpec((1, 32), lambda g: (0, 0)),
                pl.BlockSpec((1, 1), lambda g: (0, 0)),
            ],
            out_specs=pl.BlockSpec((1, 1, B), lambda g: (g, 0, 0)),
            scratch_shapes=[pltpu.VMEM((2, F, LB), jnp.bfloat16)],
        ),
        compiler_params=pltpu.CompilerParams(
            dimension_semantics=("parallel",)),
    )(x, mask, w0t, wmidt, biases, wlt, fc1w, fc1b, fc2w, fc2b)
    return out.reshape(N, 1)


# ----------------------------------------------------------------------------
# Parameter construction (synthetic, deterministic).
# ----------------------------------------------------------------------------
def init_params(key, channels=1, num_of_layers=8, features=64):
    n_mid = num_of_layers - 2
    keys = jax.random.split(key, num_of_layers + 4)

    def he(k, shape):
        fan_in = shape[0] * shape[1] * shape[2]
        return jax.random.normal(k, shape, jnp.float32) * jnp.sqrt(2.0 / fan_in)

    eps = 1e-5
    w_first = he(keys[0], (3, 3, channels, features))
    w_mid, scales, shifts = [], [], []
    # TODO(synk): BatchNorm2d uses eval-mode running stats (mean=0, var=1)
    # folded into per-channel scale/shift; training-mode batch statistics are
    # not implemented.
    for i in range(n_mid):
        kw, kg, kb = jax.random.split(keys[1 + i], 3)
        w = he(kw, (3, 3, features, features))
        gamma = 1.0 + 0.1 * jax.random.normal(kg, (features,), jnp.float32)
        beta = 0.1 * jax.random.normal(kb, (features,), jnp.float32)
        running_mean = jnp.zeros((features,), jnp.float32)
        running_var = jnp.ones((features,), jnp.float32)
        scale = gamma / jnp.sqrt(running_var + eps)
        shift = beta - running_mean * scale
        w_mid.append(w)
        scales.append(scale)
        shifts.append(shift)
    w_last = he(keys[num_of_layers - 1], (3, 3, features, channels))

    fc1_w = (jax.random.normal(keys[-4], (channels, 32), jnp.float32)
             / jnp.sqrt(jnp.float32(channels)))
    fc1_b = 0.1 * jax.random.normal(keys[-3], (1, 32), jnp.float32)
    fc2_w = (jax.random.normal(keys[-2], (32, 1), jnp.float32)
             / jnp.sqrt(32.0))
    fc2_b = 0.1 * jax.random.normal(keys[-1], (1, 1), jnp.float32)
    return dict(w_first=w_first, w_mid=jnp.stack(w_mid),
                scales=jnp.stack(scales), shifts=jnp.stack(shifts),
                w_last=w_last, fc1_w=fc1_w, fc1_b=fc1_b,
                fc2_w=fc2_w, fc2_b=fc2_b)


# ----------------------------------------------------------------------------
# Pure-JAX reference (non-Pallas) with matched bf16 rounding.
# ----------------------------------------------------------------------------
def _conv3x3_ref(x, w):
    return lax.conv_general_dilated(
        x, w, window_strides=(1, 1), padding="SAME",
        dimension_numbers=("NHWC", "HWIO", "NHWC"),
        precision=lax.Precision.HIGHEST)


@jax.jit
def reference_forward(x_nchw, params):
    f32 = jnp.float32
    bf16 = jnp.bfloat16
    x = jnp.transpose(x_nchw, (0, 2, 3, 1)).astype(f32)
    h = jnp.maximum(_conv3x3_ref(x, params["w_first"]), 0.0)
    for l in range(params["w_mid"].shape[0]):
        h_in = h.astype(bf16).astype(f32)
        w_fold = (params["w_mid"][l]
                  * params["scales"][l]).astype(bf16).astype(f32)
        h = jnp.maximum(_conv3x3_ref(h_in, w_fold) + params["shifts"][l], 0.0)
    h_in = h.astype(bf16).astype(f32)
    w_l = params["w_last"].astype(bf16).astype(f32)
    y = _conv3x3_ref(h_in, w_l)                              # (N, H, W, 1)
    pooled = jnp.mean(y, axis=(1, 2))                        # (N, 1)
    hh = jnp.dot(pooled, params["fc1_w"],
                 precision=lax.Precision.HIGHEST) + params["fc1_b"]
    hh = jnp.where(hh > 0, hh, 0.01 * hh)
    o = jnp.dot(hh, params["fc2_w"],
                precision=lax.Precision.HIGHEST) + params["fc2_b"]
    return 4.0 / (1.0 + jnp.exp(-o))


if __name__ == "__main__":
    # DnCNN defaults: channels=1, 8 layers; N=4 exercises both per-step image
    # batching (B=2) and a multi-step grid (both v7x cores).
    N, C, H, W = 4, 1, 16, 16
    x = jax.random.normal(jax.random.PRNGKey(0), (N, C, H, W), jnp.float32)
    params = init_params(jax.random.PRNGKey(1), channels=C, num_of_layers=8)

    out = jax.block_until_ready(dncnn_forward(x, params))
    ref = jax.block_until_ready(reference_forward(x, params))

    assert out.shape == (N, 1), out.shape
    assert bool(jnp.all(jnp.isfinite(out)))
    assert bool(jnp.all((out >= 0.0) & (out <= 4.0)))         # sigmoid * 4
    max_err = float(jnp.max(jnp.abs(out - ref)))
    assert max_err < 3e-2, f"kernel/reference mismatch: {max_err}"
    print("KERNEL_OK")
</pallas_src>

<mosaic_0001>
module attributes {stable_mosaic.version = 11 : i64} {
  func.func @_dncnn_kernel(%arg0: i32, %arg1: memref<1x1x768xf32, #tpu.memory_space<vmem>>, %arg2: memref<1x768xf32, #tpu.memory_space<vmem>>, %arg3: memref<64x16xf32, #tpu.memory_space<vmem>>, %arg4: memref<6x64x576xbf16, #tpu.memory_space<vmem>>, %arg5: memref<6x64x1xf32, #tpu.memory_space<vmem>>, %arg6: memref<8x576xbf16, #tpu.memory_space<vmem>>, %arg7: memref<1x32xf32, #tpu.memory_space<vmem>>, %arg8: memref<1x32xf32, #tpu.memory_space<vmem>>, %arg9: memref<1x32xf32, #tpu.memory_space<vmem>>, %arg10: memref<1x1xf32, #tpu.memory_space<vmem>>, %arg11: memref<1x1x2xf32, #tpu.memory_space<vmem>>, %arg12: memref<2x64x768xbf16, #tpu.memory_space<vmem>>) attributes {dimension_semantics = [#tpu.dimension_semantics<parallel>], iteration_bounds = array<i64: 2>, scalar_prefetch = 0 : i64, scratch_operands = 1 : i64, tpu.core_type = #tpu.core_type<tc>, window_params = [{transform_indices = @transform_0, window_bounds = array<i64: 1, 1, 768>}, {pipeline_mode = #tpu.pipeline_mode<synchronous>, transform_indices = @transform_1, window_bounds = array<i64: 1, 768>}, {pipeline_mode = #tpu.pipeline_mode<synchronous>, transform_indices = @transform_2, window_bounds = array<i64: 64, 16>}, {pipeline_mode = #tpu.pipeline_mode<synchronous>, transform_indices = @transform_3, window_bounds = array<i64: 6, 64, 576>}, {pipeline_mode = #tpu.pipeline_mode<synchronous>, transform_indices = @transform_4, window_bounds = array<i64: 6, 64, 1>}, {pipeline_mode = #tpu.pipeline_mode<synchronous>, transform_indices = @transform_5, window_bounds = array<i64: 8, 576>}, {pipeline_mode = #tpu.pipeline_mode<synchronous>, transform_indices = @transform_6, window_bounds = array<i64: 1, 32>}, {pipeline_mode = #tpu.pipeline_mode<synchronous>, transform_indices = @transform_7, window_bounds = array<i64: 1, 32>}, {pipeline_mode = #tpu.pipeline_mode<synchronous>, transform_indices = @transform_8, window_bounds = array<i64: 1, 32>}, {pipeline_mode = #tpu.pipeline_mode<synchronous>, transform_indices = @transform_9, window_bounds = array<i64: 1, 1>}, {transform_indices = @transform_10, window_bounds = array<i64: 1, 1, 2>}]} {
    %c0 = arith.constant 0 : index
    %c0_0 = arith.constant 0 : index
    %0 = vector.load %arg2[%c0, %c0_0] : memref<1x768xf32, #tpu.memory_space<vmem>>, vector<1x768xf32>
    %c0_1 = arith.constant 0 : index
    %c0_2 = arith.constant 0 : index
    %c0_3 = arith.constant 0 : index
    %1 = vector.load %arg1[%c0_1, %c0_2, %c0_3] : memref<1x1x768xf32, #tpu.memory_space<vmem>>, vector<1x1x768xf32>
    %2 = vector.shape_cast %1 : vector<1x1x768xf32> to vector<1x768xf32>
    %cst = arith.constant 0.000000e+00 : f32
    %3 = vector.broadcast %cst : f32 to vector<1x19xf32>
    %4 = vector.extract_strided_slice %2 {offsets = [0, 0], sizes = [1, 749], strides = [1, 1]} : vector<1x768xf32> to vector<1x749xf32>
    %5 = tpu.concatenate %3, %4 in 1 : vector<1x19xf32>, vector<1x749xf32> -> vector<1x768xf32>
    %cst_4 = arith.constant 0.000000e+00 : f32
    %6 = vector.broadcast %cst_4 : f32 to vector<1x18xf32>
    %7 = vector.extract_strided_slice %2 {offsets = [0, 0], sizes = [1, 750], strides = [1, 1]} : vector<1x768xf32> to vector<1x750xf32>
    %8 = tpu.concatenate %6, %7 in 1 : vector<1x18xf32>, vector<1x750xf32> -> vector<1x768xf32>
    %cst_5 = arith.constant 0.000000e+00 : f32
    %9 = vector.broadcast %cst_5 : f32 to vector<1x17xf32>
    %10 = vector.extract_strided_slice %2 {offsets = [0, 0], sizes = [1, 751], strides = [1, 1]} : vector<1x768xf32> to vector<1x751xf32>
    %11 = tpu.concatenate %9, %10 in 1 : vector<1x17xf32>, vector<1x751xf32> -> vector<1x768xf32>
    %cst_6 = arith.constant 0.000000e+00 : f32
    %12 = vector.broadcast %cst_6 : f32 to vector<1x1xf32>
    %13 = vector.extract_strided_slice %2 {offsets = [0, 0], sizes = [1, 767], strides = [1, 1]} : vector<1x768xf32> to vector<1x767xf32>
    %14 = tpu.concatenate %12, %13 in 1 : vector<1x1xf32>, vector<1x767xf32> -> vector<1x768xf32>
    %cst_7 = arith.constant 0.000000e+00 : f32
    %15 = vector.broadcast %cst_7 : f32 to vector<1x1xf32>
    %16 = vector.extract_strided_slice %2 {offsets = [0, 1], sizes = [1, 767], strides = [1, 1]} : vector<1x768xf32> to vector<1x767xf32>
    %17 = tpu.concatenate %16, %15 in 1 : vector<1x767xf32>, vector<1x1xf32> -> vector<1x768xf32>
    %cst_8 = arith.constant 0.000000e+00 : f32
    %18 = vector.broadcast %cst_8 : f32 to vector<1x17xf32>
    %19 = vector.extract_strided_slice %2 {offsets = [0, 17], sizes = [1, 751], strides = [1, 1]} : vector<1x768xf32> to vector<1x751xf32>
    %20 = tpu.concatenate %19, %18 in 1 : vector<1x751xf32>, vector<1x17xf32> -> vector<1x768xf32>
    %cst_9 = arith.constant 0.000000e+00 : f32
    %21 = vector.broadcast %cst_9 : f32 to vector<1x18xf32>
    %22 = vector.extract_strided_slice %2 {offsets = [0, 18], sizes = [1, 750], strides = [1, 1]} : vector<1x768xf32> to vector<1x750xf32>
    %23 = tpu.concatenate %22, %21 in 1 : vector<1x750xf32>, vector<1x18xf32> -> vector<1x768xf32>
    %cst_10 = arith.constant 0.000000e+00 : f32
    %24 = vector.broadcast %cst_10 : f32 to vector<1x19xf32>
    %25 = vector.extract_strided_slice %2 {offsets = [0, 19], sizes = [1, 749], strides = [1, 1]} : vector<1x768xf32> to vector<1x749xf32>
    %26 = tpu.concatenate %25, %24 in 1 : vector<1x749xf32>, vector<1x19xf32> -> vector<1x768xf32>
    %cst_11 = arith.constant 0.000000e+00 : f32
    %27 = vector.broadcast %cst_11 : f32 to vector<7x768xf32>
    %28 = tpu.concatenate %5, %8, %11, %14, %2, %17, %20, %23, %26, %27 in 0 : vector<1x768xf32>, vector<1x768xf32>, vector<1x768xf32>, vector<1x768xf32>, vector<1x768xf32>, vector<1x768xf32>, vector<1x768xf32>, vector<1x768xf32>, vector<1x768xf32>, vector<7x768xf32> -> vector<16x768xf32>
    %c0_12 = arith.constant 0 : index
    %c0_13 = arith.constant 0 : index
    %29 = vector.load %arg3[%c0_12, %c0_13] : memref<64x16xf32, #tpu.memory_space<vmem>>, vector<64x16xf32>
    %cst_14 = arith.constant dense<0.000000e+00> : vector<64x768xf32>
    %30 = tpu.matmul %29, %28, %cst_14 {dimension_numbers = #tpu.dot_dimension_numbers<[1], [0], [0], [1], [0, 0, 1, 1], [], []>} : vector<64x16xf32>, vector<16x768xf32>, vector<64x768xf32> -> vector<64x768xf32>
    %cst_15 = arith.constant 0.000000e+00 : f32
    %31 = vector.broadcast %cst_15 : f32 to vector<64x768xf32>
    %32 = arith.maximumf %30, %31 : vector<64x768xf32>
    %33 = vector.broadcast %0 : vector<1x768xf32> to vector<64x768xf32>
    %34 = arith.mulf %32, %33 : vector<64x768xf32>
    %35 = arith.truncf %34 : vector<64x768xf32> to vector<64x768xbf16>
    %c0_16 = arith.constant 0 : index
    %c0_17 = arith.constant 0 : index
    %c0_18 = arith.constant 0 : index
    %36 = vector.load %arg12[%c0_16, %c0_17, %c0_18] : memref<2x64x768xbf16, #tpu.memory_space<vmem>>, vector<1x64x768xbf16>
    %37 = vector.shape_cast %36 : vector<1x64x768xbf16> to vector<64x768xbf16>
    %38 = vector.shape_cast %35 : vector<64x768xbf16> to vector<1x64x768xbf16>
    tpu.vector_store %arg12[%c0_16, %c0_17, %c0_18], %38 {strides = array<i32>} : memref<2x64x768xbf16, #tpu.memory_space<vmem>>, vector<1x64x768xbf16>,
    %c0_i32 = arith.constant 0 : i32
    %c3_i32 = arith.constant 3 : i32
    %39 = arith.addi %c0_i32, %c3_i32 : i32
    %c1_i32 = arith.constant 1 : i32
    scf.for %arg13 = %c0_i32 to %39 step %c1_i32  : i32 {
      %c2_i32 = arith.constant 2 : i32
      %105 = arith.muli %c2_i32, %arg13 : i32
      %c0_53 = arith.constant 0 : index
      %c0_54 = arith.constant 0 : index
      %c0_55 = arith.constant 0 : index
      %106 = vector.load %arg12[%c0_53, %c0_54, %c0_55] : memref<2x64x768xbf16, #tpu.memory_space<vmem>>, vector<1x64x768xbf16>
      %107 = vector.shape_cast %106 : vector<1x64x768xbf16> to vector<64x768xbf16>
      %cst_56 = arith.constant 0.000000e+00 : bf16
      %108 = vector.broadcast %cst_56 : bf16 to vector<64x19xbf16>
      %109 = vector.extract_strided_slice %107 {offsets = [0, 0], sizes = [64, 749], strides = [1, 1]} : vector<64x768xbf16> to vector<64x749xbf16>
      %110 = tpu.concatenate %108, %109 in 1 : vector<64x19xbf16>, vector<64x749xbf16> -> vector<64x768xbf16>
      %cst_57 = arith.constant 0.000000e+00 : bf16
      %111 = vector.broadcast %cst_57 : bf16 to vector<64x18xbf16>
      %112 = vector.extract_strided_slice %107 {offsets = [0, 0], sizes = [64, 750], strides = [1, 1]} : vector<64x768xbf16> to vector<64x750xbf16>
      %113 = tpu.concatenate %111, %112 in 1 : vector<64x18xbf16>, vector<64x750xbf16> -> vector<64x768xbf16>
      %cst_58 = arith.constant 0.000000e+00 : bf16
      %114 = vector.broadcast %cst_58 : bf16 to vector<64x17xbf16>
      %115 = vector.extract_strided_slice %107 {offsets = [0, 0], sizes = [64, 751], strides = [1, 1]} : vector<64x768xbf16> to vector<64x751xbf16>
      %116 = tpu.concatenate %114, %115 in 1 : vector<64x17xbf16>, vector<64x751xbf16> -> vector<64x768xbf16>
      %cst_59 = arith.constant 0.000000e+00 : bf16
      %117 = vector.broadcast %cst_59 : bf16 to vector<64x1xbf16>
      %118 = vector.extract_strided_slice %107 {offsets = [0, 0], sizes = [64, 767], strides = [1, 1]} : vector<64x768xbf16> to vector<64x767xbf16>
      %119 = tpu.concatenate %117, %118 in 1 : vector<64x1xbf16>, vector<64x767xbf16> -> vector<64x768xbf16>
      %cst_60 = arith.constant 0.000000e+00 : bf16
      %120 = vector.broadcast %cst_60 : bf16 to vector<64x1xbf16>
      %121 = vector.extract_strided_slice %107 {offsets = [0, 1], sizes = [64, 767], strides = [1, 1]} : vector<64x768xbf16> to vector<64x767xbf16>
      %122 = tpu.concatenate %121, %120 in 1 : vector<64x767xbf16>, vector<64x1xbf16> -> vector<64x768xbf16>
      %cst_61 = arith.constant 0.000000e+00 : bf16
      %123 = vector.broadcast %cst_61 : bf16 to vector<64x17xbf16>
      %124 = vector.extract_strided_slice %107 {offsets = [0, 17], sizes = [64, 751], strides = [1, 1]} : vector<64x768xbf16> to vector<64x751xbf16>
      %125 = tpu.concatenate %124, %123 in 1 : vector<64x751xbf16>, vector<64x17xbf16> -> vector<64x768xbf16>
      %cst_62 = arith.constant 0.000000e+00 : bf16
      %126 = vector.broadcast %cst_62 : bf16 to vector<64x18xbf16>
      %127 = vector.extract_strided_slice %107 {offsets = [0, 18], sizes = [64, 750], strides = [1, 1]} : vector<64x768xbf16> to vector<64x750xbf16>
      %128 = tpu.concatenate %127, %126 in 1 : vector<64x750xbf16>, vector<64x18xbf16> -> vector<64x768xbf16>
      %cst_63 = arith.constant 0.000000e+00 : bf16
      %129 = vector.broadcast %cst_63 : bf16 to vector<64x19xbf16>
      %130 = vector.extract_strided_slice %107 {offsets = [0, 19], sizes = [64, 749], strides = [1, 1]} : vector<64x768xbf16> to vector<64x749xbf16>
      %131 = tpu.concatenate %130, %129 in 1 : vector<64x749xbf16>, vector<64x19xbf16> -> vector<64x768xbf16>
      %132 = tpu.concatenate %110, %113, %116, %119, %107, %122, %125, %128, %131 in 0 : vector<64x768xbf16>, vector<64x768xbf16>, vector<64x768xbf16>, vector<64x768xbf16>, vector<64x768xbf16>, vector<64x768xbf16>, vector<64x768xbf16>, vector<64x768xbf16>, vector<64x768xbf16> -> vector<576x768xbf16>
      %133 = arith.index_cast %105 : i32 to index
      %c0_64 = arith.constant 0 : index
      %c0_65 = arith.constant 0 : index
      %134 = vector.load %arg4[%133, %c0_64, %c0_65] : memref<6x64x576xbf16, #tpu.memory_space<vmem>>, vector<1x64x576xbf16>
      %135 = vector.shape_cast %134 : vector<1x64x576xbf16> to vector<64x576xbf16>
      %cst_66 = arith.constant dense<0.000000e+00> : vector<64x768xf32>
      %136 = tpu.matmul %135, %132, %cst_66 {dimension_numbers = #tpu.dot_dimension_numbers<[1], [0], [0], [1], [0, 0, 1, 1], [], []>} : vector<64x576xbf16>, vector<576x768xbf16>, vector<64x768xf32> -> vector<64x768xf32>
      %137 = arith.index_cast %105 : i32 to index
      %c0_67 = arith.constant 0 : index
      %c0_68 = arith.constant 0 : index
      %138 = vector.load %arg5[%137, %c0_67, %c0_68] : memref<6x64x1xf32, #tpu.memory_space<vmem>>, vector<1x64x1xf32>
      %139 = vector.shape_cast %138 : vector<1x64x1xf32> to vector<64x1xf32>
      %140 = vector.broadcast %139 : vector<64x1xf32> to vector<64x768xf32>
      %141 = arith.addf %136, %140 : vector<64x768xf32>
      %cst_69 = arith.constant 0.000000e+00 : f32
      %142 = vector.broadcast %cst_69 : f32 to vector<64x768xf32>
      %143 = arith.maximumf %141, %142 : vector<64x768xf32>
      %144 = vector.broadcast %0 : vector<1x768xf32> to vector<64x768xf32>
      %145 = arith.mulf %143, %144 : vector<64x768xf32>
      %146 = arith.truncf %145 : vector<64x768xf32> to vector<64x768xbf16>
      %c1 = arith.constant 1 : index
      %c0_70 = arith.constant 0 : index
      %c0_71 = arith.constant 0 : index
      %147 = vector.load %arg12[%c1, %c0_70, %c0_71] : memref<2x64x768xbf16, #tpu.memory_space<vmem>>, vector<1x64x768xbf16>
      %148 = vector.shape_cast %147 : vector<1x64x768xbf16> to vector<64x768xbf16>
      %149 = vector.shape_cast %146 : vector<64x768xbf16> to vector<1x64x768xbf16>
      tpu.vector_store %arg12[%c1, %c0_70, %c0_71], %149 {strides = array<i32>} : memref<2x64x768xbf16, #tpu.memory_space<vmem>>, vector<1x64x768xbf16>,
      %c2_i32_72 = arith.constant 2 : i32
      %150 = arith.muli %c2_i32_72, %arg13 : i32
      %c1_i32_73 = arith.constant 1 : i32
      %151 = arith.addi %150, %c1_i32_73 : i32
      %c1_74 = arith.constant 1 : index
      %c0_75 = arith.constant 0 : index
      %c0_76 = arith.constant 0 : index
      %152 = vector.load %arg12[%c1_74, %c0_75, %c0_76] : memref<2x64x768xbf16, #tpu.memory_space<vmem>>, vector<1x64x768xbf16>
      %153 = vector.shape_cast %152 : vector<1x64x768xbf16> to vector<64x768xbf16>
      %cst_77 = arith.constant 0.000000e+00 : bf16
      %154 = vector.broadcast %cst_77 : bf16 to vector<64x19xbf16>
      %155 = vector.extract_strided_slice %153 {offsets = [0, 0], sizes = [64, 749], strides = [1, 1]} : vector<64x768xbf16> to vector<64x749xbf16>
      %156 = tpu.concatenate %154, %155 in 1 : vector<64x19xbf16>, vector<64x749xbf16> -> vector<64x768xbf16>
      %cst_78 = arith.constant 0.000000e+00 : bf16
      %157 = vector.broadcast %cst_78 : bf16 to vector<64x18xbf16>
      %158 = vector.extract_strided_slice %153 {offsets = [0, 0], sizes = [64, 750], strides = [1, 1]} : vector<64x768xbf16> to vector<64x750xbf16>
      %159 = tpu.concatenate %157, %158 in 1 : vector<64x18xbf16>, vector<64x750xbf16> -> vector<64x768xbf16>
      %cst_79 = arith.constant 0.000000e+00 : bf16
      %160 = vector.broadcast %cst_79 : bf16 to vector<64x17xbf16>
      %161 = vector.extract_strided_slice %153 {offsets = [0, 0], sizes = [64, 751], strides = [1, 1]} : vector<64x768xbf16> to vector<64x751xbf16>
      %162 = tpu.concatenate %160, %161 in 1 : vector<64x17xbf16>, vector<64x751xbf16> -> vector<64x768xbf16>
      %cst_80 = arith.constant 0.000000e+00 : bf16
      %163 = vector.broadcast %cst_80 : bf16 to vector<64x1xbf16>
      %164 = vector.extract_strided_slice %153 {offsets = [0, 0], sizes = [64, 767], strides = [1, 1]} : vector<64x768xbf16> to vector<64x767xbf16>
      %165 = tpu.concatenate %163, %164 in 1 : vector<64x1xbf16>, vector<64x767xbf16> -> vector<64x768xbf16>
      %cst_81 = arith.constant 0.000000e+00 : bf16
      %166 = vector.broadcast %cst_81 : bf16 to vector<64x1xbf16>
      %167 = vector.extract_strided_slice %153 {offsets = [0, 1], sizes = [64, 767], strides = [1, 1]} : vector<64x768xbf16> to vector<64x767xbf16>
      %168 = tpu.concatenate %167, %166 in 1 : vector<64x767xbf16>, vector<64x1xbf16> -> vector<64x768xbf16>
      %cst_82 = arith.constant 0.000000e+00 : bf16
      %169 = vector.broadcast %cst_82 : bf16 to vector<64x17xbf16>
      %170 = vector.extract_strided_slice %153 {offsets = [0, 17], sizes = [64, 751], strides = [1, 1]} : vector<64x768xbf16> to vector<64x751xbf16>
      %171 = tpu.concatenate %170, %169 in 1 : vector<64x751xbf16>, vector<64x17xbf16> -> vector<64x768xbf16>
      %cst_83 = arith.constant 0.000000e+00 : bf16
      %172 = vector.broadcast %cst_83 : bf16 to vector<64x18xbf16>
      %173 = vector.extract_strided_slice %153 {offsets = [0, 18], sizes = [64, 750], strides = [1, 1]} : vector<64x768xbf16> to vector<64x750xbf16>
      %174 = tpu.concatenate %173, %172 in 1 : vector<64x750xbf16>, vector<64x18xbf16> -> vector<64x768xbf16>
      %cst_84 = arith.constant 0.000000e+00 : bf16
      %175 = vector.broadcast %cst_84 : bf16 to vector<64x19xbf16>
      %176 = vector.extract_strided_slice %153 {offsets = [0, 19], sizes = [64, 749], strides = [1, 1]} : vector<64x768xbf16> to vector<64x749xbf16>
      %177 = tpu.concatenate %176, %175 in 1 : vector<64x749xbf16>, vector<64x19xbf16> -> vector<64x768xbf16>
      %178 = tpu.concatenate %156, %159, %162, %165, %153, %168, %171, %174, %177 in 0 : vector<64x768xbf16>, vector<64x768xbf16>, vector<64x768xbf16>, vector<64x768xbf16>, vector<64x768xbf16>, vector<64x768xbf16>, vector<64x768xbf16>, vector<64x768xbf16>, vector<64x768xbf16> -> vector<576x768xbf16>
      %179 = arith.index_cast %151 : i32 to index
      %c0_85 = arith.constant 0 : index
      %c0_86 = arith.constant 0 : index
      %180 = vector.load %arg4[%179, %c0_85, %c0_86] : memref<6x64x576xbf16, #tpu.memory_space<vmem>>, vector<1x64x576xbf16>
      %181 = vector.shape_cast %180 : vector<1x64x576xbf16> to vector<64x576xbf16>
      %cst_87 = arith.constant dense<0.000000e+00> : vector<64x768xf32>
      %182 = tpu.matmul %181, %178, %cst_87 {dimension_numbers = #tpu.dot_dimension_numbers<[1], [0], [0], [1], [0, 0, 1, 1], [], []>} : vector<64x576xbf16>, vector<576x768xbf16>, vector<64x768xf32> -> vector<64x768xf32>
      %183 = arith.index_cast %151 : i32 to index
      %c0_88 = arith.constant 0 : index
      %c0_89 = arith.constant 0 : index
      %184 = vector.load %arg5[%183, %c0_88, %c0_89] : memref<6x64x1xf32, #tpu.memory_space<vmem>>, vector<1x64x1xf32>
      %185 = vector.shape_cast %184 : vector<1x64x1xf32> to vector<64x1xf32>
      %186 = vector.broadcast %185 : vector<64x1xf32> to vector<64x768xf32>
      %187 = arith.addf %182, %186 : vector<64x768xf32>
      %cst_90 = arith.constant 0.000000e+00 : f32
      %188 = vector.broadcast %cst_90 : f32 to vector<64x768xf32>
      %189 = arith.maximumf %187, %188 : vector<64x768xf32>
      %190 = vector.broadcast %0 : vector<1x768xf32> to vector<64x768xf32>
      %191 = arith.mulf %189, %190 : vector<64x768xf32>
      %192 = arith.truncf %191 : vector<64x768xf32> to vector<64x768xbf16>
      %c0_91 = arith.constant 0 : index
      %c0_92 = arith.constant 0 : index
      %c0_93 = arith.constant 0 : index
      %193 = vector.load %arg12[%c0_91, %c0_92, %c0_93] : memref<2x64x768xbf16, #tpu.memory_space<vmem>>, vector<1x64x768xbf16>
      %194 = vector.shape_cast %193 : vector<1x64x768xbf16> to vector<64x768xbf16>
      %195 = vector.shape_cast %192 : vector<64x768xbf16> to vector<1x64x768xbf16>
      tpu.vector_store %arg12[%c0_91, %c0_92, %c0_93], %195 {strides = array<i32>} : memref<2x64x768xbf16, #tpu.memory_space<vmem>>, vector<1x64x768xbf16>,
    }
    %c3_i32_19 = arith.constant 3 : i32
    %c0_20 = arith.constant 0 : index
    %c0_21 = arith.constant 0 : index
    %c0_22 = arith.constant 0 : index
    %40 = vector.load %arg12[%c0_20, %c0_21, %c0_22] : memref<2x64x768xbf16, #tpu.memory_space<vmem>>, vector<1x64x768xbf16>
    %41 = vector.shape_cast %40 : vector<1x64x768xbf16> to vector<64x768xbf16>
    %cst_23 = arith.constant 0.000000e+00 : bf16
    %42 = vector.broadcast %cst_23 : bf16 to vector<64x19xbf16>
    %43 = vector.extract_strided_slice %41 {offsets = [0, 0], sizes = [64, 749], strides = [1, 1]} : vector<64x768xbf16> to vector<64x749xbf16>
    %44 = tpu.concatenate %42, %43 in 1 : vector<64x19xbf16>, vector<64x749xbf16> -> vector<64x768xbf16>
    %cst_24 = arith.constant 0.000000e+00 : bf16
    %45 = vector.broadcast %cst_24 : bf16 to vector<64x18xbf16>
    %46 = vector.extract_strided_slice %41 {offsets = [0, 0], sizes = [64, 750], strides = [1, 1]} : vector<64x768xbf16> to vector<64x750xbf16>
    %47 = tpu.concatenate %45, %46 in 1 : vector<64x18xbf16>, vector<64x750xbf16> -> vector<64x768xbf16>
    %cst_25 = arith.constant 0.000000e+00 : bf16
    %48 = vector.broadcast %cst_25 : bf16 to vector<64x17xbf16>
    %49 = vector.extract_strided_slice %41 {offsets = [0, 0], sizes = [64, 751], strides = [1, 1]} : vector<64x768xbf16> to vector<64x751xbf16>
    %50 = tpu.concatenate %48, %49 in 1 : vector<64x17xbf16>, vector<64x751xbf16> -> vector<64x768xbf16>
    %cst_26 = arith.constant 0.000000e+00 : bf16
    %51 = vector.broadcast %cst_26 : bf16 to vector<64x1xbf16>
    %52 = vector.extract_strided_slice %41 {offsets = [0, 0], sizes = [64, 767], strides = [1, 1]} : vector<64x768xbf16> to vector<64x767xbf16>
    %53 = tpu.concatenate %51, %52 in 1 : vector<64x1xbf16>, vector<64x767xbf16> -> vector<64x768xbf16>
    %cst_27 = arith.constant 0.000000e+00 : bf16
    %54 = vector.broadcast %cst_27 : bf16 to vector<64x1xbf16>
    %55 = vector.extract_strided_slice %41 {offsets = [0, 1], sizes = [64, 767], strides = [1, 1]} : vector<64x768xbf16> to vector<64x767xbf16>
    %56 = tpu.concatenate %55, %54 in 1 : vector<64x767xbf16>, vector<64x1xbf16> -> vector<64x768xbf16>
    %cst_28 = arith.constant 0.000000e+00 : bf16
    %57 = vector.broadcast %cst_28 : bf16 to vector<64x17xbf16>
    %58 = vector.extract_strided_slice %41 {offsets = [0, 17], sizes = [64, 751], strides = [1, 1]} : vector<64x768xbf16> to vector<64x751xbf16>
    %59 = tpu.concatenate %58, %57 in 1 : vector<64x751xbf16>, vector<64x17xbf16> -> vector<64x768xbf16>
    %cst_29 = arith.constant 0.000000e+00 : bf16
    %60 = vector.broadcast %cst_29 : bf16 to vector<64x18xbf16>
    %61 = vector.extract_strided_slice %41 {offsets = [0, 18], sizes = [64, 750], strides = [1, 1]} : vector<64x768xbf16> to vector<64x750xbf16>
    %62 = tpu.concatenate %61, %60 in 1 : vector<64x750xbf16>, vector<64x18xbf16> -> vector<64x768xbf16>
    %cst_30 = arith.constant 0.000000e+00 : bf16
    %63 = vector.broadcast %cst_30 : bf16 to vector<64x19xbf16>
    %64 = vector.extract_strided_slice %41 {offsets = [0, 19], sizes = [64, 749], strides = [1, 1]} : vector<64x768xbf16> to vector<64x749xbf16>
    %65 = tpu.concatenate %64, %63 in 1 : vector<64x749xbf16>, vector<64x19xbf16> -> vector<64x768xbf16>
    %66 = tpu.concatenate %44, %47, %50, %53, %41, %56, %59, %62, %65 in 0 : vector<64x768xbf16>, vector<64x768xbf16>, vector<64x768xbf16>, vector<64x768xbf16>, vector<64x768xbf16>, vector<64x768xbf16>, vector<64x768xbf16>, vector<64x768xbf16>, vector<64x768xbf16> -> vector<576x768xbf16>
    %c0_31 = arith.constant 0 : index
    %c0_32 = arith.constant 0 : index
    %67 = vector.load %arg6[%c0_31, %c0_32] : memref<8x576xbf16, #tpu.memory_space<vmem>>, vector<8x576xbf16>
    %cst_33 = arith.constant dense<0.000000e+00> : vector<8x768xf32>
    %68 = tpu.matmul %67, %66, %cst_33 {dimension_numbers = #tpu.dot_dimension_numbers<[1], [0], [0], [1], [0, 0, 1, 1], [], []>} : vector<8x576xbf16>, vector<576x768xbf16>, vector<8x768xf32> -> vector<8x768xf32>
    %69 = vector.extract_strided_slice %68 {offsets = [0, 0], sizes = [1, 768], strides = [1, 1]} : vector<8x768xf32> to vector<1x768xf32>
    %70 = arith.mulf %69, %0 : vector<1x768xf32>
    %71 = vector.shape_cast %70 : vector<1x768xf32> to vector<2x384xf32>
    %cst_34 = arith.constant dense<0.000000e+00> : vector<2xf32>
    %72 = vector.multi_reduction <add>, %71, %cst_34 [1] : vector<2x384xf32> to vector<2xf32>
    %73 = vector.shape_cast %72 : vector<2xf32> to vector<2x1xf32>
    %cst_35 = arith.constant 3.906250e-03 : f32
    %74 = vector.broadcast %cst_35 : f32 to vector<2x1xf32>
    %75 = arith.mulf %73, %74 : vector<2x1xf32>
    %c0_36 = arith.constant 0 : index
    %c0_37 = arith.constant 0 : index
    %76 = vector.load %arg7[%c0_36, %c0_37] : memref<1x32xf32, #tpu.memory_space<vmem>>, vector<1x32xf32>
    %77 = vector.broadcast %75 : vector<2x1xf32> to vector<2x32xf32>
    %78 = vector.broadcast %76 : vector<1x32xf32> to vector<2x32xf32>
    %79 = arith.mulf %77, %78 : vector<2x32xf32>
    %c0_38 = arith.constant 0 : index
    %c0_39 = arith.constant 0 : index
    %80 = vector.load %arg8[%c0_38, %c0_39] : memref<1x32xf32, #tpu.memory_space<vmem>>, vector<1x32xf32>
    %81 = vector.broadcast %80 : vector<1x32xf32> to vector<2x32xf32>
    %82 = arith.addf %79, %81 : vector<2x32xf32>
    %cst_40 = arith.constant 0.000000e+00 : f32
    %83 = vector.broadcast %cst_40 : f32 to vector<2x32xf32>
    %84 = arith.cmpf ogt, %82, %83 : vector<2x32xf32>
    %cst_41 = arith.constant 0.00999999977 : f32
    %85 = vector.broadcast %cst_41 : f32 to vector<2x32xf32>
    %86 = arith.mulf %85, %82 : vector<2x32xf32>
    %87 = arith.select %84, %82, %86 : vector<2x32xi1>, vector<2x32xf32>
    %c0_42 = arith.constant 0 : index
    %c0_43 = arith.constant 0 : index
    %88 = vector.load %arg9[%c0_42, %c0_43] : memref<1x32xf32, #tpu.memory_space<vmem>>, vector<1x32xf32>
    %89 = vector.broadcast %88 : vector<1x32xf32> to vector<2x32xf32>
    %90 = arith.mulf %87, %89 : vector<2x32xf32>
    %cst_44 = arith.constant dense<0.000000e+00> : vector<2xf32>
    %91 = vector.multi_reduction <add>, %90, %cst_44 [1] : vector<2x32xf32> to vector<2xf32>
    %92 = vector.shape_cast %91 : vector<2xf32> to vector<2x1xf32>
    %c0_45 = arith.constant 0 : index
    %c0_46 = arith.constant 0 : index
    %93 = vector.load %arg10[%c0_45, %c0_46] : memref<1x1xf32, #tpu.memory_space<vmem>>, vector<1x1xf32>
    %94 = vector.broadcast %93 : vector<1x1xf32> to vector<2x1xf32>
    %95 = arith.addf %92, %94 : vector<2x1xf32>
    %cst_47 = arith.constant 0.000000e+00 : f32
    %96 = vector.broadcast %cst_47 : f32 to vector<2x1xf32>
    %97 = arith.subf %96, %95 : vector<2x1xf32>
    %98 = math.exp %97 : vector<2x1xf32>
    %cst_48 = arith.constant 1.000000e+00 : f32
    %99 = vector.broadcast %cst_48 : f32 to vector<2x1xf32>
    %100 = arith.addf %99, %98 : vector<2x1xf32>
    %cst_49 = arith.constant 4.000000e+00 : f32
    %101 = vector.broadcast %cst_49 : f32 to vector<2x1xf32>
    %102 = arith.divf %101, %100 : vector<2x1xf32>
    %103 = vector.shape_cast %102 : vector<2x1xf32> to vector<1x1x2xf32>
    %c0_50 = arith.constant 0 : index
    %c0_51 = arith.constant 0 : index
    %c0_52 = arith.constant 0 : index
    %104 = vector.load %arg11[%c0_50, %c0_51, %c0_52] : memref<1x1x2xf32, #tpu.memory_space<vmem>>, vector<1x1x2xf32>
    tpu.vector_store %arg11[%c0_50, %c0_51, %c0_52], %103 {strides = array<i32>} : memref<1x1x2xf32, #tpu.memory_space<vmem>>, vector<1x1x2xf32>,
    return
  }
  func.func @transform_0(%arg0: i32) -> (i32, i32, i32) {
    %c0_i32 = arith.constant 0 : i32
    %c0_i32_0 = arith.constant 0 : i32
    %c0_i32_1 = arith.constant 0 : i32
    return %arg0, %c0_i32, %c0_i32_0 : i32, i32, i32
  }
  func.func @transform_1(%arg0: i32) -> (i32, i32) {
    %c0_i32 = arith.constant 0 : i32
    %c0_i32_0 = arith.constant 0 : i32
    %c0_i32_1 = arith.constant 0 : i32
    return %c0_i32, %c0_i32_0 : i32, i32
  }
  func.func @transform_2(%arg0: i32) -> (i32, i32) {
    %c0_i32 = arith.constant 0 : i32
    %c0_i32_0 = arith.constant 0 : i32
    %c0_i32_1 = arith.constant 0 : i32
    return %c0_i32, %c0_i32_0 : i32, i32
  }
  func.func @transform_3(%arg0: i32) -> (i32, i32, i32) {
    %c0_i32 = arith.constant 0 : i32
    %c0_i32_0 = arith.constant 0 : i32
    %c0_i32_1 = arith.constant 0 : i32
    %c0_i32_2 = arith.constant 0 : i32
    return %c0_i32, %c0_i32_0, %c0_i32_1 : i32, i32, i32
  }
  func.func @transform_4(%arg0: i32) -> (i32, i32, i32) {
    %c0_i32 = arith.constant 0 : i32
    %c0_i32_0 = arith.constant 0 : i32
    %c0_i32_1 = arith.constant 0 : i32
    %c0_i32_2 = arith.constant 0 : i32
    return %c0_i32, %c0_i32_0, %c0_i32_1 : i32, i32, i32
  }
  func.func @transform_5(%arg0: i32) -> (i32, i32) {
    %c0_i32 = arith.constant 0 : i32
    %c0_i32_0 = arith.constant 0 : i32
    %c0_i32_1 = arith.constant 0 : i32
    return %c0_i32, %c0_i32_0 : i32, i32
  }
  func.func @transform_6(%arg0: i32) -> (i32, i32) {
    %c0_i32 = arith.constant 0 : i32
    %c0_i32_0 = arith.constant 0 : i32
    %c0_i32_1 = arith.constant 0 : i32
    return %c0_i32, %c0_i32_0 : i32, i32
  }
  func.func @transform_7(%arg0: i32) -> (i32, i32) {
    %c0_i32 = arith.constant 0 : i32
    %c0_i32_0 = arith.constant 0 : i32
    %c0_i32_1 = arith.constant 0 : i32
    return %c0_i32, %c0_i32_0 : i32, i32
  }
  func.func @transform_8(%arg0: i32) -> (i32, i32) {
    %c0_i32 = arith.constant 0 : i32
    %c0_i32_0 = arith.constant 0 : i32
    %c0_i32_1 = arith.constant 0 : i32
    return %c0_i32, %c0_i32_0 : i32, i32
  }
  func.func @transform_9(%arg0: i32) -> (i32, i32) {
    %c0_i32 = arith.constant 0 : i32
    %c0_i32_0 = arith.constant 0 : i32
    %c0_i32_1 = arith.constant 0 : i32
    return %c0_i32, %c0_i32_0 : i32, i32
  }
  func.func @transform_10(%arg0: i32) -> (i32, i32, i32) {
    %c0_i32 = arith.constant 0 : i32
    %c0_i32_0 = arith.constant 0 : i32
    %c0_i32_1 = arith.constant 0 : i32
    return %arg0, %c0_i32, %c0_i32_0 : i32, i32, i32
  }
}

</mosaic_0001>

<llo_original>
// kernel: dncnn_forward.1
$region0: #{dncnn_forward.1}
  #allocation0 [shape = 'u32[]', space=smem, size = 0x4, offset = 0x4, fixed_abs, tag = 'smem constant byte address 0x4 - core index']
  #allocation1 [shape = 'u32[144,128]{1,0:T(1,128)}', space=vmem, size = 0x12000, scoped, tag = 'internal scratch']
  #allocation2 [shape = 'bf16[2,64,768]{2,1,0:T(16,128)(2,1)}', space=vmem, size = 0x30000, scoped, tag = 'scratch operand']
  #allocation3 [shape = 'f32[1,1]{1,0:T(1,128)S(1)}', space=vmem, size = 0x200, scoped, tag = 'scoped memory for dncnn_forward.1']
  %s0 = inlined_call_operand.vmem [shape: f32[2,1,768], index: 0, kind: input, shape index: {}]
  %s1 = inlined_call_operand.vmem [shape: f32[1,768], index: 1, kind: input, shape index: {}]
  %s2 = inlined_call_operand.vmem [shape: f32[64,16], index: 2, kind: input, shape index: {}]
  %s3 = inlined_call_operand.vmem [shape: bf16[6,64,576], index: 3, kind: input, shape index: {}]
  %s4 = inlined_call_operand.vmem [shape: f32[6,64,1], index: 4, kind: input, shape index: {}]
  %s5 = inlined_call_operand.vmem [shape: bf16[8,576], index: 5, kind: input, shape index: {}]
  %s6 = inlined_call_operand.vmem [shape: f32[1,32], index: 6, kind: input, shape index: {}]
  %s7 = inlined_call_operand.vmem [shape: f32[1,32], index: 7, kind: input, shape index: {}]
  %s8 = inlined_call_operand.vmem [shape: f32[1,32], index: 8, kind: input, shape index: {}]
  %s9 = inlined_call_operand.<no memory space> [shape: f32[1,1], index: 9, kind: input, shape index: {}]
  %s10 = inlined_call_operand.vmem [shape: f32[2,1,2], index: 10, kind: output, shape index: {}]
  %s11 = sld [smem:[#allocation0]]
  $region80: #{dncnn_forward.1} parent=0
    _
  %s13 = ssub.s32 1, %s11
  %s14 = scalar_select 0, %s13, %s11
  %v15 = vstv %s9
  %16 = vst [vmem:[#allocation3] sm:$0x1] %v15
  loop: start=0, step=1, limit=4
  $region2: #{dncnn_forward.1} parent=0 // loop_pre_header
    _
  $region3: #{dncnn_forward.1} parent=0 // loop_header
    %s18 = sphi 0, %s22
    %p19 = scmp.ge.s32.totalorder %s18, 4
    %s28 = sphi 0, %s30
    %s31 = sphi 0, %s28
    %s32 = sphi 0, %s31
    %s48 = sphi 0, %s32
    %s52 = sphi 0, %s52
    %s54 = sphi 0, %s52
    %s55 = sphi 0, %s54
    %s69 = sphi 0, %s55
    %s73 = sphi 0, %s73
    %s75 = sphi 0, %s73
    %s76 = sphi 0, %s75
    %s90 = sphi 0, %s76
    %s94 = sphi 0, %s94
    %s96 = sphi 0, %s94
    %s97 = sphi 0, %s96
    %s111 = sphi 0, %s97
    %s115 = sphi 0, %s115
    %s117 = sphi 0, %s115
    %s118 = sphi 0, %s117
    %s132 = sphi 0, %s118
    %s136 = sphi 0, %s136
    %s138 = sphi 0, %s136
    %s139 = sphi 0, %s138
    %s153 = sphi 0, %s139
    %s157 = sphi 0, %s157
    %s159 = sphi 0, %s157
    %s160 = sphi 0, %s159
    %s174 = sphi 0, %s160
    %s178 = sphi 0, %s178
    %s180 = sphi 0, %s178
    %s181 = sphi 0, %s180
    %s195 = sphi 0, %s181
    %s199 = sphi 0, %s199
    %s201 = sphi 0, %s199
    %s202 = sphi 0, %s201
    %s216 = sphi 0, %s202
    %s220 = sphi 0, %s220
    %s222 = sphi 0, %s220
    %s223 = sphi 0, %s222
    %s237 = sphi 0, %s223
    %s243 = sphi 0, %s245
    %s246 = sphi 0, %s243
    %s247 = sphi 0, %s246
    %s263 = sphi 0, %s247
  $region4: #{dncnn_forward.1} parent=0 // loop_header_branch
    %21 = sbr.rel (%p19) target = $region8
  $region5: #{dncnn_forward.1} parent=0 // loop_body
    %s23 = ssub.s32 %s18, 1
    %s24 = ssub.s32 %s18, 2
    %s25 = sadd.s32 %s18, 1
    %s26 = ssub.s32 %s18, %s25
    %p27 = scmp.eq.s32.totalorder %s26, 0
    %s29 = sadd.s32 %s28, 1
    %s30 = scalar_select %p27, %s28, %s29
    %p33 = pneg %p27
    %p34 = scmp.eq.s32.totalorder %s18, 1
    %p35 = por %p33, %p34
    %p36 = scmp.ne.s32.totalorder %s28, %s31
    %p37 = scmp.eq.s32.totalorder %s18, 0
    %p38 = por %p36, %p37
    %p39 = scmp.ne.s32.totalorder %s28, %s31
    %p40 = scmp.eq.s32.totalorder %s23, 1
    %p41 = por %p39, %p40
    %p42 = scmp.ne.s32.totalorder %s31, %s32
    %p43 = scmp.eq.s32.totalorder %s23, 0
    %p44 = por %p42, %p43
    %p45 = scmp.ne.s32.totalorder %s31, %s32
    %p46 = scmp.eq.s32.totalorder %s24, 1
    %p47 = por %p45, %p46
    %p49 = scmp.ne.s32.totalorder %s32, %s48
    %p50 = scmp.eq.s32.totalorder %s24, 0
    %p51 = por %p49, %p50
    %s53 = sadd.s32 %s52, 1
    %p56 = scmp.eq.s32.totalorder %s18, 1
    %p57 = scmp.ne.s32.totalorder %s52, %s54
    %p58 = scmp.eq.s32.totalorder %s18, 0
    %p59 = por %p57, %p58
    %p60 = scmp.ne.s32.totalorder %s52, %s54
    %p61 = scmp.eq.s32.totalorder %s23, 1
    %p62 = por %p60, %p61
    %p63 = scmp.ne.s32.totalorder %s54, %s55
    %p64 = scmp.eq.s32.totalorder %s23, 0
    %p65 = por %p63, %p64
    %p66 = scmp.ne.s32.totalorder %s54, %s55
    %p67 = scmp.eq.s32.totalorder %s24, 1
    %p68 = por %p66, %p67
    %p70 = scmp.ne.s32.totalorder %s55, %s69
    %p71 = scmp.eq.s32.totalorder %s24, 0
    %p72 = por %p70, %p71
    %s74 = sadd.s32 %s73, 1
    %p77 = scmp.eq.s32.totalorder %s18, 1
    %p78 = scmp.ne.s32.totalorder %s73, %s75
    %p79 = scmp.eq.s32.totalorder %s18, 0
    %p80 = por %p78, %p79
    %p81 = scmp.ne.s32.totalorder %s73, %s75
    %p82 = scmp.eq.s32.totalorder %s23, 1
    %p83 = por %p81, %p82
    %p84 = scmp.ne.s32.totalorder %s75, %s76
    %p85 = scmp.eq.s32.totalorder %s23, 0
    %p86 = por %p84, %p85
    %p87 = scmp.ne.s32.totalorder %s75, %s76
    %p88 = scmp.eq.s32.totalorder %s24, 1
    %p89 = por %p87, %p88
    %p91 = scmp.ne.s32.totalorder %s76, %s90
    %p92 = scmp.eq.s32.totalorder %s24, 0
    %p93 = por %p91, %p92
    %s95 = sadd.s32 %s94, 1
    %p98 = scmp.eq.s32.totalorder %s18, 1
    %p99 = scmp.ne.s32.totalorder %s94, %s96
    %p100 = scmp.eq.s32.totalorder %s18, 0
    %p101 = por %p99, %p100
    %p102 = scmp.ne.s32.totalorder %s94, %s96
    %p103 = scmp.eq.s32.totalorder %s23, 1
    %p104 = por %p102, %p103
    %p105 = scmp.ne.s32.totalorder %s96, %s97
    %p106 = scmp.eq.s32.totalorder %s23, 0
    %p107 = por %p105, %p106
    %p108 = scmp.ne.s32.totalorder %s96, %s97
    %p109 = scmp.eq.s32.totalorder %s24, 1
    %p110 = por %p108, %p109
    %p112 = scmp.ne.s32.totalorder %s97, %s111
    %p113 = scmp.eq.s32.totalorder %s24, 0
    %p114 = por %p112, %p113
    %s116 = sadd.s32 %s115, 1
    %p119 = scmp.eq.s32.totalorder %s18, 1
    %p120 = scmp.ne.s32.totalorder %s115, %s117
    %p121 = scmp.eq.s32.totalorder %s18, 0
    %p122 = por %p120, %p121
    %p123 = scmp.ne.s32.totalorder %s115, %s117
    %p124 = scmp.eq.s32.totalorder %s23, 1
    %p125 = por %p123, %p124
    %p126 = scmp.ne.s32.totalorder %s117, %s118
    %p127 = scmp.eq.s32.totalorder %s23, 0
    %p128 = por %p126, %p127
    %p129 = scmp.ne.s32.totalorder %s117, %s118
    %p130 = scmp.eq.s32.totalorder %s24, 1
    %p131 = por %p129, %p130
    %p133 = scmp.ne.s32.totalorder %s118, %s132
    %p134 = scmp.eq.s32.totalorder %s24, 0
    %p135 = por %p133, %p134
    %s137 = sadd.s32 %s136, 1
    %p140 = scmp.eq.s32.totalorder %s18, 1
    %p141 = scmp.ne.s32.totalorder %s136, %s138
    %p142 = scmp.eq.s32.totalorder %s18, 0
    %p143 = por %p141, %p142
    %p144 = scmp.ne.s32.totalorder %s136, %s138
    %p145 = scmp.eq.s32.totalorder %s23, 1
    %p146 = por %p144, %p145
    %p147 = scmp.ne.s32.totalorder %s138, %s139
    %p148 = scmp.eq.s32.totalorder %s23, 0
    %p149 = por %p147, %p148
    %p150 = scmp.ne.s32.totalorder %s138, %s139
    %p151 = scmp.eq.s32.totalorder %s24, 1
    %p152 = por %p150, %p151
    %p154 = scmp.ne.s32.totalorder %s139, %s153
    %p155 = scmp.eq.s32.totalorder %s24, 0
    %p156 = por %p154, %p155
    %s158 = sadd.s32 %s157, 1
    %p161 = scmp.eq.s32.totalorder %s18, 1
    %p162 = scmp.ne.s32.totalorder %s157, %s159
    %p163 = scmp.eq.s32.totalorder %s18, 0
    %p164 = por %p162, %p163
    %p165 = scmp.ne.s32.totalorder %s157, %s159
    %p166 = scmp.eq.s32.totalorder %s23, 1
    %p167 = por %p165, %p166
    %p168 = scmp.ne.s32.totalorder %s159, %s160
    %p169 = scmp.eq.s32.totalorder %s23, 0
    %p170 = por %p168, %p169
    %p171 = scmp.ne.s32.totalorder %s159, %s160
    %p172 = scmp.eq.s32.totalorder %s24, 1
    %p173 = por %p171, %p172
    %p175 = scmp.ne.s32.totalorder %s160, %s174
    %p176 = scmp.eq.s32.totalorder %s24, 0
    %p177 = por %p175, %p176
    %s179 = sadd.s32 %s178, 1
    %p182 = scmp.eq.s32.totalorder %s18, 1
    %p183 = scmp.ne.s32.totalorder %s178, %s180
    %p184 = scmp.eq.s32.totalorder %s18, 0
    %p185 = por %p183, %p184
    %p186 = scmp.ne.s32.totalorder %s178, %s180
    %p187 = scmp.eq.s32.totalorder %s23, 1
    %p188 = por %p186, %p187
    %p189 = scmp.ne.s32.totalorder %s180, %s181
    %p190 = scmp.eq.s32.totalorder %s23, 0
    %p191 = por %p189, %p190
    %p192 = scmp.ne.s32.totalorder %s180, %s181
    %p193 = scmp.eq.s32.totalorder %s24, 1
    %p194 = por %p192, %p193
    %p196 = scmp.ne.s32.totalorder %s181, %s195
    %p197 = scmp.eq.s32.totalorder %s24, 0
    %p198 = por %p196, %p197
    %s200 = sadd.s32 %s199, 1
    %p203 = scmp.eq.s32.totalorder %s18, 1
    %p204 = scmp.ne.s32.totalorder %s199, %s201
    %p205 = scmp.eq.s32.totalorder %s18, 0
    %p206 = por %p204, %p205
    %p207 = scmp.ne.s32.totalorder %s199, %s201
    %p208 = scmp.eq.s32.totalorder %s23, 1
    %p209 = por %p207, %p208
    %p210 = scmp.ne.s32.totalorder %s201, %s202
    %p211 = scmp.eq.s32.totalorder %s23, 0
    %p212 = por %p210, %p211
    %p213 = scmp.ne.s32.totalorder %s201, %s202
    %p214 = scmp.eq.s32.totalorder %s24, 1
    %p215 = por %p213, %p214
    %p217 = scmp.ne.s32.totalorder %s202, %s216
    %p218 = scmp.eq.s32.totalorder %s24, 0
    %p219 = por %p217, %p218
    %s221 = sadd.s32 %s220, 1
    %p224 = scmp.eq.s32.totalorder %s18, 1
    %p225 = scmp.ne.s32.totalorder %s220, %s222
    %p226 = scmp.eq.s32.totalorder %s18, 0
    %p227 = por %p225, %p226
    %p228 = scmp.ne.s32.totalorder %s220, %s222
    %p229 = scmp.eq.s32.totalorder %s23, 1
    %p230 = por %p228, %p229
    %p231 = scmp.ne.s32.totalorder %s222, %s223
    %p232 = scmp.eq.s32.totalorder %s23, 0
    %p233 = por %p231, %p232
    %p234 = scmp.ne.s32.totalorder %s222, %s223
    %p235 = scmp.eq.s32.totalorder %s24, 1
    %p236 = por %p234, %p235
    %p238 = scmp.ne.s32.totalorder %s223, %s237
    %p239 = scmp.eq.s32.totalorder %s24, 0
    %p240 = por %p238, %p239
    %s241 = ssub.s32 %s18, %s25
    %p242 = scmp.eq.s32.totalorder %s241, 0
    %s244 = sadd.s32 %s243, 1
    %s245 = scalar_select %p242, %s243, %s244
    %p248 = pneg %p242
    %p249 = scmp.eq.s32.totalorder %s18, 1
    %p250 = por %p248, %p249
    %p251 = scmp.ne.s32.totalorder %s243, %s246
    %p252 = scmp.eq.s32.totalorder %s18, 0
    %p253 = por %p251, %p252
    %p254 = scmp.ne.s32.totalorder %s243, %s246
    %p255 = scmp.eq.s32.totalorder %s23, 1
    %p256 = por %p254, %p255
    %p257 = scmp.ne.s32.totalorder %s246, %s247
    %p258 = scmp.eq.s32.totalorder %s23, 0
    %p259 = por %p257, %p258
    %p260 = scmp.ne.s32.totalorder %s246, %s247
    %p261 = scmp.eq.s32.totalorder %s24, 1
    %p262 = por %p260, %p261
    %p264 = scmp.ne.s32.totalorder %s247, %s263
    %p265 = scmp.eq.s32.totalorder %s24, 0
    %p266 = por %p264, %p265
    %p267 = scmp.le.s32.totalorder 1, %s18
    %p268 = scmp.lt.s32.totalorder %s18, 3
    %p269 = pnand %p267, %p268
    %p270 = pneg %p269
    // Predicated region
    $region9: #{dncnn_forward.1} parent=5 // pred_check
      _
    $region10: #{dncnn_forward.1} parent=5 // pred_check_branch
      %272 = sbr.rel (%p269) target = $region12
    $region11: #{dncnn_forward.1} parent=5 // pred_region
      %s273 = ssub.s32 %s18, 1
      // Predicated region
      $region13: #{dncnn_forward.1} parent=11 // pred_check
        %p274 = pneg %p65
      $region14: #{dncnn_forward.1} parent=11 // pred_check_branch
        %276 = sbr.rel (%p274) target = $region16
      $region15: #{dncnn_forward.1} parent=11 // pred_region
        _
      $region16: #{dncnn_forward.1} parent=11 // pred_fallthru
        _
      // Predicated region
      $region17: #{dncnn_forward.1} parent=11 // pred_check
        %p277 = pneg %p86
      $region18: #{dncnn_forward.1} parent=11 // pred_check_branch
        %279 = sbr.rel (%p277) target = $region20
      $region19: #{dncnn_forward.1} parent=11 // pred_region
        _
      $region20: #{dncnn_forward.1} parent=11 // pred_fallthru
        _
      // Predicated region
      $region21: #{dncnn_forward.1} parent=11 // pred_check
        %p280 = pneg %p107
      $region22: #{dncnn_forward.1} parent=11 // pred_check_branch
        %282 = sbr.rel (%p280) target = $region24
      $region23: #{dncnn_forward.1} parent=11 // pred_region
        _
      $region24: #{dncnn_forward.1} parent=11 // pred_fallthru
        _
      // Predicated region
      $region25: #{dncnn_forward.1} parent=11 // pred_check
        %p283 = pneg %p128
      $region26: #{dncnn_forward.1} parent=11 // pred_check_branch
        %285 = sbr.rel (%p283) target = $region28
      $region27: #{dncnn_forward.1} parent=11 // pred_region
        _
      $region28: #{dncnn_forward.1} parent=11 // pred_fallthru
        _
      // Predicated region
      $region29: #{dncnn_forward.1} parent=11 // pred_check
        %p286 = pneg %p149
      $region30: #{dncnn_forward.1} parent=11 // pred_check_branch
        %288 = sbr.rel (%p286) target = $region32
      $region31: #{dncnn_forward.1} parent=11 // pred_region
        _
      $region32: #{dncnn_forward.1} parent=11 // pred_fallthru
        _
      // Predicated region
      $region33: #{dncnn_forward.1} parent=11 // pred_check
        %p289 = pneg %p170
      $region34: #{dncnn_forward.1} parent=11 // pred_check_branch
        %291 = sbr.rel (%p289) target = $region36
      $region35: #{dncnn_forward.1} parent=11 // pred_region
        _
      $region36: #{dncnn_forward.1} parent=11 // pred_fallthru
        _
      // Predicated region
      $region37: #{dncnn_forward.1} parent=11 // pred_check
        %p292 = pneg %p191
      $region38: #{dncnn_forward.1} parent=11 // pred_check_branch
        %294 = sbr.rel (%p292) target = $region40
      $region39: #{dncnn_forward.1} parent=11 // pred_region
        _
      $region40: #{dncnn_forward.1} parent=11 // pred_fallthru
        _
      // Predicated region
      $region41: #{dncnn_forward.1} parent=11 // pred_check
        %p295 = pneg %p212
      $region42: #{dncnn_forward.1} parent=11 // pred_check_branch
        %297 = sbr.rel (%p295) target = $region44
      $region43: #{dncnn_forward.1} parent=11 // pred_region
        _
      $region44: #{dncnn_forward.1} parent=11 // pred_fallthru
        _
      // Predicated region
      $region45: #{dncnn_forward.1} parent=11 // pred_check
        %p298 = pneg %p233
      $region46: #{dncnn_forward.1} parent=11 // pred_check_branch
        %300 = sbr.rel (%p298) target = $region48
      $region47: #{dncnn_forward.1} parent=11 // pred_region
        _
      $region48: #{dncnn_forward.1} parent=11 // pred_fallthru
        _
    $region12: #{dncnn_forward.1} parent=5 // pred_fallthru
      _
    %p301 = scmp.lt.s32.totalorder %s18, 2
    // Predicated region
    $region49: #{dncnn_forward.1} parent=5 // pred_check
      %p302 = pneg %p301
    $region50: #{dncnn_forward.1} parent=5 // pred_check_branch
      %304 = sbr.rel (%p302) target = $region52
    $region51: #{dncnn_forward.1} parent=5 // pred_region
      // Predicated region
      $region53: #{dncnn_forward.1} parent=51 // pred_check
        %p305 = pneg %p38
      $region54: #{dncnn_forward.1} parent=51 // pred_check_branch
        %307 = sbr.rel (%p305) target = $region56
      $region55: #{dncnn_forward.1} parent=51 // pred_region
        %p308 = scmp.lt.s32.totalorder %s18, 1
        %s309 = scalar_select %p308, %s18, 1
        %s310 = smul.addr %s309, 6
        %s311 = scalar_lea.vmem %s0, %s310
      $region56: #{dncnn_forward.1} parent=51 // pred_fallthru
        _
    $region52: #{dncnn_forward.1} parent=5 // pred_fallthru
      _
    %p312 = scmp.le.s32.totalorder 1, %s18
    %p313 = scmp.lt.s32.totalorder %s18, 3
    %p314 = pnand %p312, %p313
    %p315 = pneg %p314
    // Predicated region
    $region57: #{dncnn_forward.1} parent=5 // pred_check
      _
    $region58: #{dncnn_forward.1} parent=5 // pred_check_branch
      %317 = sbr.rel (%p314) target = $region60
    $region59: #{dncnn_forward.1} parent=5 // pred_region
      %s318 = ssub.s32 %s18, 1
      %p319 = scmp.lt.s32.totalorder %s23, 1
      %s320 = scalar_select %p319, %s23, 1
      %s321 = smul.addr %s320, 6
      %s322 = scalar_lea.vmem %s0, %s321
      %p323 = pneg %p44
      %p324 = pneg %p41
      %p325 = pneg %p65
      %p326 = pneg %p62
      %p327 = pneg %p86
      %p328 = pneg %p83
      %p329 = pneg %p107
      %p330 = pneg %p104
      %p331 = pneg %p128
      %p332 = pneg %p125
      %p333 = pneg %p149
      %p334 = pneg %p146
      %p335 = pneg %p170
      %p336 = pneg %p167
      %p337 = pneg %p191
      %p338 = pneg %p188
      %p339 = pneg %p212
      %p340 = pneg %p209
      %p341 = pneg %p233
      %p342 = pneg %p230
      %p343 = pneg %p259
      %p344 = pneg %p256
      %p345 = scmp.lt.s32.totalorder %s23, 1
      %s346 = scalar_select %p345, %s23, 1
      %s347 = scalar_lea.vmem %s10, %s346
      %p348 = scmp.lt.s32.totalorder %s23, 1
      %s349 = scalar_select %p348, %s23, 1
      %s350 = smul.addr %s349, 6
      %s351 = scalar_lea.vmem %s0, %s350
      %p352 = scmp.lt.s32.totalorder %s23, 1
      %s353 = scalar_select %p352, %s23, 1
      %s354 = scalar_lea.vmem %s10, %s353
      %v356 = vld [vmem:[%s1] sm:$0x3f]
      %v357 = vld [vmem:[%s351] sm:$0x3f]
      %v359 = vlaneseq
      %v360 = vshrl.u32 %v359, 7
      %v361 = vsub.s32 0, %v360
      %v362 = vrot.slane %v357, %v361
      %v363 = vlaneseq
      %v364 = vshrl.u32 %v363, 7
      %v365 = vsub.s32 1, %v364
      %v366 = vrot.slane %v357, %v365
      %v367 = vlaneseq
      %v368 = vshrl.u32 %v367, 7
      %v369 = vsub.s32 2, %v368
      %v370 = vrot.slane %v357, %v369
      %v371 = vlaneseq
      %v372 = vshrl.u32 %v371, 7
      %v373 = vsub.s32 3, %v372
      %v374 = vrot.slane %v357, %v373
      %v375 = vlaneseq
      %v376 = vshrl.u32 %v375, 7
      %v377 = vsub.s32 4, %v376
      %v378 = vrot.slane %v357, %v377
      %v379 = vlaneseq
      %v380 = vshrl.u32 %v379, 7
      %v381 = vsub.s32 5, %v380
      %v382 = vrot.slane %v357, %v381
      %383 = vrot.lane.b32.xlu0 %v362, 19
      %v384 = vpop.permute.xlu0 %383
      %385 = vrot.lane.b32.xlu0 %v366, 19
      %v386 = vpop.permute.xlu0 %385
      %387 = vrot.lane.b32.xlu0 %v370, 19
      %v388 = vpop.permute.xlu0 %387
      %389 = vrot.lane.b32.xlu0 %v374, 19
      %v390 = vpop.permute.xlu0 %389
      %391 = vrot.lane.b32.xlu0 %v378, 19
      %v392 = vpop.permute.xlu0 %391
      %393 = vrot.lane.b32.xlu0 %v382, 19
      %v394 = vpop.permute.xlu0 %393
      %vm395 = vcmask 154624
      %v396 = vsel %vm395, %v384, %v386
      %v397 = vsel %vm395, %v386, %v388
      %v398 = vsel %vm395, %v388, %v390
      %v399 = vsel %vm395, %v390, %v392
      %v400 = vsel %vm395, %v392, %v394
      %v407 = vsel %vm395, 0.0, %v384
      %408 = vrot.lane.b32.xlu0 %v362, 18
      %v409 = vpop.permute.xlu0 %408
      %410 = vrot.lane.b32.xlu0 %v366, 18
      %v411 = vpop.permute.xlu0 %410
      %412 = vrot.lane.b32.xlu0 %v370, 18
      %v413 = vpop.permute.xlu0 %412
      %414 = vrot.lane.b32.xlu0 %v374, 18
      %v415 = vpop.permute.xlu0 %414
      %416 = vrot.lane.b32.xlu0 %v378, 18
      %v417 = vpop.permute.xlu0 %416
      %418 = vrot.lane.b32.xlu0 %v382, 18
      %v419 = vpop.permute.xlu0 %418
      %vm420 = vcmask 146432
      %v421 = vsel %vm420, %v409, %v411
      %v422 = vsel %vm420, %v411, %v413
      %v423 = vsel %vm420, %v413, %v415
      %v424 = vsel %vm420, %v415, %v417
      %v425 = vsel %vm420, %v417, %v419
      %v427 = vsel %vm420, 0.0, %v409
      %428 = vrot.lane.b32.xlu0 %v362, 17
      %v429 = vpop.permute.xlu0 %428
      %430 = vrot.lane.b32.xlu0 %v366, 17
      %v431 = vpop.permute.xlu0 %430
      %432 = vrot.lane.b32.xlu0 %v370, 17
      %v433 = vpop.permute.xlu0 %432
      %434 = vrot.lane.b32.xlu0 %v374, 17
      %v435 = vpop.permute.xlu0 %434
      %436 = vrot.lane.b32.xlu0 %v378, 17
      %v437 = vpop.permute.xlu0 %436
      %438 = vrot.lane.b32.xlu0 %v382, 17
      %v439 = vpop.permute.xlu0 %438
      %vm440 = vcmask 138240
      %v441 = vsel %vm440, %v429, %v431
      %v442 = vsel %vm440, %v431, %v433
      %v443 = vsel %vm440, %v433, %v435
      %v444 = vsel %vm440, %v435, %v437
      %v445 = vsel %vm440, %v437, %v439
      %v447 = vsel %vm440, 0.0, %v429
      %448 = vrot.lane.b32.xlu0 %v362, 1
      %v449 = vpop.permute.xlu0 %448
      %450 = vrot.lane.b32.xlu0 %v366, 1
      %v451 = vpop.permute.xlu0 %450
      %452 = vrot.lane.b32.xlu0 %v370, 1
      %v453 = vpop.permute.xlu0 %452
      %454 = vrot.lane.b32.xlu0 %v374, 1
      %v455 = vpop.permute.xlu0 %454
      %456 = vrot.lane.b32.xlu0 %v378, 1
      %v457 = vpop.permute.xlu0 %456
      %458 = vrot.lane.b32.xlu0 %v382, 1
      %v459 = vpop.permute.xlu0 %458
      %vm460 = vcmask 7168
      %v461 = vsel %vm460, %v449, %v451
      %v462 = vsel %vm460, %v451, %v453
      %v463 = vsel %vm460, %v453, %v455
      %v464 = vsel %vm460, %v455, %v457
      %v465 = vsel %vm460, %v457, %v459
      %v467 = vsel %vm460, 0.0, %v449
      %468 = vrot.lane.b32.xlu0 %v362, 127
      %v469 = vpop.permute.xlu0 %468
      %470 = vrot.lane.b32.xlu0 %v366, 127
      %v471 = vpop.permute.xlu0 %470
      %472 = vrot.lane.b32.xlu0 %v370, 127
      %v473 = vpop.permute.xlu0 %472
      %474 = vrot.lane.b32.xlu0 %v374, 127
      %v475 = vpop.permute.xlu0 %474
      %476 = vrot.lane.b32.xlu0 %v378, 127
      %v477 = vpop.permute.xlu0 %476
      %478 = vrot.lane.b32.xlu0 %v382, 127
      %v479 = vpop.permute.xlu0 %478
      %vm480 = vcmask 1039360
      %v481 = vsel %vm480, %v469, %v471
      %v482 = vsel %vm480, %v471, %v473
      %v483 = vsel %vm480, %v473, %v475
      %v484 = vsel %vm480, %v475, %v477
      %v485 = vsel %vm480, %v477, %v479
      %v487 = vsel %vm480, %v479, 0.0
      %488 = vrot.lane.b32.xlu0 %v362, 111
      %v489 = vpop.permute.xlu0 %488
      %490 = vrot.lane.b32.xlu0 %v366, 111
      %v491 = vpop.permute.xlu0 %490
      %492 = vrot.lane.b32.xlu0 %v370, 111
      %v493 = vpop.permute.xlu0 %492
      %494 = vrot.lane.b32.xlu0 %v374, 111
      %v495 = vpop.permute.xlu0 %494
      %496 = vrot.lane.b32.xlu0 %v378, 111
      %v497 = vpop.permute.xlu0 %496
      %498 = vrot.lane.b32.xlu0 %v382, 111
      %v499 = vpop.permute.xlu0 %498
      %vm500 = vcmask 908288
      %v501 = vsel %vm500, %v489, %v491
      %v502 = vsel %vm500, %v491, %v493
      %v503 = vsel %vm500, %v493, %v495
      %v504 = vsel %vm500, %v495, %v497
      %v505 = vsel %vm500, %v497, %v499
      %v507 = vsel %vm500, %v499, 0.0
      %508 = vrot.lane.b32.xlu0 %v362, 110
      %v509 = vpop.permute.xlu0 %508
      %510 = vrot.lane.b32.xlu0 %v366, 110
      %v511 = vpop.permute.xlu0 %510
      %512 = vrot.lane.b32.xlu0 %v370, 110
      %v513 = vpop.permute.xlu0 %512
      %514 = vrot.lane.b32.xlu0 %v374, 110
      %v515 = vpop.permute.xlu0 %514
      %516 = vrot.lane.b32.xlu0 %v378, 110
      %v517 = vpop.permute.xlu0 %516
      %518 = vrot.lane.b32.xlu0 %v382, 110
      %v519 = vpop.permute.xlu0 %518
      %vm520 = vcmask 900096
      %v521 = vsel %vm520, %v509, %v511
      %v522 = vsel %vm520, %v511, %v513
      %v523 = vsel %vm520, %v513, %v515
      %v524 = vsel %vm520, %v515, %v517
      %v525 = vsel %vm520, %v517, %v519
      %v527 = vsel %vm520, %v519, 0.0
      %528 = vrot.lane.b32.xlu0 %v362, 109
      %v529 = vpop.permute.xlu0 %528
      %530 = vrot.lane.b32.xlu0 %v366, 109
      %v531 = vpop.permute.xlu0 %530
      %532 = vrot.lane.b32.xlu0 %v370, 109
      %v533 = vpop.permute.xlu0 %532
      %534 = vrot.lane.b32.xlu0 %v374, 109
      %v535 = vpop.permute.xlu0 %534
      %536 = vrot.lane.b32.xlu0 %v378, 109
      %v537 = vpop.permute.xlu0 %536
      %538 = vrot.lane.b32.xlu0 %v382, 109
      %v539 = vpop.permute.xlu0 %538
      %vm540 = vcmask 891904
      %v541 = vsel %vm540, %v529, %v531
      %v542 = vsel %vm540, %v531, %v533
      %v543 = vsel %vm540, %v533, %v535
      %v544 = vsel %vm540, %v535, %v537
      %v545 = vsel %vm540, %v537, %v539
      %v552 = vsel %vm540, %v539, 0.0
      %v554 = vrot.slane %v427, 7
      %v555 = vrot.slane %v421, 7
      %v556 = vrot.slane %v422, 7
      %v557 = vrot.slane %v423, 7
      %v558 = vrot.slane %v424, 7
      %v559 = vrot.slane %v425, 7
      %v567 = vrot.slane %v447, 6
      %v568 = vrot.slane %v441, 6
      %v569 = vrot.slane %v442, 6
      %v570 = vrot.slane %v443, 6
      %v571 = vrot.slane %v444, 6
      %v572 = vrot.slane %v445, 6
      %v580 = vrot.slane %v467, 5
      %v581 = vrot.slane %v461, 5
      %v582 = vrot.slane %v462, 5
      %v583 = vrot.slane %v463, 5
      %v584 = vrot.slane %v464, 5
      %v585 = vrot.slane %v465, 5
      %v599 = vrot.slane %v481, 3
      %v600 = vrot.slane %v482, 3
      %v601 = vrot.slane %v483, 3
      %v602 = vrot.slane %v484, 3
      %v603 = vrot.slane %v485, 3
      %v604 = vrot.slane %v487, 3
      %v612 = vrot.slane %v501, 2
      %v613 = vrot.slane %v502, 2
      %v614 = vrot.slane %v503, 2
      %v615 = vrot.slane %v504, 2
      %v616 = vrot.slane %v505, 2
      %v617 = vrot.slane %v507, 2
      %v625 = vrot.slane %v521, 1
      %v626 = vrot.slane %v522, 1
      %v627 = vrot.slane %v523, 1
      %v628 = vrot.slane %v524, 1
      %v629 = vrot.slane %v525, 1
      %v630 = vrot.slane %v527, 1
      %vm637 = vcmask 1040384
      %v638 = vsel %vm637, %v407, %v554
      %v639 = vsel %vm637, %v396, %v555
      %v640 = vsel %vm637, %v397, %v556
      %v641 = vsel %vm637, %v398, %v557
      %v642 = vsel %vm637, %v399, %v558
      %v643 = vsel %vm637, %v400, %v559
      %vm644 = vcmask 1041408
      %v645 = vsel %vm644, %v638, %v567
      %v646 = vsel %vm644, %v639, %v568
      %v647 = vsel %vm644, %v640, %v569
      %v648 = vsel %vm644, %v641, %v570
      %v649 = vsel %vm644, %v642, %v571
      %v650 = vsel %vm644, %v643, %v572
      %vm651 = vcmask 1042432
      %v652 = vsel %vm651, %v645, %v580
      %v653 = vsel %vm651, %v646, %v581
      %v654 = vsel %vm651, %v647, %v582
      %v655 = vsel %vm651, %v648, %v583
      %v656 = vsel %vm651, %v649, %v584
      %v657 = vsel %vm651, %v650, %v585
      %vm658 = vcmask 1043456
      %v659 = vsel %vm658, %v652, %v362
      %v660 = vsel %vm658, %v653, %v366
      %v661 = vsel %vm658, %v654, %v370
      %v662 = vsel %vm658, %v655, %v374
      %v663 = vsel %vm658, %v656, %v378
      %v664 = vsel %vm658, %v657, %v382
      %vm665 = vcmask 1044480
      %v666 = vsel %vm665, %v659, %v599
      %v667 = vsel %vm665, %v660, %v600
      %v668 = vsel %vm665, %v661, %v601
      %v669 = vsel %vm665, %v662, %v602
      %v670 = vsel %vm665, %v663, %v603
      %v671 = vsel %vm665, %v664, %v604
      %vm672 = vcmask 1045504
      %v673 = vsel %vm672, %v666, %v612
      %v674 = vsel %vm672, %v667, %v613
      %v675 = vsel %vm672, %v668, %v614
      %v676 = vsel %vm672, %v669, %v615
      %v677 = vsel %vm672, %v670, %v616
      %v678 = vsel %vm672, %v671, %v617
      %vm679 = vcmask 1046528
      %v680 = vsel %vm679, %v673, %v625
      %v681 = vsel %vm679, %v674, %v626
      %v682 = vsel %vm679, %v675, %v627
      %v683 = vsel %vm679, %v676, %v628
      %v684 = vsel %vm679, %v677, %v629
      %v685 = vsel %vm679, %v678, %v630
      %v686 = vsel %vm637, %v541, 0.0
      %v687 = vsel %vm637, %v542, 0.0
      %v688 = vsel %vm637, %v543, 0.0
      %v689 = vsel %vm637, %v544, 0.0
      %v690 = vsel %vm637, %v545, 0.0
      %v691 = vsel %vm637, %v552, 0.0
      %v692 = vld [vmem:[%s2] sm:$0xff]
      %v693 = vld [vmem:[%s2 + $0x8] sm:$0xff]
      %v694 = vld [vmem:[%s2 + $0x10] sm:$0xff]
      %v695 = vld [vmem:[%s2 + $0x18] sm:$0xff]
      %v696 = vld [vmem:[%s2 + $0x20] sm:$0xff]
      %v697 = vld [vmem:[%s2 + $0x28] sm:$0xff]
      %v698 = vld [vmem:[%s2 + $0x30] sm:$0xff]
      %v699 = vld [vmem:[%s2 + $0x38] sm:$0xff]
      %vm700 = vcmask 130048
      %v702 = vsel %vm700, %v692, 0
      %v705 = vsel %vm700, %v693, 0
      %v708 = vsel %vm700, %v694, 0
      %v711 = vsel %vm700, %v695, 0
      %v714 = vsel %vm700, %v696, 0
      %v717 = vsel %vm700, %v697, 0
      %v720 = vsel %vm700, %v698, 0
      %v723 = vsel %vm700, %v699, 0
      %725 = vmatprep.subr.mxu0 %v681
      %726 = vmatpush1.msra.mxu0 %v680
      %727 = vmatprep.subr.mxu0 %v687
      %728 = vmatpush1.msra.mxu0 %v686
      %729 = vmatprep.subr.mxu0 0.0
      %730 = vmatpush1.msra.mxu0 0.0
      %731 = vmatprep.subr.mxu0 0.0
      %732 = vmatpush1.msra.mxu0 0.0
      %733 = vmatprep.subr.mxu0 0.0
      %734 = vmatpush1.msra.mxu0 0.0
      %735 = vmatprep.subr.mxu0 0.0
      %736 = vmatpush1.msra.mxu0 0.0
      %737 = vmatprep.subr.mxu0 0.0
      %738 = vmatpush1.msra.mxu0 0.0
      %739 = vmatprep.subr.mxu0 0.0
      %740 = vmatpush1.msra.mxu0 0.0
      %741 = vmatprep.subr.mxu0 0.0
      %742 = vmatpush1.msra.mxu0 0.0
      %743 = vmatprep.subr.mxu0 0.0
      %744 = vmatpush1.msra.mxu0 0.0
      %745 = vmatprep.subr.mxu0 0.0
      %746 = vmatpush1.msra.mxu0 0.0
      %747 = vmatprep.subr.mxu0 0.0
      %748 = vmatpush1.msra.mxu0 0.0
      %749 = vmatprep.subr.mxu0 0.0
      %750 = vmatpush1.msra.mxu0 0.0
      %751 = vmatprep.subr.mxu0 0.0
      %752 = vmatpush1.msra.mxu0 0.0
      %753 = vmatprep.subr.mxu0 0.0
      %754 = vmatpush1.msra.mxu0 0.0
      %755 = vmatprep.subr.mxu0 0.0
      %756 = vmatpush1.msra.mxu0 0.0
      %757 = vmatprep.subr.mxu0 0.0
      %758 = vmatpush1.msra.mxu0 0.0
      %759 = vmatprep.subr.mxu0 0.0
      %760 = vmatpush1.msra.mxu0 0.0
      %761 = vmatprep.subr.mxu0 0.0
      %762 = vmatpush1.msra.mxu0 0.0
      %763 = vmatprep.subr.mxu0 0.0
      %764 = vmatpush1.msra.mxu0 0.0
      %765 = vmatprep.subr.mxu0 0.0
      %766 = vmatpush1.msra.mxu0 0.0
      %767 = vmatprep.subr.mxu0 0.0
      %768 = vmatpush1.msra.mxu0 0.0
      %769 = vmatprep.subr.mxu0 0.0
      %770 = vmatpush1.msra.mxu0 0.0
      %771 = vmatprep.subr.mxu0 0.0
      %772 = vmatpush1.msra.mxu0 0.0
      %773 = vmatprep.subr.mxu0 0.0
      %774 = vmatpush1.msra.mxu0 0.0
      %775 = vmatprep.subr.mxu0 0.0
      %776 = vmatpush1.msra.mxu0 0.0
      %777 = vmatprep.subr.mxu0 0.0
      %778 = vmatpush1.msra.mxu0 0.0
      %779 = vmatprep.subr.mxu0 0.0
      %780 = vmatpush1.msra.mxu0 0.0
      %781 = vmatprep.subr.mxu0 0.0
      %782 = vmatpush1.msra.mxu0 0.0
      %783 = vmatprep.subr.mxu0 0.0
      %784 = vmatpush1.msra.mxu0 0.0
      %785 = vmatprep.subr.mxu0 0.0
      %786 = vmatpush1.msra.mxu0 0.0
      %787 = vmatprep.subr.mxu0 0.0
      %788 = vmatpush1.msra.mxu0 0.0
      %789 = vmatprep.mubr.f32.mxu0 0.0
      %790 = vmatmul.mubr.f32.gmra.mrb[0].mxu0 %v702
      %v791 = vpop.f32.mrb[0].mxu0
      %v792 = vadd.f32 0.0, %v791
      %v793 = vpop.f32.mrb[0].mxu0
      %v794 = vadd.f32 0.0, %v793
      %795 = vmatprep.mubr.f32.mxu0 0.0
      %796 = vmatmul.mubr.f32.gmra.mrb[0].mxu0 %v705
      %v797 = vpop.f32.mrb[0].mxu0
      %v798 = vadd.f32 0.0, %v797
      %v799 = vpop.f32.mrb[0].mxu0
      %v800 = vadd.f32 0.0, %v799
      %801 = vmatprep.mubr.f32.mxu0 0.0
      %802 = vmatmul.mubr.f32.gmra.mrb[0].mxu0 %v708
      %v803 = vpop.f32.mrb[0].mxu0
      %v804 = vadd.f32 0.0, %v803
      %v805 = vpop.f32.mrb[0].mxu0
      %v806 = vadd.f32 0.0, %v805
      %807 = vmatprep.mubr.f32.mxu0 0.0
      %808 = vmatmul.mubr.f32.gmra.mrb[0].mxu0 %v711
      %v809 = vpop.f32.mrb[0].mxu0
      %v810 = vadd.f32 0.0, %v809
      %v811 = vpop.f32.mrb[0].mxu0
      %v812 = vadd.f32 0.0, %v811
      %813 = vmatprep.mubr.f32.mxu0 0.0
      %814 = vmatmul.mubr.f32.gmra.mrb[0].mxu0 %v714
      %v815 = vpop.f32.mrb[0].mxu0
      %v816 = vadd.f32 0.0, %v815
      %v817 = vpop.f32.mrb[0].mxu0
      %v818 = vadd.f32 0.0, %v817
      %819 = vmatprep.mubr.f32.mxu0 0.0
      %820 = vmatmul.mubr.f32.gmra.mrb[0].mxu0 %v717
      %v821 = vpop.f32.mrb[0].mxu0
      %v822 = vadd.f32 0.0, %v821
      %v823 = vpop.f32.mrb[0].mxu0
      %v824 = vadd.f32 0.0, %v823
      %825 = vmatprep.mubr.f32.mxu0 0.0
      %826 = vmatmul.mubr.f32.gmra.mrb[0].mxu0 %v720
      %v827 = vpop.f32.mrb[0].mxu0
      %v828 = vadd.f32 0.0, %v827
      %v829 = vpop.f32.mrb[0].mxu0
      %v830 = vadd.f32 0.0, %v829
      %831 = vmatprep.mubr.f32.mxu0 0.0
      %832 = vmatmul.mubr.f32.gmra.mrb[0].mxu0 %v723
      %v833 = vpop.f32.mrb[0].mxu0
      %v834 = vadd.f32 0.0, %v833
      %v835 = vpop.f32.mrb[0].mxu0
      %v836 = vadd.f32 0.0, %v835
      %837 = vdwg.mxu0
      %838 = vmatprep.subr.mxu0 %v683
      %839 = vmatpush1.msra.mxu0 %v682
      %840 = vmatprep.subr.mxu0 %v689
      %841 = vmatpush1.msra.mxu0 %v688
      %842 = vmatprep.subr.mxu0 0.0
      %843 = vmatpush1.msra.mxu0 0.0
      %844 = vmatprep.subr.mxu0 0.0
      %845 = vmatpush1.msra.mxu0 0.0
      %846 = vmatprep.subr.mxu0 0.0
      %847 = vmatpush1.msra.mxu0 0.0
      %848 = vmatprep.subr.mxu0 0.0
      %849 = vmatpush1.msra.mxu0 0.0
      %850 = vmatprep.subr.mxu0 0.0
      %851 = vmatpush1.msra.mxu0 0.0
      %852 = vmatprep.subr.mxu0 0.0
      %853 = vmatpush1.msra.mxu0 0.0
      %854 = vmatprep.subr.mxu0 0.0
      %855 = vmatpush1.msra.mxu0 0.0
      %856 = vmatprep.subr.mxu0 0.0
      %857 = vmatpush1.msra.mxu0 0.0
      %858 = vmatprep.subr.mxu0 0.0
      %859 = vmatpush1.msra.mxu0 0.0
      %860 = vmatprep.subr.mxu0 0.0
      %861 = vmatpush1.msra.mxu0 0.0
      %862 = vmatprep.subr.mxu0 0.0
      %863 = vmatpush1.msra.mxu0 0.0
      %864 = vmatprep.subr.mxu0 0.0
      %865 = vmatpush1.msra.mxu0 0.0
      %866 = vmatprep.subr.mxu0 0.0
      %867 = vmatpush1.msra.mxu0 0.0
      %868 = vmatprep.subr.mxu0 0.0
      %869 = vmatpush1.msra.mxu0 0.0
      %870 = vmatprep.subr.mxu0 0.0
      %871 = vmatpush1.msra.mxu0 0.0
      %872 = vmatprep.subr.mxu0 0.0
      %873 = vmatpush1.msra.mxu0 0.0
      %874 = vmatprep.subr.mxu0 0.0
      %875 = vmatpush1.msra.mxu0 0.0
      %876 = vmatprep.subr.mxu0 0.0
      %877 = vmatpush1.msra.mxu0 0.0
      %878 = vmatprep.subr.mxu0 0.0
      %879 = vmatpush1.msra.mxu0 0.0
      %880 = vmatprep.subr.mxu0 0.0
      %881 = vmatpush1.msra.mxu0 0.0
      %882 = vmatprep.subr.mxu0 0.0
      %883 = vmatpush1.msra.mxu0 0.0
      %884 = vmatprep.subr.mxu0 0.0
      %885 = vmatpush1.msra.mxu0 0.0
      %886 = vmatprep.subr.mxu0 0.0
      %887 = vmatpush1.msra.mxu0 0.0
      %888 = vmatprep.subr.mxu0 0.0
      %889 = vmatpush1.msra.mxu0 0.0
      %890 = vmatprep.subr.mxu0 0.0
      %891 = vmatpush1.msra.mxu0 0.0
      %892 = vmatprep.subr.mxu0 0.0
      %893 = vmatpush1.msra.mxu0 0.0
      %894 = vmatprep.subr.mxu0 0.0
      %895 = vmatpush1.msra.mxu0 0.0
      %896 = vmatprep.subr.mxu0 0.0
      %897 = vmatpush1.msra.mxu0 0.0
      %898 = vmatprep.subr.mxu0 0.0
      %899 = vmatpush1.msra.mxu0 0.0
      %900 = vmatprep.subr.mxu0 0.0
      %901 = vmatpush1.msra.mxu0 0.0
      %902 = vmatprep.mubr.f32.mxu0 0.0
      %903 = vmatmul.mubr.f32.gmra.mrb[0].mxu0 %v702
      %v904 = vpop.f32.mrb[0].mxu0
      %v905 = vadd.f32 0.0, %v904
      %v906 = vpop.f32.mrb[0].mxu0
      %v907 = vadd.f32 0.0, %v906
      %908 = vmatprep.mubr.f32.mxu0 0.0
      %909 = vmatmul.mubr.f32.gmra.mrb[0].mxu0 %v705
      %v910 = vpop.f32.mrb[0].mxu0
      %v911 = vadd.f32 0.0, %v910
      %v912 = vpop.f32.mrb[0].mxu0
      %v913 = vadd.f32 0.0, %v912
      %914 = vmatprep.mubr.f32.mxu0 0.0
      %915 = vmatmul.mubr.f32.gmra.mrb[0].mxu0 %v708
      %v916 = vpop.f32.mrb[0].mxu0
      %v917 = vadd.f32 0.0, %v916
      %v918 = vpop.f32.mrb[0].mxu0
      %v919 = vadd.f32 0.0, %v918
      %920 = vmatprep.mubr.f32.mxu0 0.0
      %921 = vmatmul.mubr.f32.gmra.mrb[0].mxu0 %v711
      %v922 = vpop.f32.mrb[0].mxu0
      %v923 = vadd.f32 0.0, %v922
      %v924 = vpop.f32.mrb[0].mxu0
      %v925 = vadd.f32 0.0, %v924
      %926 = vmatprep.mubr.f32.mxu0 0.0
      %927 = vmatmul.mubr.f32.gmra.mrb[0].mxu0 %v714
      %v928 = vpop.f32.mrb[0].mxu0
      %v929 = vadd.f32 0.0, %v928
      %v930 = vpop.f32.mrb[0].mxu0
      %v931 = vadd.f32 0.0, %v930
      %932 = vmatprep.mubr.f32.mxu0 0.0
      %933 = vmatmul.mubr.f32.gmra.mrb[0].mxu0 %v717
      %v934 = vpop.f32.mrb[0].mxu0
      %v935 = vadd.f32 0.0, %v934
      %v936 = vpop.f32.mrb[0].mxu0
      %v937 = vadd.f32 0.0, %v936
      %938 = vmatprep.mubr.f32.mxu0 0.0
      %939 = vmatmul.mubr.f32.gmra.mrb[0].mxu0 %v720
      %v940 = vpop.f32.mrb[0].mxu0
      %v941 = vadd.f32 0.0, %v940
      %v942 = vpop.f32.mrb[0].mxu0
      %v943 = vadd.f32 0.0, %v942
      %944 = vmatprep.mubr.f32.mxu0 0.0
      %945 = vmatmul.mubr.f32.gmra.mrb[0].mxu0 %v723
      %v946 = vpop.f32.mrb[0].mxu0
      %v947 = vadd.f32 0.0, %v946
      %v948 = vpop.f32.mrb[0].mxu0
      %v949 = vadd.f32 0.0, %v948
      %950 = vdwg.mxu0
      %951 = vmatprep.subr.mxu0 %v685
      %952 = vmatpush1.msra.mxu0 %v684
      %953 = vmatprep.subr.mxu0 %v691
      %954 = vmatpush1.msra.mxu0 %v690
      %955 = vmatprep.subr.mxu0 0.0
      %956 = vmatpush1.msra.mxu0 0.0
      %957 = vmatprep.subr.mxu0 0.0
      %958 = vmatpush1.msra.mxu0 0.0
      %959 = vmatprep.subr.mxu0 0.0
      %960 = vmatpush1.msra.mxu0 0.0
      %961 = vmatprep.subr.mxu0 0.0
      %962 = vmatpush1.msra.mxu0 0.0
      %963 = vmatprep.subr.mxu0 0.0
      %964 = vmatpush1.msra.mxu0 0.0
      %965 = vmatprep.subr.mxu0 0.0
      %966 = vmatpush1.msra.mxu0 0.0
      %967 = vmatprep.subr.mxu0 0.0
      %968 = vmatpush1.msra.mxu0 0.0
      %969 = vmatprep.subr.mxu0 0.0
      %970 = vmatpush1.msra.mxu0 0.0
      %971 = vmatprep.subr.mxu0 0.0
      %972 = vmatpush1.msra.mxu0 0.0
      %973 = vmatprep.subr.mxu0 0.0
      %974 = vmatpush1.msra.mxu0 0.0
      %975 = vmatprep.subr.mxu0 0.0
      %976 = vmatpush1.msra.mxu0 0.0
      %977 = vmatprep.subr.mxu0 0.0
      %978 = vmatpush1.msra.mxu0 0.0
      %979 = vmatprep.subr.mxu0 0.0
      %980 = vmatpush1.msra.mxu0 0.0
      %981 = vmatprep.subr.mxu0 0.0
      %982 = vmatpush1.msra.mxu0 0.0
      %983 = vmatprep.subr.mxu0 0.0
      %984 = vmatpush1.msra.mxu0 0.0
      %985 = vmatprep.subr.mxu0 0.0
      %986 = vmatpush1.msra.mxu0 0.0
      %987 = vmatprep.subr.mxu0 0.0
      %988 = vmatpush1.msra.mxu0 0.0
      %989 = vmatprep.subr.mxu0 0.0
      %990 = vmatpush1.msra.mxu0 0.0
      %991 = vmatprep.subr.mxu0 0.0
      %992 = vmatpush1.msra.mxu0 0.0
      %993 = vmatprep.subr.mxu0 0.0
      %994 = vmatpush1.msra.mxu0 0.0
      %995 = vmatprep.subr.mxu0 0.0
      %996 = vmatpush1.msra.mxu0 0.0
      %997 = vmatprep.subr.mxu0 0.0
      %998 = vmatpush1.msra.mxu0 0.0
      %999 = vmatprep.subr.mxu0 0.0
      %1000 = vmatpush1.msra.mxu0 0.0
      %1001 = vmatprep.subr.mxu0 0.0
      %1002 = vmatpush1.msra.mxu0 0.0
      %1003 = vmatprep.subr.mxu0 0.0
      %1004 = vmatpush1.msra.mxu0 0.0
      %1005 = vmatprep.subr.mxu0 0.0
      %1006 = vmatpush1.msra.mxu0 0.0
      %1007 = vmatprep.subr.mxu0 0.0
      %1008 = vmatpush1.msra.mxu0 0.0
      %1009 = vmatprep.subr.mxu0 0.0
      %1010 = vmatpush1.msra.mxu0 0.0
      %1011 = vmatprep.subr.mxu0 0.0
      %1012 = vmatpush1.msra.mxu0 0.0
      %1013 = vmatprep.subr.mxu0 0.0
      %1014 = vmatpush1.msra.mxu0 0.0
      %1015 = vmatprep.mubr.f32.mxu0 0.0
      %1016 = vmatmul.mubr.f32.gmra.mrb[0].mxu0 %v702
      %v1017 = vpop.f32.mrb[0].mxu0
      %v1018 = vadd.f32 0.0, %v1017
      %v1019 = vpop.f32.mrb[0].mxu0
      %v1020 = vadd.f32 0.0, %v1019
      %1021 = vmatprep.mubr.f32.mxu0 0.0
      %1022 = vmatmul.mubr.f32.gmra.mrb[0].mxu0 %v705
      %v1023 = vpop.f32.mrb[0].mxu0
      %v1024 = vadd.f32 0.0, %v1023
      %v1025 = vpop.f32.mrb[0].mxu0
      %v1026 = vadd.f32 0.0, %v1025
      %1027 = vmatprep.mubr.f32.mxu0 0.0
      %1028 = vmatmul.mubr.f32.gmra.mrb[0].mxu0 %v708
      %v1029 = vpop.f32.mrb[0].mxu0
      %v1030 = vadd.f32 0.0, %v1029
      %v1031 = vpop.f32.mrb[0].mxu0
      %v1032 = vadd.f32 0.0, %v1031
      %1033 = vmatprep.mubr.f32.mxu0 0.0
      %1034 = vmatmul.mubr.f32.gmra.mrb[0].mxu0 %v711
      %v1035 = vpop.f32.mrb[0].mxu0
      %v1036 = vadd.f32 0.0, %v1035
      %v1037 = vpop.f32.mrb[0].mxu0
      %v1038 = vadd.f32 0.0, %v1037
      %1039 = vmatprep.mubr.f32.mxu0 0.0
      %1040 = vmatmul.mubr.f32.gmra.mrb[0].mxu0 %v714
      %v1041 = vpop.f32.mrb[0].mxu0
      %v1042 = vadd.f32 0.0, %v1041
      %v1043 = vpop.f32.mrb[0].mxu0
      %v1044 = vadd.f32 0.0, %v1043
      %1045 = vmatprep.mubr.f32.mxu0 0.0
      %1046 = vmatmul.mubr.f32.gmra.mrb[0].mxu0 %v717
      %v1047 = vpop.f32.mrb[0].mxu0
      %v1048 = vadd.f32 0.0, %v1047
      %v1049 = vpop.f32.mrb[0].mxu0
      %v1050 = vadd.f32 0.0, %v1049
      %1051 = vmatprep.mubr.f32.mxu0 0.0
      %1052 = vmatmul.mubr.f32.gmra.mrb[0].mxu0 %v720
      %v1053 = vpop.f32.mrb[0].mxu0
      %v1054 = vadd.f32 0.0, %v1053
      %v1055 = vpop.f32.mrb[0].mxu0
      %v1056 = vadd.f32 0.0, %v1055
      %1057 = vmatprep.mubr.f32.mxu0 0.0
      %1058 = vmatmul.mubr.f32.gmra.mrb[0].mxu0 %v723
      %v1059 = vpop.f32.mrb[0].mxu0
      %v1060 = vadd.f32 0.0, %v1059
      %v1061 = vpop.f32.mrb[0].mxu0
      %v1062 = vadd.f32 0.0, %v1061
      %1063 = vdwg.mxu0
      %v1064 = vmax.f32 %v792, 0.0
      %v1065 = vmax.f32 %v794, 0.0
      %v1066 = vmax.f32 %v905, 0.0
      %v1067 = vmax.f32 %v907, 0.0
      %v1068 = vmax.f32 %v1018, 0.0
      %v1069 = vmax.f32 %v1020, 0.0
      %v1070 = vmax.f32 %v798, 0.0
      %v1071 = vmax.f32 %v800, 0.0
      %v1072 = vmax.f32 %v911, 0.0
      %v1073 = vmax.f32 %v913, 0.0
      %v1074 = vmax.f32 %v1024, 0.0
      %v1075 = vmax.f32 %v1026, 0.0
      %v1076 = vmax.f32 %v804, 0.0
      %v1077 = vmax.f32 %v806, 0.0
      %v1078 = vmax.f32 %v917, 0.0
      %v1079 = vmax.f32 %v919, 0.0
      %v1080 = vmax.f32 %v1030, 0.0
      %v1081 = vmax.f32 %v1032, 0.0
      %v1082 = vmax.f32 %v810, 0.0
      %v1083 = vmax.f32 %v812, 0.0
      %v1084 = vmax.f32 %v923, 0.0
      %v1085 = vmax.f32 %v925, 0.0
      %v1086 = vmax.f32 %v1036, 0.0
      %v1087 = vmax.f32 %v1038, 0.0
      %v1088 = vmax.f32 %v816, 0.0
      %v1089 = vmax.f32 %v818, 0.0
      %v1090 = vmax.f32 %v929, 0.0
      %v1091 = vmax.f32 %v931, 0.0
      %v1092 = vmax.f32 %v1042, 0.0
      %v1093 = vmax.f32 %v1044, 0.0
      %v1094 = vmax.f32 %v822, 0.0
      %v1095 = vmax.f32 %v824, 0.0
      %v1096 = vmax.f32 %v935, 0.0
      %v1097 = vmax.f32 %v937, 0.0
      %v1098 = vmax.f32 %v1048, 0.0
      %v1099 = vmax.f32 %v1050, 0.0
      %v1100 = vmax.f32 %v828, 0.0
      %v1101 = vmax.f32 %v830, 0.0
      %v1102 = vmax.f32 %v941, 0.0
      %v1103 = vmax.f32 %v943, 0.0
      %v1104 = vmax.f32 %v1054, 0.0
      %v1105 = vmax.f32 %v1056, 0.0
      %v1106 = vmax.f32 %v834, 0.0
      %v1107 = vmax.f32 %v836, 0.0
      %v1108 = vmax.f32 %v947, 0.0
      %v1109 = vmax.f32 %v949, 0.0
      %v1110 = vmax.f32 %v1060, 0.0
      %v1111 = vmax.f32 %v1062, 0.0
      %v1113 = vlaneseq
      %v1114 = vshrl.u32 %v1113, 7
      %v1115 = vsub.s32 0, %v1114
      %v1116 = vrot.slane %v356, %v1115
      %v1117 = vlaneseq
      %v1118 = vshrl.u32 %v1117, 7
      %v1119 = vsub.s32 1, %v1118
      %v1120 = vrot.slane %v356, %v1119
      %v1121 = vlaneseq
      %v1122 = vshrl.u32 %v1121, 7
      %v1123 = vsub.s32 2, %v1122
      %v1124 = vrot.slane %v356, %v1123
      %v1125 = vlaneseq
      %v1126 = vshrl.u32 %v1125, 7
      %v1127 = vsub.s32 3, %v1126
      %v1128 = vrot.slane %v356, %v1127
      %v1129 = vlaneseq
      %v1130 = vshrl.u32 %v1129, 7
      %v1131 = vsub.s32 4, %v1130
      %v1132 = vrot.slane %v356, %v1131
      %v1133 = vlaneseq
      %v1134 = vshrl.u32 %v1133, 7
      %v1135 = vsub.s32 5, %v1134
      %v1136 = vrot.slane %v356, %v1135
      %v1143 = vmul.f32 %v1064, %v1116
      %v1144 = vmul.f32 %v1065, %v1120
      %v1145 = vmul.f32 %v1066, %v1124
      %v1146 = vmul.f32 %v1067, %v1128
      %v1147 = vmul.f32 %v1068, %v1132
      %v1148 = vmul.f32 %v1069, %v1136
      %v1149 = vmul.f32 %v1070, %v1116
      %v1150 = vmul.f32 %v1071, %v1120
      %v1151 = vmul.f32 %v1072, %v1124
      %v1152 = vmul.f32 %v1073, %v1128
      %v1153 = vmul.f32 %v1074, %v1132
      %v1154 = vmul.f32 %v1075, %v1136
      %v1155 = vmul.f32 %v1076, %v1116
      %v1156 = vmul.f32 %v1077, %v1120
      %v1157 = vmul.f32 %v1078, %v1124
      %v1158 = vmul.f32 %v1079, %v1128
      %v1159 = vmul.f32 %v1080, %v1132
      %v1160 = vmul.f32 %v1081, %v1136
      %v1161 = vmul.f32 %v1082, %v1116
      %v1162 = vmul.f32 %v1083, %v1120
      %v1163 = vmul.f32 %v1084, %v1124
      %v1164 = vmul.f32 %v1085, %v1128
      %v1165 = vmul.f32 %v1086, %v1132
      %v1166 = vmul.f32 %v1087, %v1136
      %v1167 = vmul.f32 %v1088, %v1116
      %v1168 = vmul.f32 %v1089, %v1120
      %v1169 = vmul.f32 %v1090, %v1124
      %v1170 = vmul.f32 %v1091, %v1128
      %v1171 = vmul.f32 %v1092, %v1132
      %v1172 = vmul.f32 %v1093, %v1136
      %v1173 = vmul.f32 %v1094, %v1116
      %v1174 = vmul.f32 %v1095, %v1120
      %v1175 = vmul.f32 %v1096, %v1124
      %v1176 = vmul.f32 %v1097, %v1128
      %v1177 = vmul.f32 %v1098, %v1132
      %v1178 = vmul.f32 %v1099, %v1136
      %v1179 = vmul.f32 %v1100, %v1116
      %v1180 = vmul.f32 %v1101, %v1120
      %v1181 = vmul.f32 %v1102, %v1124
      %v1182 = vmul.f32 %v1103, %v1128
      %v1183 = vmul.f32 %v1104, %v1132
      %v1184 = vmul.f32 %v1105, %v1136
      %v1185 = vmul.f32 %v1106, %v1116
      %v1186 = vmul.f32 %v1107, %v1120
      %v1187 = vmul.f32 %v1108, %v1124
      %v1188 = vmul.f32 %v1109, %v1128
      %v1189 = vmul.f32 %v1110, %v1132
      %v1190 = vmul.f32 %v1111, %v1136
      %v1191 = vpack.c.bf16 %v1149, %v1143
      %v1192 = vpack.c.bf16 %v1150, %v1144
      %v1193 = vpack.c.bf16 %v1151, %v1145
      %v1194 = vpack.c.bf16 %v1152, %v1146
      %v1195 = vpack.c.bf16 %v1153, %v1147
      %v1196 = vpack.c.bf16 %v1154, %v1148
      %v1197 = vpack.c.bf16 %v1161, %v1155
      %v1198 = vpack.c.bf16 %v1162, %v1156
      %v1199 = vpack.c.bf16 %v1163, %v1157
      %v1200 = vpack.c.bf16 %v1164, %v1158
      %v1201 = vpack.c.bf16 %v1165, %v1159
      %v1202 = vpack.c.bf16 %v1166, %v1160
      %v1203 = vpack.c.bf16 %v1173, %v1167
      %v1204 = vpack.c.bf16 %v1174, %v1168
      %v1205 = vpack.c.bf16 %v1175, %v1169
      %v1206 = vpack.c.bf16 %v1176, %v1170
      %v1207 = vpack.c.bf16 %v1177, %v1171
      %v1208 = vpack.c.bf16 %v1178, %v1172
      %v1209 = vpack.c.bf16 %v1185, %v1179
      %v1210 = vpack.c.bf16 %v1186, %v1180
      %v1211 = vpack.c.bf16 %v1187, %v1181
      %v1212 = vpack.c.bf16 %v1188, %v1182
      %v1213 = vpack.c.bf16 %v1189, %v1183
      %v1214 = vpack.c.bf16 %v1190, %v1184
      %1215 = vst [vmem:[#allocation2] sm:$0xff] %v1191
      %1216 = vst [vmem:[#allocation2 + $0x8] sm:$0xff] %v1192
      %1217 = vst [vmem:[#allocation2 + $0x10] sm:$0xff] %v1193
      %1218 = vst [vmem:[#allocation2 + $0x18] sm:$0xff] %v1194
      %1219 = vst [vmem:[#allocation2 + $0x20] sm:$0xff] %v1195
      %1220 = vst [vmem:[#allocation2 + $0x28] sm:$0xff] %v1196
      %1221 = vst [vmem:[#allocation2 + $0x30] sm:$0xff] %v1197
      %1222 = vst [vmem:[#allocation2 + $0x38] sm:$0xff] %v1198
      %1223 = vst [vmem:[#allocation2 + $0x40] sm:$0xff] %v1199
      %1224 = vst [vmem:[#allocation2 + $0x48] sm:$0xff] %v1200
      %1225 = vst [vmem:[#allocation2 + $0x50] sm:$0xff] %v1201
      %1226 = vst [vmem:[#allocation2 + $0x58] sm:$0xff] %v1202
      %1227 = vst [vmem:[#allocation2 + $0x60] sm:$0xff] %v1203
      %1228 = vst [vmem:[#allocation2 + $0x68] sm:$0xff] %v1204
      %1229 = vst [vmem:[#allocation2 + $0x70] sm:$0xff] %v1205
      %1230 = vst [vmem:[#allocation2 + $0x78] sm:$0xff] %v1206
      %1231 = vst [vmem:[#allocation2 + $0x80] sm:$0xff] %v1207
      %1232 = vst [vmem:[#allocation2 + $0x88] sm:$0xff] %v1208
      %1233 = vst [vmem:[#allocation2 + $0x90] sm:$0xff] %v1209
      %1234 = vst [vmem:[#allocation2 + $0x98] sm:$0xff] %v1210
      %1235 = vst [vmem:[#allocation2 + $0xa0] sm:$0xff] %v1211
      %1236 = vst [vmem:[#allocation2 + $0xa8] sm:$0xff] %v1212
      %1237 = vst [vmem:[#allocation2 + $0xb0] sm:$0xff] %v1213
      %1238 = vst [vmem:[#allocation2 + $0xb8] sm:$0xff] %v1214
      loop: start=0, step=1, limit=3
      $region61: #{dncnn_forward.1} parent=59 // loop_pre_header
        _
      $region62: #{dncnn_forward.1} parent=59 // loop_header
        %s1240 = sphi 0, %s1244
        %p1241 = scmp.ge.s32.totalorder %s1240, 3
      $region63: #{dncnn_forward.1} parent=59 // loop_header_branch
        %1243 = sbr.rel (%p1241) target = $region67
      $region64: #{dncnn_forward.1} parent=59 // loop_body
        %s1245 = smul.u32 %s1240, 2
        %v1246 = vld [vmem:[#allocation2] sm:$0xff]
        %v1247 = vld [vmem:[#allocation2 + $0x8] sm:$0xff]
        %v1248 = vld [vmem:[#allocation2 + $0x10] sm:$0xff]
        %v1249 = vld [vmem:[#allocation2 + $0x18] sm:$0xff]
        %v1250 = vld [vmem:[#allocation2 + $0x20] sm:$0xff]
        %v1251 = vld [vmem:[#allocation2 + $0x28] sm:$0xff]
        %v1252 = vld [vmem:[#allocation2 + $0x30] sm:$0xff]
        %v1253 = vld [vmem:[#allocation2 + $0x38] sm:$0xff]
        %v1254 = vld [vmem:[#allocation2 + $0x40] sm:$0xff]
        %v1255 = vld [vmem:[#allocation2 + $0x48] sm:$0xff]
        %v1256 = vld [vmem:[#allocation2 + $0x50] sm:$0xff]
        %v1257 = vld [vmem:[#allocation2 + $0x58] sm:$0xff]
        %v1258 = vld [vmem:[#allocation2 + $0x60] sm:$0xff]
        %v1259 = vld [vmem:[#allocation2 + $0x68] sm:$0xff]
        %v1260 = vld [vmem:[#allocation2 + $0x70] sm:$0xff]
        %v1261 = vld [vmem:[#allocation2 + $0x78] sm:$0xff]
        %v1262 = vld [vmem:[#allocation2 + $0x80] sm:$0xff]
        %v1263 = vld [vmem:[#allocation2 + $0x88] sm:$0xff]
        %v1264 = vld [vmem:[#allocation2 + $0x90] sm:$0xff]
        %v1265 = vld [vmem:[#allocation2 + $0x98] sm:$0xff]
        %v1266 = vld [vmem:[#allocation2 + $0xa0] sm:$0xff]
        %v1267 = vld [vmem:[#allocation2 + $0xa8] sm:$0xff]
        %v1268 = vld [vmem:[#allocation2 + $0xb0] sm:$0xff]
        %v1269 = vld [vmem:[#allocation2 + $0xb8] sm:$0xff]
        %1294 = vrot.lane.b32.xlu0 %v1246, 19
        %v1295 = vpop.permute.xlu0 %1294
        %1296 = vrot.lane.b32.xlu0 %v1247, 19
        %v1297 = vpop.permute.xlu0 %1296
        %1298 = vrot.lane.b32.xlu0 %v1248, 19
        %v1299 = vpop.permute.xlu0 %1298
        %1300 = vrot.lane.b32.xlu0 %v1249, 19
        %v1301 = vpop.permute.xlu0 %1300
        %1302 = vrot.lane.b32.xlu0 %v1250, 19
        %v1303 = vpop.permute.xlu0 %1302
        %1304 = vrot.lane.b32.xlu0 %v1251, 19
        %v1305 = vpop.permute.xlu0 %1304
        %1306 = vrot.lane.b32.xlu0 %v1252, 19
        %v1307 = vpop.permute.xlu0 %1306
        %1308 = vrot.lane.b32.xlu0 %v1253, 19
        %v1309 = vpop.permute.xlu0 %1308
        %1310 = vrot.lane.b32.xlu0 %v1254, 19
        %v1311 = vpop.permute.xlu0 %1310
        %1312 = vrot.lane.b32.xlu0 %v1255, 19
        %v1313 = vpop.permute.xlu0 %1312
        %1314 = vrot.lane.b32.xlu0 %v1256, 19
        %v1315 = vpop.permute.xlu0 %1314
        %1316 = vrot.lane.b32.xlu0 %v1257, 19
        %v1317 = vpop.permute.xlu0 %1316
        %1318 = vrot.lane.b32.xlu0 %v1258, 19
        %v1319 = vpop.permute.xlu0 %1318
        %1320 = vrot.lane.b32.xlu0 %v1259, 19
        %v1321 = vpop.permute.xlu0 %1320
        %1322 = vrot.lane.b32.xlu0 %v1260, 19
        %v1323 = vpop.permute.xlu0 %1322
        %1324 = vrot.lane.b32.xlu0 %v1261, 19
        %v1325 = vpop.permute.xlu0 %1324
        %1326 = vrot.lane.b32.xlu0 %v1262, 19
        %v1327 = vpop.permute.xlu0 %1326
        %1328 = vrot.lane.b32.xlu0 %v1263, 19
        %v1329 = vpop.permute.xlu0 %1328
        %1330 = vrot.lane.b32.xlu0 %v1264, 19
        %v1331 = vpop.permute.xlu0 %1330
        %1332 = vrot.lane.b32.xlu0 %v1265, 19
        %v1333 = vpop.permute.xlu0 %1332
        %1334 = vrot.lane.b32.xlu0 %v1266, 19
        %v1335 = vpop.permute.xlu0 %1334
        %1336 = vrot.lane.b32.xlu0 %v1267, 19
        %v1337 = vpop.permute.xlu0 %1336
        %1338 = vrot.lane.b32.xlu0 %v1268, 19
        %v1339 = vpop.permute.xlu0 %1338
        %1340 = vrot.lane.b32.xlu0 %v1269, 19
        %v1341 = vpop.permute.xlu0 %1340
        %vm1342 = vcmask 154624
        %v1343 = vsel %vm1342, %v1295, %v1297
        %v1344 = vsel %vm1342, %v1297, %v1299
        %v1345 = vsel %vm1342, %v1299, %v1301
        %v1346 = vsel %vm1342, %v1301, %v1303
        %v1347 = vsel %vm1342, %v1303, %v1305
        %v1348 = vsel %vm1342, %v1307, %v1309
        %v1349 = vsel %vm1342, %v1309, %v1311
        %v1350 = vsel %vm1342, %v1311, %v1313
        %v1351 = vsel %vm1342, %v1313, %v1315
        %v1352 = vsel %vm1342, %v1315, %v1317
        %v1353 = vsel %vm1342, %v1319, %v1321
        %v1354 = vsel %vm1342, %v1321, %v1323
        %v1355 = vsel %vm1342, %v1323, %v1325
        %v1356 = vsel %vm1342, %v1325, %v1327
        %v1357 = vsel %vm1342, %v1327, %v1329
        %v1358 = vsel %vm1342, %v1331, %v1333
        %v1359 = vsel %vm1342, %v1333, %v1335
        %v1360 = vsel %vm1342, %v1335, %v1337
        %v1361 = vsel %vm1342, %v1337, %v1339
        %v1362 = vsel %vm1342, %v1339, %v1341
        %v1385 = vsel %vm395, 0, %v1295
        %v1388 = vsel %vm395, 0, %v1307
        %v1391 = vsel %vm395, 0, %v1319
        %v1394 = vsel %vm395, 0, %v1331
        %1396 = vrot.lane.b32.xlu0 %v1246, 18
        %v1397 = vpop.permute.xlu0 %1396
        %1398 = vrot.lane.b32.xlu0 %v1247, 18
        %v1399 = vpop.permute.xlu0 %1398
        %1400 = vrot.lane.b32.xlu0 %v1248, 18
        %v1401 = vpop.permute.xlu0 %1400
        %1402 = vrot.lane.b32.xlu0 %v1249, 18
        %v1403 = vpop.permute.xlu0 %1402
        %1404 = vrot.lane.b32.xlu0 %v1250, 18
        %v1405 = vpop.permute.xlu0 %1404
        %1406 = vrot.lane.b32.xlu0 %v1251, 18
        %v1407 = vpop.permute.xlu0 %1406
        %1408 = vrot.lane.b32.xlu0 %v1252, 18
        %v1409 = vpop.permute.xlu0 %1408
        %1410 = vrot.lane.b32.xlu0 %v1253, 18
        %v1411 = vpop.permute.xlu0 %1410
        %1412 = vrot.lane.b32.xlu0 %v1254, 18
        %v1413 = vpop.permute.xlu0 %1412
        %1414 = vrot.lane.b32.xlu0 %v1255, 18
        %v1415 = vpop.permute.xlu0 %1414
        %1416 = vrot.lane.b32.xlu0 %v1256, 18
        %v1417 = vpop.permute.xlu0 %1416
        %1418 = vrot.lane.b32.xlu0 %v1257, 18
        %v1419 = vpop.permute.xlu0 %1418
        %1420 = vrot.lane.b32.xlu0 %v1258, 18
        %v1421 = vpop.permute.xlu0 %1420
        %1422 = vrot.lane.b32.xlu0 %v1259, 18
        %v1423 = vpop.permute.xlu0 %1422
        %1424 = vrot.lane.b32.xlu0 %v1260, 18
        %v1425 = vpop.permute.xlu0 %1424
        %1426 = vrot.lane.b32.xlu0 %v1261, 18
        %v1427 = vpop.permute.xlu0 %1426
        %1428 = vrot.lane.b32.xlu0 %v1262, 18
        %v1429 = vpop.permute.xlu0 %1428
        %1430 = vrot.lane.b32.xlu0 %v1263, 18
        %v1431 = vpop.permute.xlu0 %1430
        %1432 = vrot.lane.b32.xlu0 %v1264, 18
        %v1433 = vpop.permute.xlu0 %1432
        %1434 = vrot.lane.b32.xlu0 %v1265, 18
        %v1435 = vpop.permute.xlu0 %1434
        %1436 = vrot.lane.b32.xlu0 %v1266, 18
        %v1437 = vpop.permute.xlu0 %1436
        %1438 = vrot.lane.b32.xlu0 %v1267, 18
        %v1439 = vpop.permute.xlu0 %1438
        %1440 = vrot.lane.b32.xlu0 %v1268, 18
        %v1441 = vpop.permute.xlu0 %1440
        %1442 = vrot.lane.b32.xlu0 %v1269, 18
        %v1443 = vpop.permute.xlu0 %1442
        %vm1444 = vcmask 146432
        %v1445 = vsel %vm1444, %v1397, %v1399
        %v1446 = vsel %vm1444, %v1399, %v1401
        %v1447 = vsel %vm1444, %v1401, %v1403
        %v1448 = vsel %vm1444, %v1403, %v1405
        %v1449 = vsel %vm1444, %v1405, %v1407
        %v1450 = vsel %vm1444, %v1409, %v1411
        %v1451 = vsel %vm1444, %v1411, %v1413
        %v1452 = vsel %vm1444, %v1413, %v1415
        %v1453 = vsel %vm1444, %v1415, %v1417
        %v1454 = vsel %vm1444, %v1417, %v1419
        %v1455 = vsel %vm1444, %v1421, %v1423
        %v1456 = vsel %vm1444, %v1423, %v1425
        %v1457 = vsel %vm1444, %v1425, %v1427
        %v1458 = vsel %vm1444, %v1427, %v1429
        %v1459 = vsel %vm1444, %v1429, %v1431
        %v1460 = vsel %vm1444, %v1433, %v1435
        %v1461 = vsel %vm1444, %v1435, %v1437
        %v1462 = vsel %vm1444, %v1437, %v1439
        %v1463 = vsel %vm1444, %v1439, %v1441
        %v1464 = vsel %vm1444, %v1441, %v1443
        %v1486 = vsel %vm420, 0, %v1397
        %v1489 = vsel %vm420, 0, %v1409
        %v1492 = vsel %vm420, 0, %v1421
        %v1495 = vsel %vm420, 0, %v1433
        %1497 = vrot.lane.b32.xlu0 %v1246, 17
        %v1498 = vpop.permute.xlu0 %1497
        %1499 = vrot.lane.b32.xlu0 %v1247, 17
        %v1500 = vpop.permute.xlu0 %1499
        %1501 = vrot.lane.b32.xlu0 %v1248, 17
        %v1502 = vpop.permute.xlu0 %1501
        %1503 = vrot.lane.b32.xlu0 %v1249, 17
        %v1504 = vpop.permute.xlu0 %1503
        %1505 = vrot.lane.b32.xlu0 %v1250, 17
        %v1506 = vpop.permute.xlu0 %1505
        %1507 = vrot.lane.b32.xlu0 %v1251, 17
        %v1508 = vpop.permute.xlu0 %1507
        %1509 = vrot.lane.b32.xlu0 %v1252, 17
        %v1510 = vpop.permute.xlu0 %1509
        %1511 = vrot.lane.b32.xlu0 %v1253, 17
        %v1512 = vpop.permute.xlu0 %1511
        %1513 = vrot.lane.b32.xlu0 %v1254, 17
        %v1514 = vpop.permute.xlu0 %1513
        %1515 = vrot.lane.b32.xlu0 %v1255, 17
        %v1516 = vpop.permute.xlu0 %1515
        %1517 = vrot.lane.b32.xlu0 %v1256, 17
        %v1518 = vpop.permute.xlu0 %1517
        %1519 = vrot.lane.b32.xlu0 %v1257, 17
        %v1520 = vpop.permute.xlu0 %1519
        %1521 = vrot.lane.b32.xlu0 %v1258, 17
        %v1522 = vpop.permute.xlu0 %1521
        %1523 = vrot.lane.b32.xlu0 %v1259, 17
        %v1524 = vpop.permute.xlu0 %1523
        %1525 = vrot.lane.b32.xlu0 %v1260, 17
        %v1526 = vpop.permute.xlu0 %1525
        %1527 = vrot.lane.b32.xlu0 %v1261, 17
        %v1528 = vpop.permute.xlu0 %1527
        %1529 = vrot.lane.b32.xlu0 %v1262, 17
        %v1530 = vpop.permute.xlu0 %1529
        %1531 = vrot.lane.b32.xlu0 %v1263, 17
        %v1532 = vpop.permute.xlu0 %1531
        %1533 = vrot.lane.b32.xlu0 %v1264, 17
        %v1534 = vpop.permute.xlu0 %1533
        %1535 = vrot.lane.b32.xlu0 %v1265, 17
        %v1536 = vpop.permute.xlu0 %1535
        %1537 = vrot.lane.b32.xlu0 %v1266, 17
        %v1538 = vpop.permute.xlu0 %1537
        %1539 = vrot.lane.b32.xlu0 %v1267, 17
        %v1540 = vpop.permute.xlu0 %1539
        %1541 = vrot.lane.b32.xlu0 %v1268, 17
        %v1542 = vpop.permute.xlu0 %1541
        %1543 = vrot.lane.b32.xlu0 %v1269, 17
        %v1544 = vpop.permute.xlu0 %1543
        %vm1545 = vcmask 138240
        %v1546 = vsel %vm1545, %v1498, %v1500
        %v1547 = vsel %vm1545, %v1500, %v1502
        %v1548 = vsel %vm1545, %v1502, %v1504
        %v1549 = vsel %vm1545, %v1504, %v1506
        %v1550 = vsel %vm1545, %v1506, %v1508
        %v1551 = vsel %vm1545, %v1510, %v1512
        %v1552 = vsel %vm1545, %v1512, %v1514
        %v1553 = vsel %vm1545, %v1514, %v1516
        %v1554 = vsel %vm1545, %v1516, %v1518
        %v1555 = vsel %vm1545, %v1518, %v1520
        %v1556 = vsel %vm1545, %v1522, %v1524
        %v1557 = vsel %vm1545, %v1524, %v1526
        %v1558 = vsel %vm1545, %v1526, %v1528
        %v1559 = vsel %vm1545, %v1528, %v1530
        %v1560 = vsel %vm1545, %v1530, %v1532
        %v1561 = vsel %vm1545, %v1534, %v1536
        %v1562 = vsel %vm1545, %v1536, %v1538
        %v1563 = vsel %vm1545, %v1538, %v1540
        %v1564 = vsel %vm1545, %v1540, %v1542
        %v1565 = vsel %vm1545, %v1542, %v1544
        %v1587 = vsel %vm440, 0, %v1498
        %v1590 = vsel %vm440, 0, %v1510
        %v1593 = vsel %vm440, 0, %v1522
        %v1596 = vsel %vm440, 0, %v1534
        %1598 = vrot.lane.b32.xlu0 %v1246, 1
        %v1599 = vpop.permute.xlu0 %1598
        %1600 = vrot.lane.b32.xlu0 %v1247, 1
        %v1601 = vpop.permute.xlu0 %1600
        %1602 = vrot.lane.b32.xlu0 %v1248, 1
        %v1603 = vpop.permute.xlu0 %1602
        %1604 = vrot.lane.b32.xlu0 %v1249, 1
        %v1605 = vpop.permute.xlu0 %1604
        %1606 = vrot.lane.b32.xlu0 %v1250, 1
        %v1607 = vpop.permute.xlu0 %1606
        %1608 = vrot.lane.b32.xlu0 %v1251, 1
        %v1609 = vpop.permute.xlu0 %1608
        %1610 = vrot.lane.b32.xlu0 %v1252, 1
        %v1611 = vpop.permute.xlu0 %1610
        %1612 = vrot.lane.b32.xlu0 %v1253, 1
        %v1613 = vpop.permute.xlu0 %1612
        %1614 = vrot.lane.b32.xlu0 %v1254, 1
        %v1615 = vpop.permute.xlu0 %1614
        %1616 = vrot.lane.b32.xlu0 %v1255, 1
        %v1617 = vpop.permute.xlu0 %1616
        %1618 = vrot.lane.b32.xlu0 %v1256, 1
        %v1619 = vpop.permute.xlu0 %1618
        %1620 = vrot.lane.b32.xlu0 %v1257, 1
        %v1621 = vpop.permute.xlu0 %1620
        %1622 = vrot.lane.b32.xlu0 %v1258, 1
        %v1623 = vpop.permute.xlu0 %1622
        %1624 = vrot.lane.b32.xlu0 %v1259, 1
        %v1625 = vpop.permute.xlu0 %1624
        %1626 = vrot.lane.b32.xlu0 %v1260, 1
        %v1627 = vpop.permute.xlu0 %1626
        %1628 = vrot.lane.b32.xlu0 %v1261, 1
        %v1629 = vpop.permute.xlu0 %1628
        %1630 = vrot.lane.b32.xlu0 %v1262, 1
        %v1631 = vpop.permute.xlu0 %1630
        %1632 = vrot.lane.b32.xlu0 %v1263, 1
        %v1633 = vpop.permute.xlu0 %1632
        %1634 = vrot.lane.b32.xlu0 %v1264, 1
        %v1635 = vpop.permute.xlu0 %1634
        %1636 = vrot.lane.b32.xlu0 %v1265, 1
        %v1637 = vpop.permute.xlu0 %1636
        %1638 = vrot.lane.b32.xlu0 %v1266, 1
        %v1639 = vpop.permute.xlu0 %1638
        %1640 = vrot.lane.b32.xlu0 %v1267, 1
        %v1641 = vpop.permute.xlu0 %1640
        %1642 = vrot.lane.b32.xlu0 %v1268, 1
        %v1643 = vpop.permute.xlu0 %1642
        %1644 = vrot.lane.b32.xlu0 %v1269, 1
        %v1645 = vpop.permute.xlu0 %1644
        %vm1646 = vcmask 7168
        %v1647 = vsel %vm1646, %v1599, %v1601
        %v1648 = vsel %vm1646, %v1601, %v1603
        %v1649 = vsel %vm1646, %v1603, %v1605
        %v1650 = vsel %vm1646, %v1605, %v1607
        %v1651 = vsel %vm1646, %v1607, %v1609
        %v1652 = vsel %vm1646, %v1611, %v1613
        %v1653 = vsel %vm1646, %v1613, %v1615
        %v1654 = vsel %vm1646, %v1615, %v1617
        %v1655 = vsel %vm1646, %v1617, %v1619
        %v1656 = vsel %vm1646, %v1619, %v1621
        %v1657 = vsel %vm1646, %v1623, %v1625
        %v1658 = vsel %vm1646, %v1625, %v1627
        %v1659 = vsel %vm1646, %v1627, %v1629
        %v1660 = vsel %vm1646, %v1629, %v1631
        %v1661 = vsel %vm1646, %v1631, %v1633
        %v1662 = vsel %vm1646, %v1635, %v1637
        %v1663 = vsel %vm1646, %v1637, %v1639
        %v1664 = vsel %vm1646, %v1639, %v1641
        %v1665 = vsel %vm1646, %v1641, %v1643
        %v1666 = vsel %vm1646, %v1643, %v1645
        %v1688 = vsel %vm460, 0, %v1599
        %v1691 = vsel %vm460, 0, %v1611
        %v1694 = vsel %vm460, 0, %v1623
        %v1697 = vsel %vm460, 0, %v1635
        %1699 = vrot.lane.b32.xlu0 %v1246, 127
        %v1700 = vpop.permute.xlu0 %1699
        %1701 = vrot.lane.b32.xlu0 %v1247, 127
        %v1702 = vpop.permute.xlu0 %1701
        %1703 = vrot.lane.b32.xlu0 %v1248, 127
        %v1704 = vpop.permute.xlu0 %1703
        %1705 = vrot.lane.b32.xlu0 %v1249, 127
        %v1706 = vpop.permute.xlu0 %1705
        %1707 = vrot.lane.b32.xlu0 %v1250, 127
        %v1708 = vpop.permute.xlu0 %1707
        %1709 = vrot.lane.b32.xlu0 %v1251, 127
        %v1710 = vpop.permute.xlu0 %1709
        %1711 = vrot.lane.b32.xlu0 %v1252, 127
        %v1712 = vpop.permute.xlu0 %1711
        %1713 = vrot.lane.b32.xlu0 %v1253, 127
        %v1714 = vpop.permute.xlu0 %1713
        %1715 = vrot.lane.b32.xlu0 %v1254, 127
        %v1716 = vpop.permute.xlu0 %1715
        %1717 = vrot.lane.b32.xlu0 %v1255, 127
        %v1718 = vpop.permute.xlu0 %1717
        %1719 = vrot.lane.b32.xlu0 %v1256, 127
        %v1720 = vpop.permute.xlu0 %1719
        %1721 = vrot.lane.b32.xlu0 %v1257, 127
        %v1722 = vpop.permute.xlu0 %1721
        %1723 = vrot.lane.b32.xlu0 %v1258, 127
        %v1724 = vpop.permute.xlu0 %1723
        %1725 = vrot.lane.b32.xlu0 %v1259, 127
        %v1726 = vpop.permute.xlu0 %1725
        %1727 = vrot.lane.b32.xlu0 %v1260, 127
        %v1728 = vpop.permute.xlu0 %1727
        %1729 = vrot.lane.b32.xlu0 %v1261, 127
        %v1730 = vpop.permute.xlu0 %1729
        %1731 = vrot.lane.b32.xlu0 %v1262, 127
        %v1732 = vpop.permute.xlu0 %1731
        %1733 = vrot.lane.b32.xlu0 %v1263, 127
        %v1734 = vpop.permute.xlu0 %1733
        %1735 = vrot.lane.b32.xlu0 %v1264, 127
        %v1736 = vpop.permute.xlu0 %1735
        %1737 = vrot.lane.b32.xlu0 %v1265, 127
        %v1738 = vpop.permute.xlu0 %1737
        %1739 = vrot.lane.b32.xlu0 %v1266, 127
        %v1740 = vpop.permute.xlu0 %1739
        %1741 = vrot.lane.b32.xlu0 %v1267, 127
        %v1742 = vpop.permute.xlu0 %1741
        %1743 = vrot.lane.b32.xlu0 %v1268, 127
        %v1744 = vpop.permute.xlu0 %1743
        %1745 = vrot.lane.b32.xlu0 %v1269, 127
        %v1746 = vpop.permute.xlu0 %1745
        %vm1747 = vcmask 1039360
        %v1748 = vsel %vm1747, %v1700, %v1702
        %v1749 = vsel %vm1747, %v1702, %v1704
        %v1750 = vsel %vm1747, %v1704, %v1706
        %v1751 = vsel %vm1747, %v1706, %v1708
        %v1752 = vsel %vm1747, %v1708, %v1710
        %v1753 = vsel %vm1747, %v1712, %v1714
        %v1754 = vsel %vm1747, %v1714, %v1716
        %v1755 = vsel %vm1747, %v1716, %v1718
        %v1756 = vsel %vm1747, %v1718, %v1720
        %v1757 = vsel %vm1747, %v1720, %v1722
        %v1758 = vsel %vm1747, %v1724, %v1726
        %v1759 = vsel %vm1747, %v1726, %v1728
        %v1760 = vsel %vm1747, %v1728, %v1730
        %v1761 = vsel %vm1747, %v1730, %v1732
        %v1762 = vsel %vm1747, %v1732, %v1734
        %v1763 = vsel %vm1747, %v1736, %v1738
        %v1764 = vsel %vm1747, %v1738, %v1740
        %v1765 = vsel %vm1747, %v1740, %v1742
        %v1766 = vsel %vm1747, %v1742, %v1744
        %v1767 = vsel %vm1747, %v1744, %v1746
        %v1789 = vsel %vm480, %v1710, 0
        %v1792 = vsel %vm480, %v1722, 0
        %v1795 = vsel %vm480, %v1734, 0
        %v1798 = vsel %vm480, %v1746, 0
        %1800 = vrot.lane.b32.xlu0 %v1246, 111
        %v1801 = vpop.permute.xlu0 %1800
        %1802 = vrot.lane.b32.xlu0 %v1247, 111
        %v1803 = vpop.permute.xlu0 %1802
        %1804 = vrot.lane.b32.xlu0 %v1248, 111
        %v1805 = vpop.permute.xlu0 %1804
        %1806 = vrot.lane.b32.xlu0 %v1249, 111
        %v1807 = vpop.permute.xlu0 %1806
        %1808 = vrot.lane.b32.xlu0 %v1250, 111
        %v1809 = vpop.permute.xlu0 %1808
        %1810 = vrot.lane.b32.xlu0 %v1251, 111
        %v1811 = vpop.permute.xlu0 %1810
        %1812 = vrot.lane.b32.xlu0 %v1252, 111
        %v1813 = vpop.permute.xlu0 %1812
        %1814 = vrot.lane.b32.xlu0 %v1253, 111
        %v1815 = vpop.permute.xlu0 %1814
        %1816 = vrot.lane.b32.xlu0 %v1254, 111
        %v1817 = vpop.permute.xlu0 %1816
        %1818 = vrot.lane.b32.xlu0 %v1255, 111
        %v1819 = vpop.permute.xlu0 %1818
        %1820 = vrot.lane.b32.xlu0 %v1256, 111
        %v1821 = vpop.permute.xlu0 %1820
        %1822 = vrot.lane.b32.xlu0 %v1257, 111
        %v1823 = vpop.permute.xlu0 %1822
        %1824 = vrot.lane.b32.xlu0 %v1258, 111
        %v1825 = vpop.permute.xlu0 %1824
        %1826 = vrot.lane.b32.xlu0 %v1259, 111
        %v1827 = vpop.permute.xlu0 %1826
        %1828 = vrot.lane.b32.xlu0 %v1260, 111
        %v1829 = vpop.permute.xlu0 %1828
        %1830 = vrot.lane.b32.xlu0 %v1261, 111
        %v1831 = vpop.permute.xlu0 %1830
        %1832 = vrot.lane.b32.xlu0 %v1262, 111
        %v1833 = vpop.permute.xlu0 %1832
        %1834 = vrot.lane.b32.xlu0 %v1263, 111
        %v1835 = vpop.permute.xlu0 %1834
        %1836 = vrot.lane.b32.xlu0 %v1264, 111
        %v1837 = vpop.permute.xlu0 %1836
        %1838 = vrot.lane.b32.xlu0 %v1265, 111
        %v1839 = vpop.permute.xlu0 %1838
        %1840 = vrot.lane.b32.xlu0 %v1266, 111
        %v1841 = vpop.permute.xlu0 %1840
        %1842 = vrot.lane.b32.xlu0 %v1267, 111
        %v1843 = vpop.permute.xlu0 %1842
        %1844 = vrot.lane.b32.xlu0 %v1268, 111
        %v1845 = vpop.permute.xlu0 %1844
        %1846 = vrot.lane.b32.xlu0 %v1269, 111
        %v1847 = vpop.permute.xlu0 %1846
        %vm1848 = vcmask 908288
        %v1849 = vsel %vm1848, %v1801, %v1803
        %v1850 = vsel %vm1848, %v1803, %v1805
        %v1851 = vsel %vm1848, %v1805, %v1807
        %v1852 = vsel %vm1848, %v1807, %v1809
        %v1853 = vsel %vm1848, %v1809, %v1811
        %v1854 = vsel %vm1848, %v1813, %v1815
        %v1855 = vsel %vm1848, %v1815, %v1817
        %v1856 = vsel %vm1848, %v1817, %v1819
        %v1857 = vsel %vm1848, %v1819, %v1821
        %v1858 = vsel %vm1848, %v1821, %v1823
        %v1859 = vsel %vm1848, %v1825, %v1827
        %v1860 = vsel %vm1848, %v1827, %v1829
        %v1861 = vsel %vm1848, %v1829, %v1831
        %v1862 = vsel %vm1848, %v1831, %v1833
        %v1863 = vsel %vm1848, %v1833, %v1835
        %v1864 = vsel %vm1848, %v1837, %v1839
        %v1865 = vsel %vm1848, %v1839, %v1841
        %v1866 = vsel %vm1848, %v1841, %v1843
        %v1867 = vsel %vm1848, %v1843, %v1845
        %v1868 = vsel %vm1848, %v1845, %v1847
        %v1890 = vsel %vm500, %v1811, 0
        %v1893 = vsel %vm500, %v1823, 0
        %v1896 = vsel %vm500, %v1835, 0
        %v1899 = vsel %vm500, %v1847, 0
        %1901 = vrot.lane.b32.xlu0 %v1246, 110
        %v1902 = vpop.permute.xlu0 %1901
        %1903 = vrot.lane.b32.xlu0 %v1247, 110
        %v1904 = vpop.permute.xlu0 %1903
        %1905 = vrot.lane.b32.xlu0 %v1248, 110
        %v1906 = vpop.permute.xlu0 %1905
        %1907 = vrot.lane.b32.xlu0 %v1249, 110
        %v1908 = vpop.permute.xlu0 %1907
        %1909 = vrot.lane.b32.xlu0 %v1250, 110
        %v1910 = vpop.permute.xlu0 %1909
        %1911 = vrot.lane.b32.xlu0 %v1251, 110
        %v1912 = vpop.permute.xlu0 %1911
        %1913 = vrot.lane.b32.xlu0 %v1252, 110
        %v1914 = vpop.permute.xlu0 %1913
        %1915 = vrot.lane.b32.xlu0 %v1253, 110
        %v1916 = vpop.permute.xlu0 %1915
        %1917 = vrot.lane.b32.xlu0 %v1254, 110
        %v1918 = vpop.permute.xlu0 %1917
        %1919 = vrot.lane.b32.xlu0 %v1255, 110
        %v1920 = vpop.permute.xlu0 %1919
        %1921 = vrot.lane.b32.xlu0 %v1256, 110
        %v1922 = vpop.permute.xlu0 %1921
        %1923 = vrot.lane.b32.xlu0 %v1257, 110
        %v1924 = vpop.permute.xlu0 %1923
        %1925 = vrot.lane.b32.xlu0 %v1258, 110
        %v1926 = vpop.permute.xlu0 %1925
        %1927 = vrot.lane.b32.xlu0 %v1259, 110
        %v1928 = vpop.permute.xlu0 %1927
        %1929 = vrot.lane.b32.xlu0 %v1260, 110
        %v1930 = vpop.permute.xlu0 %1929
        %1931 = vrot.lane.b32.xlu0 %v1261, 110
        %v1932 = vpop.permute.xlu0 %1931
        %1933 = vrot.lane.b32.xlu0 %v1262, 110
        %v1934 = vpop.permute.xlu0 %1933
        %1935 = vrot.lane.b32.xlu0 %v1263, 110
        %v1936 = vpop.permute.xlu0 %1935
        %1937 = vrot.lane.b32.xlu0 %v1264, 110
        %v1938 = vpop.permute.xlu0 %1937
        %1939 = vrot.lane.b32.xlu0 %v1265, 110
        %v1940 = vpop.permute.xlu0 %1939
        %1941 = vrot.lane.b32.xlu0 %v1266, 110
        %v1942 = vpop.permute.xlu0 %1941
        %1943 = vrot.lane.b32.xlu0 %v1267, 110
        %v1944 = vpop.permute.xlu0 %1943
        %1945 = vrot.lane.b32.xlu0 %v1268, 110
        %v1946 = vpop.permute.xlu0 %1945
        %1947 = vrot.lane.b32.xlu0 %v1269, 110
        %v1948 = vpop.permute.xlu0 %1947
        %vm1949 = vcmask 900096
        %v1950 = vsel %vm1949, %v1902, %v1904
        %v1951 = vsel %vm1949, %v1904, %v1906
        %v1952 = vsel %vm1949, %v1906, %v1908
        %v1953 = vsel %vm1949, %v1908, %v1910
        %v1954 = vsel %vm1949, %v1910, %v1912
        %v1955 = vsel %vm1949, %v1914, %v1916
        %v1956 = vsel %vm1949, %v1916, %v1918
        %v1957 = vsel %vm1949, %v1918, %v1920
        %v1958 = vsel %vm1949, %v1920, %v1922
        %v1959 = vsel %vm1949, %v1922, %v1924
        %v1960 = vsel %vm1949, %v1926, %v1928
        %v1961 = vsel %vm1949, %v1928, %v1930
        %v1962 = vsel %vm1949, %v1930, %v1932
        %v1963 = vsel %vm1949, %v1932, %v1934
        %v1964 = vsel %vm1949, %v1934, %v1936
        %v1965 = vsel %vm1949, %v1938, %v1940
        %v1966 = vsel %vm1949, %v1940, %v1942
        %v1967 = vsel %vm1949, %v1942, %v1944
        %v1968 = vsel %vm1949, %v1944, %v1946
        %v1969 = vsel %vm1949, %v1946, %v1948
        %v1991 = vsel %vm520, %v1912, 0
        %v1994 = vsel %vm520, %v1924, 0
        %v1997 = vsel %vm520, %v1936, 0
        %v2000 = vsel %vm520, %v1948, 0
        %2002 = vrot.lane.b32.xlu0 %v1246, 109
        %v2003 = vpop.permute.xlu0 %2002
        %2004 = vrot.lane.b32.xlu0 %v1247, 109
        %v2005 = vpop.permute.xlu0 %2004
        %2006 = vrot.lane.b32.xlu0 %v1248, 109
        %v2007 = vpop.permute.xlu0 %2006
        %2008 = vrot.lane.b32.xlu0 %v1249, 109
        %v2009 = vpop.permute.xlu0 %2008
        %2010 = vrot.lane.b32.xlu0 %v1250, 109
        %v2011 = vpop.permute.xlu0 %2010
        %2012 = vrot.lane.b32.xlu0 %v1251, 109
        %v2013 = vpop.permute.xlu0 %2012
        %2014 = vrot.lane.b32.xlu0 %v1252, 109
        %v2015 = vpop.permute.xlu0 %2014
        %2016 = vrot.lane.b32.xlu0 %v1253, 109
        %v2017 = vpop.permute.xlu0 %2016
        %2018 = vrot.lane.b32.xlu0 %v1254, 109
        %v2019 = vpop.permute.xlu0 %2018
        %2020 = vrot.lane.b32.xlu0 %v1255, 109
        %v2021 = vpop.permute.xlu0 %2020
        %2022 = vrot.lane.b32.xlu0 %v1256, 109
        %v2023 = vpop.permute.xlu0 %2022
        %2024 = vrot.lane.b32.xlu0 %v1257, 109
        %v2025 = vpop.permute.xlu0 %2024
        %2026 = vrot.lane.b32.xlu0 %v1258, 109
        %v2027 = vpop.permute.xlu0 %2026
        %2028 = vrot.lane.b32.xlu0 %v1259, 109
        %v2029 = vpop.permute.xlu0 %2028
        %2030 = vrot.lane.b32.xlu0 %v1260, 109
        %v2031 = vpop.permute.xlu0 %2030
        %2032 = vrot.lane.b32.xlu0 %v1261, 109
        %v2033 = vpop.permute.xlu0 %2032
        %2034 = vrot.lane.b32.xlu0 %v1262, 109
        %v2035 = vpop.permute.xlu0 %2034
        %2036 = vrot.lane.b32.xlu0 %v1263, 109
        %v2037 = vpop.permute.xlu0 %2036
        %2038 = vrot.lane.b32.xlu0 %v1264, 109
        %v2039 = vpop.permute.xlu0 %2038
        %2040 = vrot.lane.b32.xlu0 %v1265, 109
        %v2041 = vpop.permute.xlu0 %2040
        %2042 = vrot.lane.b32.xlu0 %v1266, 109
        %v2043 = vpop.permute.xlu0 %2042
        %2044 = vrot.lane.b32.xlu0 %v1267, 109
        %v2045 = vpop.permute.xlu0 %2044
        %2046 = vrot.lane.b32.xlu0 %v1268, 109
        %v2047 = vpop.permute.xlu0 %2046
        %2048 = vrot.lane.b32.xlu0 %v1269, 109
        %v2049 = vpop.permute.xlu0 %2048
        %vm2050 = vcmask 891904
        %v2051 = vsel %vm2050, %v2003, %v2005
        %v2052 = vsel %vm2050, %v2005, %v2007
        %v2053 = vsel %vm2050, %v2007, %v2009
        %v2054 = vsel %vm2050, %v2009, %v2011
        %v2055 = vsel %vm2050, %v2011, %v2013
        %v2056 = vsel %vm2050, %v2015, %v2017
        %v2057 = vsel %vm2050, %v2017, %v2019
        %v2058 = vsel %vm2050, %v2019, %v2021
        %v2059 = vsel %vm2050, %v2021, %v2023
        %v2060 = vsel %vm2050, %v2023, %v2025
        %v2061 = vsel %vm2050, %v2027, %v2029
        %v2062 = vsel %vm2050, %v2029, %v2031
        %v2063 = vsel %vm2050, %v2031, %v2033
        %v2064 = vsel %vm2050, %v2033, %v2035
        %v2065 = vsel %vm2050, %v2035, %v2037
        %v2066 = vsel %vm2050, %v2039, %v2041
        %v2067 = vsel %vm2050, %v2041, %v2043
        %v2068 = vsel %vm2050, %v2043, %v2045
        %v2069 = vsel %vm2050, %v2045, %v2047
        %v2070 = vsel %vm2050, %v2047, %v2049
        %v2092 = vsel %vm540, %v2013, 0
        %v2095 = vsel %vm540, %v2025, 0
        %v2098 = vsel %vm540, %v2037, 0
        %v2101 = vsel %vm540, %v2049, 0
        %s2103 = smul.u32 %s1245, 40
        %s2104 = smul.addr %s2103, 4
        %s2105 = scalar_lea.vmem %s3, %s2104
        %v2106 = vld [vmem:[%s2105] sm:$0xff]
        %v2107 = vld [vmem:[%s2105 + $0x8] sm:$0xff]
        %v2108 = vld [vmem:[%s2105 + $0x10] sm:$0xf]
        %v2109 = vld [vmem:[%s2105 + $0x14] sm:$0xff]
        %v2110 = vld [vmem:[%s2105 + $0x1c] sm:$0xff]
        %v2111 = vld [vmem:[%s2105 + $0x24] sm:$0xf]
        %v2112 = vld [vmem:[%s2105 + $0x28] sm:$0xff]
        %v2113 = vld [vmem:[%s2105 + $0x30] sm:$0xff]
        %v2114 = vld [vmem:[%s2105 + $0x38] sm:$0xf]
        %v2115 = vld [vmem:[%s2105 + $0x3c] sm:$0xff]
        %v2116 = vld [vmem:[%s2105 + $0x44] sm:$0xff]
        %v2117 = vld [vmem:[%s2105 + $0x4c] sm:$0xf]
        %v2118 = vld [vmem:[%s2105 + $0x50] sm:$0xff]
        %v2119 = vld [vmem:[%s2105 + $0x58] sm:$0xff]
        %v2120 = vld [vmem:[%s2105 + $0x60] sm:$0xf]
        %v2121 = vld [vmem:[%s2105 + $0x64] sm:$0xff]
        %v2122 = vld [vmem:[%s2105 + $0x6c] sm:$0xff]
        %v2123 = vld [vmem:[%s2105 + $0x74] sm:$0xf]
        %v2124 = vld [vmem:[%s2105 + $0x78] sm:$0xff]
        %v2125 = vld [vmem:[%s2105 + $0x80] sm:$0xff]
        %v2126 = vld [vmem:[%s2105 + $0x88] sm:$0xf]
        %v2127 = vld [vmem:[%s2105 + $0x8c] sm:$0xff]
        %v2128 = vld [vmem:[%s2105 + $0x94] sm:$0xff]
        %v2129 = vld [vmem:[%s2105 + $0x9c] sm:$0xf]
        %s2130 = smul.u32 %s1245, 64
        %s2131 = scalar_lea.vmem %s4, %s2130
        %v2132 = vld [vmem:[%s2131] sm:$0xff]
        %v2133 = vld [vmem:[%s2131 + $0x8] sm:$0xff]
        %v2134 = vld [vmem:[%s2131 + $0x10] sm:$0xff]
        %v2135 = vld [vmem:[%s2131 + $0x18] sm:$0xff]
        %v2136 = vld [vmem:[%s2131 + $0x20] sm:$0xff]
        %v2137 = vld [vmem:[%s2131 + $0x28] sm:$0xff]
        %v2138 = vld [vmem:[%s2131 + $0x30] sm:$0xff]
        %v2139 = vld [vmem:[%s2131 + $0x38] sm:$0xff]
        %2141 = vset.pattern.permute.xlu0 0
        %2142 = vperm.xlu0 %2141, %v2132
        %v2143 = vpop.permute.xlu0 %2142
        %2146 = vset.pattern.permute.xlu0 0
        %2147 = vperm.xlu0 %2146, %v2133
        %v2148 = vpop.permute.xlu0 %2147
        %2151 = vset.pattern.permute.xlu0 0
        %2152 = vperm.xlu0 %2151, %v2134
        %v2153 = vpop.permute.xlu0 %2152
        %2156 = vset.pattern.permute.xlu0 0
        %2157 = vperm.xlu0 %2156, %v2135
        %v2158 = vpop.permute.xlu0 %2157
        %2161 = vset.pattern.permute.xlu0 0
        %2162 = vperm.xlu0 %2161, %v2136
        %v2163 = vpop.permute.xlu0 %2162
        %2166 = vset.pattern.permute.xlu0 0
        %2167 = vperm.xlu0 %2166, %v2137
        %v2168 = vpop.permute.xlu0 %2167
        %2171 = vset.pattern.permute.xlu0 0
        %2172 = vperm.xlu0 %2171, %v2138
        %v2173 = vpop.permute.xlu0 %2172
        %2176 = vset.pattern.permute.xlu0 0
        %2177 = vperm.xlu0 %2176, %v2139
        %v2178 = vpop.permute.xlu0 %2177
        %v2204 = vunpack.c.l.b16 %v2106
        %v2205 = vunpack.c.h.b16 %v2106
        %v2206 = vunpack.c.l.b16 %v2107
        %v2207 = vunpack.c.h.b16 %v2107
        %v2208 = vunpack.c.l.b16 %v2108
        %v2209 = vunpack.c.l.b16 %v2109
        %v2210 = vunpack.c.h.b16 %v2109
        %v2211 = vunpack.c.l.b16 %v2110
        %v2212 = vunpack.c.h.b16 %v2110
        %v2213 = vunpack.c.l.b16 %v2111
        %v2214 = vunpack.c.l.b16 %v2112
        %v2215 = vunpack.c.h.b16 %v2112
        %v2216 = vunpack.c.l.b16 %v2113
        %v2217 = vunpack.c.h.b16 %v2113
        %v2218 = vunpack.c.l.b16 %v2114
        %v2219 = vunpack.c.l.b16 %v2115
        %v2220 = vunpack.c.h.b16 %v2115
        %v2221 = vunpack.c.l.b16 %v2116
        %v2222 = vunpack.c.h.b16 %v2116
        %v2223 = vunpack.c.l.b16 %v2117
        %v2224 = vunpack.c.l.b16 %v2118
        %v2225 = vunpack.c.h.b16 %v2118
        %v2226 = vunpack.c.l.b16 %v2119
        %v2227 = vunpack.c.h.b16 %v2119
        %v2228 = vunpack.c.l.b16 %v2120
        %v2229 = vunpack.c.l.b16 %v2121
        %v2230 = vunpack.c.h.b16 %v2121
        %v2231 = vunpack.c.l.b16 %v2122
        %v2232 = vunpack.c.h.b16 %v2122
        %v2233 = vunpack.c.l.b16 %v2123
        %v2234 = vunpack.c.l.b16 %v2124
        %v2235 = vunpack.c.h.b16 %v2124
        %v2236 = vunpack.c.l.b16 %v2125
        %v2237 = vunpack.c.h.b16 %v2125
        %v2238 = vunpack.c.l.b16 %v2126
        %v2239 = vunpack.c.l.b16 %v2127
        %v2240 = vunpack.c.h.b16 %v2127
        %v2241 = vunpack.c.l.b16 %v2128
        %v2242 = vunpack.c.h.b16 %v2128
        %v2243 = vunpack.c.l.b16 %v2129
        %v2244 = vpack.c.b16 %v2209, %v2204
        %v2245 = vpack.c.b16 %v2210, %v2205
        %v2246 = vpack.c.b16 %v2211, %v2206
        %v2247 = vpack.c.b16 %v2212, %v2207
        %v2248 = vpack.c.b16 %v2213, %v2208
        %v2249 = vpack.c.b16 %v2219, %v2214
        %v2250 = vpack.c.b16 %v2220, %v2215
        %v2251 = vpack.c.b16 %v2221, %v2216
        %v2252 = vpack.c.b16 %v2222, %v2217
        %v2253 = vpack.c.b16 %v2223, %v2218
        %v2254 = vpack.c.b16 %v2229, %v2224
        %v2255 = vpack.c.b16 %v2230, %v2225
        %v2256 = vpack.c.b16 %v2231, %v2226
        %v2257 = vpack.c.b16 %v2232, %v2227
        %v2258 = vpack.c.b16 %v2233, %v2228
        %v2259 = vpack.c.b16 %v2239, %v2234
        %v2260 = vpack.c.b16 %v2240, %v2235
        %v2261 = vpack.c.b16 %v2241, %v2236
        %v2262 = vpack.c.b16 %v2242, %v2237
        %v2263 = vpack.c.b16 %v2243, %v2238
        %vm2280 = vcmask 523264
        %v2282 = vsel %vm2280, %v2248, 0
        %v2285 = vsel %vm2280, %v2253, 0
        %v2288 = vsel %vm2280, %v2258, 0
        %v2291 = vsel %vm2280, %v2263, 0
        %2293 = vmatprep.subr.bf16.mxu0 %v1343
        %2294 = vmatpush1.bf16.msra.mxu0 %v1385
        %2295 = vmatprep.subr.bf16.mxu0 %v1348
        %2296 = vmatpush1.bf16.msra.mxu0 %v1388
        %2297 = vmatprep.subr.bf16.mxu0 %v1353
        %2298 = vmatpush1.bf16.msra.mxu0 %v1391
        %2299 = vmatprep.subr.bf16.mxu0 %v1358
        %2300 = vmatpush1.bf16.msra.mxu0 %v1394
        %2301 = vmatprep.subr.bf16.mxu0 %v1445
        %2302 = vmatpush1.bf16.msra.mxu0 %v1486
        %2303 = vmatprep.subr.bf16.mxu0 %v1450
        %2304 = vmatpush1.bf16.msra.mxu0 %v1489
        %2305 = vmatprep.subr.bf16.mxu0 %v1455
        %2306 = vmatpush1.bf16.msra.mxu0 %v1492
        %2307 = vmatprep.subr.bf16.mxu0 %v1460
        %2308 = vmatpush1.bf16.msra.mxu0 %v1495
        %2309 = vmatprep.subr.bf16.mxu0 %v1546
        %2310 = vmatpush1.bf16.msra.mxu0 %v1587
        %2311 = vmatprep.subr.bf16.mxu0 %v1551
        %2312 = vmatpush1.bf16.msra.mxu0 %v1590
        %2313 = vmatprep.subr.bf16.mxu0 %v1556
        %2314 = vmatpush1.bf16.msra.mxu0 %v1593
        %2315 = vmatprep.subr.bf16.mxu0 %v1561
        %2316 = vmatpush1.bf16.msra.mxu0 %v1596
        %2317 = vmatprep.subr.bf16.mxu0 %v1647
        %2318 = vmatpush1.bf16.msra.mxu0 %v1688
        %2319 = vmatprep.subr.bf16.mxu0 %v1652
        %2320 = vmatpush1.bf16.msra.mxu0 %v1691
        %2321 = vmatprep.subr.bf16.mxu0 %v1657
        %2322 = vmatpush1.bf16.msra.mxu0 %v1694
        %2323 = vmatprep.subr.bf16.mxu0 %v1662
        %2324 = vmatpush1.bf16.msra.mxu0 %v1697
        %2325 = vmatprep.mubr.bf16.mxu0 %v2245
        %2326 = vmatmul.mubr.bf16.gmra.mrb[0].mxu0 %v2244
        %v2327 = vpop.f32.mrb[0].mxu0
        %v2328 = vadd.f32 %v2143, %v2327
        %v2329 = vpop.f32.mrb[0].mxu0
        %v2330 = vadd.f32 %v2143, %v2329
        %v2331 = vpop.f32.mrb[0].mxu0
        %v2332 = vadd.f32 %v2148, %v2331
        %v2333 = vpop.f32.mrb[0].mxu0
        %v2334 = vadd.f32 %v2148, %v2333
        %2335 = vmatprep.mubr.bf16.mxu0 %v2250
        %2336 = vmatmul.mubr.bf16.gmra.mrb[0].mxu0 %v2249
        %v2337 = vpop.f32.mrb[0].mxu0
        %v2338 = vadd.f32 %v2153, %v2337
        %v2339 = vpop.f32.mrb[0].mxu0
        %v2340 = vadd.f32 %v2153, %v2339
        %v2341 = vpop.f32.mrb[0].mxu0
        %v2342 = vadd.f32 %v2158, %v2341
        %v2343 = vpop.f32.mrb[0].mxu0
        %v2344 = vadd.f32 %v2158, %v2343
        %2345 = vmatprep.mubr.bf16.mxu0 %v2255
        %2346 = vmatmul.mubr.bf16.gmra.mrb[0].mxu0 %v2254
        %v2347 = vpop.f32.mrb[0].mxu0
        %v2348 = vadd.f32 %v2163, %v2347
        %v2349 = vpop.f32.mrb[0].mxu0
        %v2350 = vadd.f32 %v2163, %v2349
        %v2351 = vpop.f32.mrb[0].mxu0
        %v2352 = vadd.f32 %v2168, %v2351
        %v2353 = vpop.f32.mrb[0].mxu0
        %v2354 = vadd.f32 %v2168, %v2353
        %2355 = vmatprep.mubr.bf16.mxu0 %v2260
        %2356 = vmatmul.mubr.bf16.gmra.mrb[0].mxu0 %v2259
        %v2357 = vpop.f32.mrb[0].mxu0
        %v2358 = vadd.f32 %v2173, %v2357
        %v2359 = vpop.f32.mrb[0].mxu0
        %v2360 = vadd.f32 %v2173, %v2359
        %v2361 = vpop.f32.mrb[0].mxu0
        %v2362 = vadd.f32 %v2178, %v2361
        %v2363 = vpop.f32.mrb[0].mxu0
        %v2364 = vadd.f32 %v2178, %v2363
        %2365 = vdwg.mxu0
        %2366 = vmatprep.subr.bf16.mxu0 %v1247
        %2367 = vmatpush1.bf16.msra.mxu0 %v1246
        %2368 = vmatprep.subr.bf16.mxu0 %v1253
        %2369 = vmatpush1.bf16.msra.mxu0 %v1252
        %2370 = vmatprep.subr.bf16.mxu0 %v1259
        %2371 = vmatpush1.bf16.msra.mxu0 %v1258
        %2372 = vmatprep.subr.bf16.mxu0 %v1265
        %2373 = vmatpush1.bf16.msra.mxu0 %v1264
        %2374 = vmatprep.subr.bf16.mxu0 %v1749
        %2375 = vmatpush1.bf16.msra.mxu0 %v1748
        %2376 = vmatprep.subr.bf16.mxu0 %v1754
        %2377 = vmatpush1.bf16.msra.mxu0 %v1753
        %2378 = vmatprep.subr.bf16.mxu0 %v1759
        %2379 = vmatpush1.bf16.msra.mxu0 %v1758
        %2380 = vmatprep.subr.bf16.mxu0 %v1764
        %2381 = vmatpush1.bf16.msra.mxu0 %v1763
        %2382 = vmatprep.subr.bf16.mxu0 %v1850
        %2383 = vmatpush1.bf16.msra.mxu0 %v1849
        %2384 = vmatprep.subr.bf16.mxu0 %v1855
        %2385 = vmatpush1.bf16.msra.mxu0 %v1854
        %2386 = vmatprep.subr.bf16.mxu0 %v1860
        %2387 = vmatpush1.bf16.msra.mxu0 %v1859
        %2388 = vmatprep.subr.bf16.mxu0 %v1865
        %2389 = vmatpush1.bf16.msra.mxu0 %v1864
        %2390 = vmatprep.subr.bf16.mxu0 %v1951
        %2391 = vmatpush1.bf16.msra.mxu0 %v1950
        %2392 = vmatprep.subr.bf16.mxu0 %v1956
        %2393 = vmatpush1.bf16.msra.mxu0 %v1955
        %2394 = vmatprep.subr.bf16.mxu0 %v1961
        %2395 = vmatpush1.bf16.msra.mxu0 %v1960
        %2396 = vmatprep.subr.bf16.mxu0 %v1966
        %2397 = vmatpush1.bf16.msra.mxu0 %v1965
        %2398 = vmatprep.mubr.bf16.mxu0 %v2247
        %2399 = vmatmul.mubr.bf16.gmra.mrb[0].mxu0 %v2246
        %v2400 = vpop.f32.mrb[0].mxu0
        %v2401 = vadd.f32 %v2328, %v2400
        %v2402 = vpop.f32.mrb[0].mxu0
        %v2403 = vadd.f32 %v2330, %v2402
        %v2404 = vpop.f32.mrb[0].mxu0
        %v2405 = vadd.f32 %v2332, %v2404
        %v2406 = vpop.f32.mrb[0].mxu0
        %v2407 = vadd.f32 %v2334, %v2406
        %2408 = vmatprep.mubr.bf16.mxu0 %v2252
        %2409 = vmatmul.mubr.bf16.gmra.mrb[0].mxu0 %v2251
        %v2410 = vpop.f32.mrb[0].mxu0
        %v2411 = vadd.f32 %v2338, %v2410
        %v2412 = vpop.f32.mrb[0].mxu0
        %v2413 = vadd.f32 %v2340, %v2412
        %v2414 = vpop.f32.mrb[0].mxu0
        %v2415 = vadd.f32 %v2342, %v2414
        %v2416 = vpop.f32.mrb[0].mxu0
        %v2417 = vadd.f32 %v2344, %v2416
        %2418 = vmatprep.mubr.bf16.mxu0 %v2257
        %2419 = vmatmul.mubr.bf16.gmra.mrb[0].mxu0 %v2256
        %v2420 = vpop.f32.mrb[0].mxu0
        %v2421 = vadd.f32 %v2348, %v2420
        %v2422 = vpop.f32.mrb[0].mxu0
        %v2423 = vadd.f32 %v2350, %v2422
        %v2424 = vpop.f32.mrb[0].mxu0
        %v2425 = vadd.f32 %v2352, %v2424
        %v2426 = vpop.f32.mrb[0].mxu0
        %v2427 = vadd.f32 %v2354, %v2426
        %2428 = vmatprep.mubr.bf16.mxu0 %v2262
        %2429 = vmatmul.mubr.bf16.gmra.mrb[0].mxu0 %v2261
        %v2430 = vpop.f32.mrb[0].mxu0
        %v2431 = vadd.f32 %v2358, %v2430
        %v2432 = vpop.f32.mrb[0].mxu0
        %v2433 = vadd.f32 %v2360, %v2432
        %v2434 = vpop.f32.mrb[0].mxu0
        %v2435 = vadd.f32 %v2362, %v2434
        %v2436 = vpop.f32.mrb[0].mxu0
        %v2437 = vadd.f32 %v2364, %v2436
        %2438 = vdwg.mxu0
        %2439 = vmatprep.subr.bf16.mxu0 %v2052
        %2440 = vmatpush1.bf16.msra.mxu0 %v2051
        %2441 = vmatprep.subr.bf16.mxu0 %v2057
        %2442 = vmatpush1.bf16.msra.mxu0 %v2056
        %2443 = vmatprep.subr.bf16.mxu0 %v2062
        %2444 = vmatpush1.bf16.msra.mxu0 %v2061
        %2445 = vmatprep.subr.bf16.mxu0 %v2067
        %2446 = vmatpush1.bf16.msra.mxu0 %v2066
        %2447 = vmatprep.subr.bf16.mxu0 0
        %2448 = vmatpush1.bf16.msra.mxu0 0
        %2449 = vmatprep.subr.bf16.mxu0 0
        %2450 = vmatpush1.bf16.msra.mxu0 0
        %2451 = vmatprep.subr.bf16.mxu0 0
        %2452 = vmatpush1.bf16.msra.mxu0 0
        %2453 = vmatprep.subr.bf16.mxu0 0
        %2454 = vmatpush1.bf16.msra.mxu0 0
        %2455 = vmatprep.subr.bf16.mxu0 0
        %2456 = vmatpush1.bf16.msra.mxu0 0
        %2457 = vmatprep.subr.bf16.mxu0 0
        %2458 = vmatpush1.bf16.msra.mxu0 0
        %2459 = vmatprep.subr.bf16.mxu0 0
        %2460 = vmatpush1.bf16.msra.mxu0 0
        %2461 = vmatprep.subr.bf16.mxu0 0
        %2462 = vmatpush1.bf16.msra.mxu0 0
        %2463 = vmatprep.subr.bf16.mxu0 0
        %2464 = vmatpush1.bf16.msra.mxu0 0
        %2465 = vmatprep.subr.bf16.mxu0 0
        %2466 = vmatpush1.bf16.msra.mxu0 0
        %2467 = vmatprep.subr.bf16.mxu0 0
        %2468 = vmatpush1.bf16.msra.mxu0 0
        %2469 = vmatprep.subr.bf16.mxu0 0
        %2470 = vmatpush1.bf16.msra.mxu0 0
        %2471 = vmatprep.mubr.bf16.mxu0 0
        %2472 = vmatmul.mubr.bf16.gmra.mrb[0].mxu0 %v2282
        %v2473 = vpop.f32.mrb[0].mxu0
        %v2474 = vadd.f32 %v2401, %v2473
        %v2475 = vpop.f32.mrb[0].mxu0
        %v2476 = vadd.f32 %v2403, %v2475
        %v2477 = vpop.f32.mrb[0].mxu0
        %v2478 = vadd.f32 %v2405, %v2477
        %v2479 = vpop.f32.mrb[0].mxu0
        %v2480 = vadd.f32 %v2407, %v2479
        %2481 = vmatprep.mubr.bf16.mxu0 0
        %2482 = vmatmul.mubr.bf16.gmra.mrb[0].mxu0 %v2285
        %v2483 = vpop.f32.mrb[0].mxu0
        %v2484 = vadd.f32 %v2411, %v2483
        %v2485 = vpop.f32.mrb[0].mxu0
        %v2486 = vadd.f32 %v2413, %v2485
        %v2487 = vpop.f32.mrb[0].mxu0
        %v2488 = vadd.f32 %v2415, %v2487
        %v2489 = vpop.f32.mrb[0].mxu0
        %v2490 = vadd.f32 %v2417, %v2489
        %2491 = vmatprep.mubr.bf16.mxu0 0
        %2492 = vmatmul.mubr.bf16.gmra.mrb[0].mxu0 %v2288
        %v2493 = vpop.f32.mrb[0].mxu0
        %v2494 = vadd.f32 %v2421, %v2493
        %v2495 = vpop.f32.mrb[0].mxu0
        %v2496 = vadd.f32 %v2423, %v2495
        %v2497 = vpop.f32.mrb[0].mxu0
        %v2498 = vadd.f32 %v2425, %v2497
        %v2499 = vpop.f32.mrb[0].mxu0
        %v2500 = vadd.f32 %v2427, %v2499
        %2501 = vmatprep.mubr.bf16.mxu0 0
        %2502 = vmatmul.mubr.bf16.gmra.mrb[0].mxu0 %v2291
        %v2503 = vpop.f32.mrb[0].mxu0
        %v2504 = vadd.f32 %v2431, %v2503
        %v2505 = vpop.f32.mrb[0].mxu0
        %v2506 = vadd.f32 %v2433, %v2505
        %v2507 = vpop.f32.mrb[0].mxu0
        %v2508 = vadd.f32 %v2435, %v2507
        %v2509 = vpop.f32.mrb[0].mxu0
        %v2510 = vadd.f32 %v2437, %v2509
        %2511 = vdwg.mxu0
        %2512 = vmatprep.subr.bf16.mxu0 %v1345
        %2513 = vmatpush1.bf16.msra.mxu0 %v1344
        %2514 = vmatprep.subr.bf16.mxu0 %v1350
        %2515 = vmatpush1.bf16.msra.mxu0 %v1349
        %2516 = vmatprep.subr.bf16.mxu0 %v1355
        %2517 = vmatpush1.bf16.msra.mxu0 %v1354
        %2518 = vmatprep.subr.bf16.mxu0 %v1360
        %2519 = vmatpush1.bf16.msra.mxu0 %v1359
        %2520 = vmatprep.subr.bf16.mxu0 %v1447
        %2521 = vmatpush1.bf16.msra.mxu0 %v1446
        %2522 = vmatprep.subr.bf16.mxu0 %v1452
        %2523 = vmatpush1.bf16.msra.mxu0 %v1451
        %2524 = vmatprep.subr.bf16.mxu0 %v1457
        %2525 = vmatpush1.bf16.msra.mxu0 %v1456
        %2526 = vmatprep.subr.bf16.mxu0 %v1462
        %2527 = vmatpush1.bf16.msra.mxu0 %v1461
        %2528 = vmatprep.subr.bf16.mxu0 %v1548
        %2529 = vmatpush1.bf16.msra.mxu0 %v1547
        %2530 = vmatprep.subr.bf16.mxu0 %v1553
        %2531 = vmatpush1.bf16.msra.mxu0 %v1552
        %2532 = vmatprep.subr.bf16.mxu0 %v1558
        %2533 = vmatpush1.bf16.msra.mxu0 %v1557
        %2534 = vmatprep.subr.bf16.mxu0 %v1563
        %2535 = vmatpush1.bf16.msra.mxu0 %v1562
        %2536 = vmatprep.subr.bf16.mxu0 %v1649
        %2537 = vmatpush1.bf16.msra.mxu0 %v1648
        %2538 = vmatprep.subr.bf16.mxu0 %v1654
        %2539 = vmatpush1.bf16.msra.mxu0 %v1653
        %2540 = vmatprep.subr.bf16.mxu0 %v1659
        %2541 = vmatpush1.bf16.msra.mxu0 %v1658
        %2542 = vmatprep.subr.bf16.mxu0 %v1664
        %2543 = vmatpush1.bf16.msra.mxu0 %v1663
        %2544 = vmatprep.mubr.bf16.mxu0 %v2245
        %2545 = vmatmul.mubr.bf16.gmra.mrb[0].mxu0 %v2244
        %v2546 = vpop.f32.mrb[0].mxu0
        %v2547 = vadd.f32 %v2143, %v2546
        %v2548 = vpop.f32.mrb[0].mxu0
        %v2549 = vadd.f32 %v2143, %v2548
        %v2550 = vpop.f32.mrb[0].mxu0
        %v2551 = vadd.f32 %v2148, %v2550
        %v2552 = vpop.f32.mrb[0].mxu0
        %v2553 = vadd.f32 %v2148, %v2552
        %2554 = vmatprep.mubr.bf16.mxu0 %v2250
        %2555 = vmatmul.mubr.bf16.gmra.mrb[0].mxu0 %v2249
        %v2556 = vpop.f32.mrb[0].mxu0
        %v2557 = vadd.f32 %v2153, %v2556
        %v2558 = vpop.f32.mrb[0].mxu0
        %v2559 = vadd.f32 %v2153, %v2558
        %v2560 = vpop.f32.mrb[0].mxu0
        %v2561 = vadd.f32 %v2158, %v2560
        %v2562 = vpop.f32.mrb[0].mxu0
        %v2563 = vadd.f32 %v2158, %v2562
        %2564 = vmatprep.mubr.bf16.mxu0 %v2255
        %2565 = vmatmul.mubr.bf16.gmra.mrb[0].mxu0 %v2254
        %v2566 = vpop.f32.mrb[0].mxu0
        %v2567 = vadd.f32 %v2163, %v2566
        %v2568 = vpop.f32.mrb[0].mxu0
        %v2569 = vadd.f32 %v2163, %v2568
        %v2570 = vpop.f32.mrb[0].mxu0
        %v2571 = vadd.f32 %v2168, %v2570
        %v2572 = vpop.f32.mrb[0].mxu0
        %v2573 = vadd.f32 %v2168, %v2572
        %2574 = vmatprep.mubr.bf16.mxu0 %v2260
        %2575 = vmatmul.mubr.bf16.gmra.mrb[0].mxu0 %v2259
        %v2576 = vpop.f32.mrb[0].mxu0
        %v2577 = vadd.f32 %v2173, %v2576
        %v2578 = vpop.f32.mrb[0].mxu0
        %v2579 = vadd.f32 %v2173, %v2578
        %v2580 = vpop.f32.mrb[0].mxu0
        %v2581 = vadd.f32 %v2178, %v2580
        %v2582 = vpop.f32.mrb[0].mxu0
        %v2583 = vadd.f32 %v2178, %v2582
        %2584 = vdwg.mxu0
        %2585 = vmatprep.subr.bf16.mxu0 %v1249
        %2586 = vmatpush1.bf16.msra.mxu0 %v1248
        %2587 = vmatprep.subr.bf16.mxu0 %v1255
        %2588 = vmatpush1.bf16.msra.mxu0 %v1254
        %2589 = vmatprep.subr.bf16.mxu0 %v1261
        %2590 = vmatpush1.bf16.msra.mxu0 %v1260
        %2591 = vmatprep.subr.bf16.mxu0 %v1267
        %2592 = vmatpush1.bf16.msra.mxu0 %v1266
        %2593 = vmatprep.subr.bf16.mxu0 %v1751
        %2594 = vmatpush1.bf16.msra.mxu0 %v1750
        %2595 = vmatprep.subr.bf16.mxu0 %v1756
        %2596 = vmatpush1.bf16.msra.mxu0 %v1755
        %2597 = vmatprep.subr.bf16.mxu0 %v1761
        %2598 = vmatpush1.bf16.msra.mxu0 %v1760
        %2599 = vmatprep.subr.bf16.mxu0 %v1766
        %2600 = vmatpush1.bf16.msra.mxu0 %v1765
        %2601 = vmatprep.subr.bf16.mxu0 %v1852
        %2602 = vmatpush1.bf16.msra.mxu0 %v1851
        %2603 = vmatprep.subr.bf16.mxu0 %v1857
        %2604 = vmatpush1.bf16.msra.mxu0 %v1856
        %2605 = vmatprep.subr.bf16.mxu0 %v1862
        %2606 = vmatpush1.bf16.msra.mxu0 %v1861
        %2607 = vmatprep.subr.bf16.mxu0 %v1867
        %2608 = vmatpush1.bf16.msra.mxu0 %v1866
        %2609 = vmatprep.subr.bf16.mxu0 %v1953
        %2610 = vmatpush1.bf16.msra.mxu0 %v1952
        %2611 = vmatprep.subr.bf16.mxu0 %v1958
        %2612 = vmatpush1.bf16.msra.mxu0 %v1957
        %2613 = vmatprep.subr.bf16.mxu0 %v1963
        %2614 = vmatpush1.bf16.msra.mxu0 %v1962
        %2615 = vmatprep.subr.bf16.mxu0 %v1968
        %2616 = vmatpush1.bf16.msra.mxu0 %v1967
        %2617 = vmatprep.mubr.bf16.mxu0 %v2247
        %2618 = vmatmul.mubr.bf16.gmra.mrb[0].mxu0 %v2246
        %v2619 = vpop.f32.mrb[0].mxu0
        %v2620 = vadd.f32 %v2547, %v2619
        %v2621 = vpop.f32.mrb[0].mxu0
        %v2622 = vadd.f32 %v2549, %v2621
        %v2623 = vpop.f32.mrb[0].mxu0
        %v2624 = vadd.f32 %v2551, %v2623
        %v2625 = vpop.f32.mrb[0].mxu0
        %v2626 = vadd.f32 %v2553, %v2625
        %2627 = vmatprep.mubr.bf16.mxu0 %v2252
        %2628 = vmatmul.mubr.bf16.gmra.mrb[0].mxu0 %v2251
        %v2629 = vpop.f32.mrb[0].mxu0
        %v2630 = vadd.f32 %v2557, %v2629
        %v2631 = vpop.f32.mrb[0].mxu0
        %v2632 = vadd.f32 %v2559, %v2631
        %v2633 = vpop.f32.mrb[0].mxu0
        %v2634 = vadd.f32 %v2561, %v2633
        %v2635 = vpop.f32.mrb[0].mxu0
        %v2636 = vadd.f32 %v2563, %v2635
        %2637 = vmatprep.mubr.bf16.mxu0 %v2257
        %2638 = vmatmul.mubr.bf16.gmra.mrb[0].mxu0 %v2256
        %v2639 = vpop.f32.mrb[0].mxu0
        %v2640 = vadd.f32 %v2567, %v2639
        %v2641 = vpop.f32.mrb[0].mxu0
        %v2642 = vadd.f32 %v2569, %v2641
        %v2643 = vpop.f32.mrb[0].mxu0
        %v2644 = vadd.f32 %v2571, %v2643
        %v2645 = vpop.f32.mrb[0].mxu0
        %v2646 = vadd.f32 %v2573, %v2645
        %2647 = vmatprep.mubr.bf16.mxu0 %v2262
        %2648 = vmatmul.mubr.bf16.gmra.mrb[0].mxu0 %v2261
        %v2649 = vpop.f32.mrb[0].mxu0
        %v2650 = vadd.f32 %v2577, %v2649
        %v2651 = vpop.f32.mrb[0].mxu0
        %v2652 = vadd.f32 %v2579, %v2651
        %v2653 = vpop.f32.mrb[0].mxu0
        %v2654 = vadd.f32 %v2581, %v2653
        %v2655 = vpop.f32.mrb[0].mxu0
        %v2656 = vadd.f32 %v2583, %v2655
        %2657 = vdwg.mxu0
        %2658 = vmatprep.subr.bf16.mxu0 %v2054
        %2659 = vmatpush1.bf16.msra.mxu0 %v2053
        %2660 = vmatprep.subr.bf16.mxu0 %v2059
        %2661 = vmatpush1.bf16.msra.mxu0 %v2058
        %2662 = vmatprep.subr.bf16.mxu0 %v2064
        %2663 = vmatpush1.bf16.msra.mxu0 %v2063
        %2664 = vmatprep.subr.bf16.mxu0 %v2069
        %2665 = vmatpush1.bf16.msra.mxu0 %v2068
        %2666 = vmatprep.subr.bf16.mxu0 0
        %2667 = vmatpush1.bf16.msra.mxu0 0
        %2668 = vmatprep.subr.bf16.mxu0 0
        %2669 = vmatpush1.bf16.msra.mxu0 0
        %2670 = vmatprep.subr.bf16.mxu0 0
        %2671 = vmatpush1.bf16.msra.mxu0 0
        %2672 = vmatprep.subr.bf16.mxu0 0
        %2673 = vmatpush1.bf16.msra.mxu0 0
        %2674 = vmatprep.subr.bf16.mxu0 0
        %2675 = vmatpush1.bf16.msra.mxu0 0
        %2676 = vmatprep.subr.bf16.mxu0 0
        %2677 = vmatpush1.bf16.msra.mxu0 0
        %2678 = vmatprep.subr.bf16.mxu0 0
        %2679 = vmatpush1.bf16.msra.mxu0 0
        %2680 = vmatprep.subr.bf16.mxu0 0
        %2681 = vmatpush1.bf16.msra.mxu0 0
        %2682 = vmatprep.subr.bf16.mxu0 0
        %2683 = vmatpush1.bf16.msra.mxu0 0
        %2684 = vmatprep.subr.bf16.mxu0 0
        %2685 = vmatpush1.bf16.msra.mxu0 0
        %2686 = vmatprep.subr.bf16.mxu0 0
        %2687 = vmatpush1.bf16.msra.mxu0 0
        %2688 = vmatprep.subr.bf16.mxu0 0
        %2689 = vmatpush1.bf16.msra.mxu0 0
        %2690 = vmatprep.mubr.bf16.mxu0 0
        %2691 = vmatmul.mubr.bf16.gmra.mrb[0].mxu0 %v2282
        %v2692 = vpop.f32.mrb[0].mxu0
        %v2693 = vadd.f32 %v2620, %v2692
        %v2694 = vpop.f32.mrb[0].mxu0
        %v2695 = vadd.f32 %v2622, %v2694
        %v2696 = vpop.f32.mrb[0].mxu0
        %v2697 = vadd.f32 %v2624, %v2696
        %v2698 = vpop.f32.mrb[0].mxu0
        %v2699 = vadd.f32 %v2626, %v2698
        %2700 = vmatprep.mubr.bf16.mxu0 0
        %2701 = vmatmul.mubr.bf16.gmra.mrb[0].mxu0 %v2285
        %v2702 = vpop.f32.mrb[0].mxu0
        %v2703 = vadd.f32 %v2630, %v2702
        %v2704 = vpop.f32.mrb[0].mxu0
        %v2705 = vadd.f32 %v2632, %v2704
        %v2706 = vpop.f32.mrb[0].mxu0
        %v2707 = vadd.f32 %v2634, %v2706
        %v2708 = vpop.f32.mrb[0].mxu0
        %v2709 = vadd.f32 %v2636, %v2708
        %2710 = vmatprep.mubr.bf16.mxu0 0
        %2711 = vmatmul.mubr.bf16.gmra.mrb[0].mxu0 %v2288
        %v2712 = vpop.f32.mrb[0].mxu0
        %v2713 = vadd.f32 %v2640, %v2712
        %v2714 = vpop.f32.mrb[0].mxu0
        %v2715 = vadd.f32 %v2642, %v2714
        %v2716 = vpop.f32.mrb[0].mxu0
        %v2717 = vadd.f32 %v2644, %v2716
        %v2718 = vpop.f32.mrb[0].mxu0
        %v2719 = vadd.f32 %v2646, %v2718
        %2720 = vmatprep.mubr.bf16.mxu0 0
        %2721 = vmatmul.mubr.bf16.gmra.mrb[0].mxu0 %v2291
        %v2722 = vpop.f32.mrb[0].mxu0
        %v2723 = vadd.f32 %v2650, %v2722
        %v2724 = vpop.f32.mrb[0].mxu0
        %v2725 = vadd.f32 %v2652, %v2724
        %v2726 = vpop.f32.mrb[0].mxu0
        %v2727 = vadd.f32 %v2654, %v2726
        %v2728 = vpop.f32.mrb[0].mxu0
        %v2729 = vadd.f32 %v2656, %v2728
        %2730 = vdwg.mxu0
        %2731 = vmatprep.subr.bf16.mxu0 %v1347
        %2732 = vmatpush1.bf16.msra.mxu0 %v1346
        %2733 = vmatprep.subr.bf16.mxu0 %v1352
        %2734 = vmatpush1.bf16.msra.mxu0 %v1351
        %2735 = vmatprep.subr.bf16.mxu0 %v1357
        %2736 = vmatpush1.bf16.msra.mxu0 %v1356
        %2737 = vmatprep.subr.bf16.mxu0 %v1362
        %2738 = vmatpush1.bf16.msra.mxu0 %v1361
        %2739 = vmatprep.subr.bf16.mxu0 %v1449
        %2740 = vmatpush1.bf16.msra.mxu0 %v1448
        %2741 = vmatprep.subr.bf16.mxu0 %v1454
        %2742 = vmatpush1.bf16.msra.mxu0 %v1453
        %2743 = vmatprep.subr.bf16.mxu0 %v1459
        %2744 = vmatpush1.bf16.msra.mxu0 %v1458
        %2745 = vmatprep.subr.bf16.mxu0 %v1464
        %2746 = vmatpush1.bf16.msra.mxu0 %v1463
        %2747 = vmatprep.subr.bf16.mxu0 %v1550
        %2748 = vmatpush1.bf16.msra.mxu0 %v1549
        %2749 = vmatprep.subr.bf16.mxu0 %v1555
        %2750 = vmatpush1.bf16.msra.mxu0 %v1554
        %2751 = vmatprep.subr.bf16.mxu0 %v1560
        %2752 = vmatpush1.bf16.msra.mxu0 %v1559
        %2753 = vmatprep.subr.bf16.mxu0 %v1565
        %2754 = vmatpush1.bf16.msra.mxu0 %v1564
        %2755 = vmatprep.subr.bf16.mxu0 %v1651
        %2756 = vmatpush1.bf16.msra.mxu0 %v1650
        %2757 = vmatprep.subr.bf16.mxu0 %v1656
        %2758 = vmatpush1.bf16.msra.mxu0 %v1655
        %2759 = vmatprep.subr.bf16.mxu0 %v1661
        %2760 = vmatpush1.bf16.msra.mxu0 %v1660
        %2761 = vmatprep.subr.bf16.mxu0 %v1666
        %2762 = vmatpush1.bf16.msra.mxu0 %v1665
        %2763 = vmatprep.mubr.bf16.mxu0 %v2245
        %2764 = vmatmul.mubr.bf16.gmra.mrb[0].mxu0 %v2244
        %v2765 = vpop.f32.mrb[0].mxu0
        %v2766 = vadd.f32 %v2143, %v2765
        %v2767 = vpop.f32.mrb[0].mxu0
        %v2768 = vadd.f32 %v2143, %v2767
        %v2769 = vpop.f32.mrb[0].mxu0
        %v2770 = vadd.f32 %v2148, %v2769
        %v2771 = vpop.f32.mrb[0].mxu0
        %v2772 = vadd.f32 %v2148, %v2771
        %2773 = vmatprep.mubr.bf16.mxu0 %v2250
        %2774 = vmatmul.mubr.bf16.gmra.mrb[0].mxu0 %v2249
        %v2775 = vpop.f32.mrb[0].mxu0
        %v2776 = vadd.f32 %v2153, %v2775
        %v2777 = vpop.f32.mrb[0].mxu0
        %v2778 = vadd.f32 %v2153, %v2777
        %v2779 = vpop.f32.mrb[0].mxu0
        %v2780 = vadd.f32 %v2158, %v2779
        %v2781 = vpop.f32.mrb[0].mxu0
        %v2782 = vadd.f32 %v2158, %v2781
        %2783 = vmatprep.mubr.bf16.mxu0 %v2255
        %2784 = vmatmul.mubr.bf16.gmra.mrb[0].mxu0 %v2254
        %v2785 = vpop.f32.mrb[0].mxu0
        %v2786 = vadd.f32 %v2163, %v2785
        %v2787 = vpop.f32.mrb[0].mxu0
        %v2788 = vadd.f32 %v2163, %v2787
        %v2789 = vpop.f32.mrb[0].mxu0
        %v2790 = vadd.f32 %v2168, %v2789
        %v2791 = vpop.f32.mrb[0].mxu0
        %v2792 = vadd.f32 %v2168, %v2791
        %2793 = vmatprep.mubr.bf16.mxu0 %v2260
        %2794 = vmatmul.mubr.bf16.gmra.mrb[0].mxu0 %v2259
        %v2795 = vpop.f32.mrb[0].mxu0
        %v2796 = vadd.f32 %v2173, %v2795
        %v2797 = vpop.f32.mrb[0].mxu0
        %v2798 = vadd.f32 %v2173, %v2797
        %v2799 = vpop.f32.mrb[0].mxu0
        %v2800 = vadd.f32 %v2178, %v2799
        %v2801 = vpop.f32.mrb[0].mxu0
        %v2802 = vadd.f32 %v2178, %v2801
        %2803 = vdwg.mxu0
        %2804 = vmatprep.subr.bf16.mxu0 %v1251
        %2805 = vmatpush1.bf16.msra.mxu0 %v1250
        %2806 = vmatprep.subr.bf16.mxu0 %v1257
        %2807 = vmatpush1.bf16.msra.mxu0 %v1256
        %2808 = vmatprep.subr.bf16.mxu0 %v1263
        %2809 = vmatpush1.bf16.msra.mxu0 %v1262
        %2810 = vmatprep.subr.bf16.mxu0 %v1269
        %2811 = vmatpush1.bf16.msra.mxu0 %v1268
        %2812 = vmatprep.subr.bf16.mxu0 %v1789
        %2813 = vmatpush1.bf16.msra.mxu0 %v1752
        %2814 = vmatprep.subr.bf16.mxu0 %v1792
        %2815 = vmatpush1.bf16.msra.mxu0 %v1757
        %2816 = vmatprep.subr.bf16.mxu0 %v1795
        %2817 = vmatpush1.bf16.msra.mxu0 %v1762
        %2818 = vmatprep.subr.bf16.mxu0 %v1798
        %2819 = vmatpush1.bf16.msra.mxu0 %v1767
        %2820 = vmatprep.subr.bf16.mxu0 %v1890
        %2821 = vmatpush1.bf16.msra.mxu0 %v1853
        %2822 = vmatprep.subr.bf16.mxu0 %v1893
        %2823 = vmatpush1.bf16.msra.mxu0 %v1858
        %2824 = vmatprep.subr.bf16.mxu0 %v1896
        %2825 = vmatpush1.bf16.msra.mxu0 %v1863
        %2826 = vmatprep.subr.bf16.mxu0 %v1899
        %2827 = vmatpush1.bf16.msra.mxu0 %v1868
        %2828 = vmatprep.subr.bf16.mxu0 %v1991
        %2829 = vmatpush1.bf16.msra.mxu0 %v1954
        %2830 = vmatprep.subr.bf16.mxu0 %v1994
        %2831 = vmatpush1.bf16.msra.mxu0 %v1959
        %2832 = vmatprep.subr.bf16.mxu0 %v1997
        %2833 = vmatpush1.bf16.msra.mxu0 %v1964
        %2834 = vmatprep.subr.bf16.mxu0 %v2000
        %2835 = vmatpush1.bf16.msra.mxu0 %v1969
        %2836 = vmatprep.mubr.bf16.mxu0 %v2247
        %2837 = vmatmul.mubr.bf16.gmra.mrb[0].mxu0 %v2246
        %v2838 = vpop.f32.mrb[0].mxu0
        %v2839 = vadd.f32 %v2766, %v2838
        %v2840 = vpop.f32.mrb[0].mxu0
        %v2841 = vadd.f32 %v2768, %v2840
        %v2842 = vpop.f32.mrb[0].mxu0
        %v2843 = vadd.f32 %v2770, %v2842
        %v2844 = vpop.f32.mrb[0].mxu0
        %v2845 = vadd.f32 %v2772, %v2844
        %2846 = vmatprep.mubr.bf16.mxu0 %v2252
        %2847 = vmatmul.mubr.bf16.gmra.mrb[0].mxu0 %v2251
        %v2848 = vpop.f32.mrb[0].mxu0
        %v2849 = vadd.f32 %v2776, %v2848
        %v2850 = vpop.f32.mrb[0].mxu0
        %v2851 = vadd.f32 %v2778, %v2850
        %v2852 = vpop.f32.mrb[0].mxu0
        %v2853 = vadd.f32 %v2780, %v2852
        %v2854 = vpop.f32.mrb[0].mxu0
        %v2855 = vadd.f32 %v2782, %v2854
        %2856 = vmatprep.mubr.bf16.mxu0 %v2257
        %2857 = vmatmul.mubr.bf16.gmra.mrb[0].mxu0 %v2256
        %v2858 = vpop.f32.mrb[0].mxu0
        %v2859 = vadd.f32 %v2786, %v2858
        %v2860 = vpop.f32.mrb[0].mxu0
        %v2861 = vadd.f32 %v2788, %v2860
        %v2862 = vpop.f32.mrb[0].mxu0
        %v2863 = vadd.f32 %v2790, %v2862
        %v2864 = vpop.f32.mrb[0].mxu0
        %v2865 = vadd.f32 %v2792, %v2864
        %2866 = vmatprep.mubr.bf16.mxu0 %v2262
        %2867 = vmatmul.mubr.bf16.gmra.mrb[0].mxu0 %v2261
        %v2868 = vpop.f32.mrb[0].mxu0
        %v2869 = vadd.f32 %v2796, %v2868
        %v2870 = vpop.f32.mrb[0].mxu0
        %v2871 = vadd.f32 %v2798, %v2870
        %v2872 = vpop.f32.mrb[0].mxu0
        %v2873 = vadd.f32 %v2800, %v2872
        %v2874 = vpop.f32.mrb[0].mxu0
        %v2875 = vadd.f32 %v2802, %v2874
        %2876 = vdwg.mxu0
        %2877 = vmatprep.subr.bf16.mxu0 %v2092
        %2878 = vmatpush1.bf16.msra.mxu0 %v2055
        %2879 = vmatprep.subr.bf16.mxu0 %v2095
        %2880 = vmatpush1.bf16.msra.mxu0 %v2060
        %2881 = vmatprep.subr.bf16.mxu0 %v2098
        %2882 = vmatpush1.bf16.msra.mxu0 %v2065
        %2883 = vmatprep.subr.bf16.mxu0 %v2101
        %2884 = vmatpush1.bf16.msra.mxu0 %v2070
        %2885 = vmatprep.subr.bf16.mxu0 0
        %2886 = vmatpush1.bf16.msra.mxu0 0
        %2887 = vmatprep.subr.bf16.mxu0 0
        %2888 = vmatpush1.bf16.msra.mxu0 0
        %2889 = vmatprep.subr.bf16.mxu0 0
        %2890 = vmatpush1.bf16.msra.mxu0 0
        %2891 = vmatprep.subr.bf16.mxu0 0
        %2892 = vmatpush1.bf16.msra.mxu0 0
        %2893 = vmatprep.subr.bf16.mxu0 0
        %2894 = vmatpush1.bf16.msra.mxu0 0
        %2895 = vmatprep.subr.bf16.mxu0 0
        %2896 = vmatpush1.bf16.msra.mxu0 0
        %2897 = vmatprep.subr.bf16.mxu0 0
        %2898 = vmatpush1.bf16.msra.mxu0 0
        %2899 = vmatprep.subr.bf16.mxu0 0
        %2900 = vmatpush1.bf16.msra.mxu0 0
        %2901 = vmatprep.subr.bf16.mxu0 0
        %2902 = vmatpush1.bf16.msra.mxu0 0
        %2903 = vmatprep.subr.bf16.mxu0 0
        %2904 = vmatpush1.bf16.msra.mxu0 0
        %2905 = vmatprep.subr.bf16.mxu0 0
        %2906 = vmatpush1.bf16.msra.mxu0 0
        %2907 = vmatprep.subr.bf16.mxu0 0
        %2908 = vmatpush1.bf16.msra.mxu0 0
        %2909 = vmatprep.mubr.bf16.mxu0 0
        %2910 = vmatmul.mubr.bf16.gmra.mrb[0].mxu0 %v2282
        %v2911 = vpop.f32.mrb[0].mxu0
        %v2912 = vadd.f32 %v2839, %v2911
        %v2913 = vpop.f32.mrb[0].mxu0
        %v2914 = vadd.f32 %v2841, %v2913
        %v2915 = vpop.f32.mrb[0].mxu0
        %v2916 = vadd.f32 %v2843, %v2915
        %v2917 = vpop.f32.mrb[0].mxu0
        %v2918 = vadd.f32 %v2845, %v2917
        %2919 = vmatprep.mubr.bf16.mxu0 0
        %2920 = vmatmul.mubr.bf16.gmra.mrb[0].mxu0 %v2285
        %v2921 = vpop.f32.mrb[0].mxu0
        %v2922 = vadd.f32 %v2849, %v2921
        %v2923 = vpop.f32.mrb[0].mxu0
        %v2924 = vadd.f32 %v2851, %v2923
        %v2925 = vpop.f32.mrb[0].mxu0
        %v2926 = vadd.f32 %v2853, %v2925
        %v2927 = vpop.f32.mrb[0].mxu0
        %v2928 = vadd.f32 %v2855, %v2927
        %2929 = vmatprep.mubr.bf16.mxu0 0
        %2930 = vmatmul.mubr.bf16.gmra.mrb[0].mxu0 %v2288
        %v2931 = vpop.f32.mrb[0].mxu0
        %v2932 = vadd.f32 %v2859, %v2931
        %v2933 = vpop.f32.mrb[0].mxu0
        %v2934 = vadd.f32 %v2861, %v2933
        %v2935 = vpop.f32.mrb[0].mxu0
        %v2936 = vadd.f32 %v2863, %v2935
        %v2937 = vpop.f32.mrb[0].mxu0
        %v2938 = vadd.f32 %v2865, %v2937
        %2939 = vmatprep.mubr.bf16.mxu0 0
        %2940 = vmatmul.mubr.bf16.gmra.mrb[0].mxu0 %v2291
        %v2941 = vpop.f32.mrb[0].mxu0
        %v2942 = vadd.f32 %v2869, %v2941
        %v2943 = vpop.f32.mrb[0].mxu0
        %v2944 = vadd.f32 %v2871, %v2943
        %v2945 = vpop.f32.mrb[0].mxu0
        %v2946 = vadd.f32 %v2873, %v2945
        %v2947 = vpop.f32.mrb[0].mxu0
        %v2948 = vadd.f32 %v2875, %v2947
        %2949 = vdwg.mxu0
        %v2950 = vmax.f32 %v2474, 0.0
        %v2951 = vmax.f32 %v2476, 0.0
        %v2952 = vmax.f32 %v2693, 0.0
        %v2953 = vmax.f32 %v2695, 0.0
        %v2954 = vmax.f32 %v2912, 0.0
        %v2955 = vmax.f32 %v2914, 0.0
        %v2956 = vmax.f32 %v2478, 0.0
        %v2957 = vmax.f32 %v2480, 0.0
        %v2958 = vmax.f32 %v2697, 0.0
        %v2959 = vmax.f32 %v2699, 0.0
        %v2960 = vmax.f32 %v2916, 0.0
        %v2961 = vmax.f32 %v2918, 0.0
        %v2962 = vmax.f32 %v2484, 0.0
        %v2963 = vmax.f32 %v2486, 0.0
        %v2964 = vmax.f32 %v2703, 0.0
        %v2965 = vmax.f32 %v2705, 0.0
        %v2966 = vmax.f32 %v2922, 0.0
        %v2967 = vmax.f32 %v2924, 0.0
        %v2968 = vmax.f32 %v2488, 0.0
        %v2969 = vmax.f32 %v2490, 0.0
        %v2970 = vmax.f32 %v2707, 0.0
        %v2971 = vmax.f32 %v2709, 0.0
        %v2972 = vmax.f32 %v2926, 0.0
        %v2973 = vmax.f32 %v2928, 0.0
        %v2974 = vmax.f32 %v2494, 0.0
        %v2975 = vmax.f32 %v2496, 0.0
        %v2976 = vmax.f32 %v2713, 0.0
        %v2977 = vmax.f32 %v2715, 0.0
        %v2978 = vmax.f32 %v2932, 0.0
        %v2979 = vmax.f32 %v2934, 0.0
        %v2980 = vmax.f32 %v2498, 0.0
        %v2981 = vmax.f32 %v2500, 0.0
        %v2982 = vmax.f32 %v2717, 0.0
        %v2983 = vmax.f32 %v2719, 0.0
        %v2984 = vmax.f32 %v2936, 0.0
        %v2985 = vmax.f32 %v2938, 0.0
        %v2986 = vmax.f32 %v2504, 0.0
        %v2987 = vmax.f32 %v2506, 0.0
        %v2988 = vmax.f32 %v2723, 0.0
        %v2989 = vmax.f32 %v2725, 0.0
        %v2990 = vmax.f32 %v2942, 0.0
        %v2991 = vmax.f32 %v2944, 0.0
        %v2992 = vmax.f32 %v2508, 0.0
        %v2993 = vmax.f32 %v2510, 0.0
        %v2994 = vmax.f32 %v2727, 0.0
        %v2995 = vmax.f32 %v2729, 0.0
        %v2996 = vmax.f32 %v2946, 0.0
        %v2997 = vmax.f32 %v2948, 0.0
        %v2998 = vmul.f32 %v2950, %v1116
        %v2999 = vmul.f32 %v2951, %v1120
        %v3000 = vmul.f32 %v2952, %v1124
        %v3001 = vmul.f32 %v2953, %v1128
        %v3002 = vmul.f32 %v2954, %v1132
        %v3003 = vmul.f32 %v2955, %v1136
        %v3004 = vmul.f32 %v2956, %v1116
        %v3005 = vmul.f32 %v2957, %v1120
        %v3006 = vmul.f32 %v2958, %v1124
        %v3007 = vmul.f32 %v2959, %v1128
        %v3008 = vmul.f32 %v2960, %v1132
        %v3009 = vmul.f32 %v2961, %v1136
        %v3010 = vmul.f32 %v2962, %v1116
        %v3011 = vmul.f32 %v2963, %v1120
        %v3012 = vmul.f32 %v2964, %v1124
        %v3013 = vmul.f32 %v2965, %v1128
        %v3014 = vmul.f32 %v2966, %v1132
        %v3015 = vmul.f32 %v2967, %v1136
        %v3016 = vmul.f32 %v2968, %v1116
        %v3017 = vmul.f32 %v2969, %v1120
        %v3018 = vmul.f32 %v2970, %v1124
        %v3019 = vmul.f32 %v2971, %v1128
        %v3020 = vmul.f32 %v2972, %v1132
        %v3021 = vmul.f32 %v2973, %v1136
        %v3022 = vmul.f32 %v2974, %v1116
        %v3023 = vmul.f32 %v2975, %v1120
        %v3024 = vmul.f32 %v2976, %v1124
        %v3025 = vmul.f32 %v2977, %v1128
        %v3026 = vmul.f32 %v2978, %v1132
        %v3027 = vmul.f32 %v2979, %v1136
        %v3028 = vmul.f32 %v2980, %v1116
        %v3029 = vmul.f32 %v2981, %v1120
        %v3030 = vmul.f32 %v2982, %v1124
        %v3031 = vmul.f32 %v2983, %v1128
        %v3032 = vmul.f32 %v2984, %v1132
        %v3033 = vmul.f32 %v2985, %v1136
        %v3034 = vmul.f32 %v2986, %v1116
        %v3035 = vmul.f32 %v2987, %v1120
        %v3036 = vmul.f32 %v2988, %v1124
        %v3037 = vmul.f32 %v2989, %v1128
        %v3038 = vmul.f32 %v2990, %v1132
        %v3039 = vmul.f32 %v2991, %v1136
        %v3040 = vmul.f32 %v2992, %v1116
        %v3041 = vmul.f32 %v2993, %v1120
        %v3042 = vmul.f32 %v2994, %v1124
        %v3043 = vmul.f32 %v2995, %v1128
        %v3044 = vmul.f32 %v2996, %v1132
        %v3045 = vmul.f32 %v2997, %v1136
        %v3046 = vpack.c.bf16 %v3004, %v2998
        %v3047 = vpack.c.bf16 %v3005, %v2999
        %v3048 = vpack.c.bf16 %v3006, %v3000
        %v3049 = vpack.c.bf16 %v3007, %v3001
        %v3050 = vpack.c.bf16 %v3008, %v3002
        %v3051 = vpack.c.bf16 %v3009, %v3003
        %v3052 = vpack.c.bf16 %v3016, %v3010
        %v3053 = vpack.c.bf16 %v3017, %v3011
        %v3054 = vpack.c.bf16 %v3018, %v3012
        %v3055 = vpack.c.bf16 %v3019, %v3013
        %v3056 = vpack.c.bf16 %v3020, %v3014
        %v3057 = vpack.c.bf16 %v3021, %v3015
        %v3058 = vpack.c.bf16 %v3028, %v3022
        %v3059 = vpack.c.bf16 %v3029, %v3023
        %v3060 = vpack.c.bf16 %v3030, %v3024
        %v3061 = vpack.c.bf16 %v3031, %v3025
        %v3062 = vpack.c.bf16 %v3032, %v3026
        %v3063 = vpack.c.bf16 %v3033, %v3027
        %v3064 = vpack.c.bf16 %v3040, %v3034
        %v3065 = vpack.c.bf16 %v3041, %v3035
        %v3066 = vpack.c.bf16 %v3042, %v3036
        %v3067 = vpack.c.bf16 %v3043, %v3037
        %v3068 = vpack.c.bf16 %v3044, %v3038
        %v3069 = vpack.c.bf16 %v3045, %v3039
        %s3070 = scalar_lea.vmem [#allocation2], 192
        %3071 = vst [vmem:[%s3070] sm:$0xff] %v3046
        %3072 = vst [vmem:[%s3070 + $0x8] sm:$0xff] %v3047
        %3073 = vst [vmem:[%s3070 + $0x10] sm:$0xff] %v3048
        %3074 = vst [vmem:[%s3070 + $0x18] sm:$0xff] %v3049
        %3075 = vst [vmem:[%s3070 + $0x20] sm:$0xff] %v3050
        %3076 = vst [vmem:[%s3070 + $0x28] sm:$0xff] %v3051
        %3077 = vst [vmem:[%s3070 + $0x30] sm:$0xff] %v3052
        %3078 = vst [vmem:[%s3070 + $0x38] sm:$0xff] %v3053
        %3079 = vst [vmem:[%s3070 + $0x40] sm:$0xff] %v3054
        %3080 = vst [vmem:[%s3070 + $0x48] sm:$0xff] %v3055
        %3081 = vst [vmem:[%s3070 + $0x50] sm:$0xff] %v3056
        %3082 = vst [vmem:[%s3070 + $0x58] sm:$0xff] %v3057
        %3083 = vst [vmem:[%s3070 + $0x60] sm:$0xff] %v3058
        %3084 = vst [vmem:[%s3070 + $0x68] sm:$0xff] %v3059
        %3085 = vst [vmem:[%s3070 + $0x70] sm:$0xff] %v3060
        %3086 = vst [vmem:[%s3070 + $0x78] sm:$0xff] %v3061
        %3087 = vst [vmem:[%s3070 + $0x80] sm:$0xff] %v3062
        %3088 = vst [vmem:[%s3070 + $0x88] sm:$0xff] %v3063
        %3089 = vst [vmem:[%s3070 + $0x90] sm:$0xff] %v3064
        %3090 = vst [vmem:[%s3070 + $0x98] sm:$0xff] %v3065
        %3091 = vst [vmem:[%s3070 + $0xa0] sm:$0xff] %v3066
        %3092 = vst [vmem:[%s3070 + $0xa8] sm:$0xff] %v3067
        %3093 = vst [vmem:[%s3070 + $0xb0] sm:$0xff] %v3068
        %3094 = vst [vmem:[%s3070 + $0xb8] sm:$0xff] %v3069
        %s3095 = sadd.s32 %s1245, 1
        %v3096 = vld [vmem:[%s3070] sm:$0xff]
        %v3097 = vld [vmem:[%s3070 + $0x8] sm:$0xff]
        %v3098 = vld [vmem:[%s3070 + $0x10] sm:$0xff]
        %v3099 = vld [vmem:[%s3070 + $0x18] sm:$0xff]
        %v3100 = vld [vmem:[%s3070 + $0x20] sm:$0xff]
        %v3101 = vld [vmem:[%s3070 + $0x28] sm:$0xff]
        %v3102 = vld [vmem:[%s3070 + $0x30] sm:$0xff]
        %v3103 = vld [vmem:[%s3070 + $0x38] sm:$0xff]
        %v3104 = vld [vmem:[%s3070 + $0x40] sm:$0xff]
        %v3105 = vld [vmem:[%s3070 + $0x48] sm:$0xff]
        %v3106 = vld [vmem:[%s3070 + $0x50] sm:$0xff]
        %v3107 = vld [vmem:[%s3070 + $0x58] sm:$0xff]
        %v3108 = vld [vmem:[%s3070 + $0x60] sm:$0xff]
        %v3109 = vld [vmem:[%s3070 + $0x68] sm:$0xff]
        %v3110 = vld [vmem:[%s3070 + $0x70] sm:$0xff]
        %v3111 = vld [vmem:[%s3070 + $0x78] sm:$0xff]
        %v3112 = vld [vmem:[%s3070 + $0x80] sm:$0xff]
        %v3113 = vld [vmem:[%s3070 + $0x88] sm:$0xff]
        %v3114 = vld [vmem:[%s3070 + $0x90] sm:$0xff]
        %v3115 = vld [vmem:[%s3070 + $0x98] sm:$0xff]
        %v3116 = vld [vmem:[%s3070 + $0xa0] sm:$0xff]
        %v3117 = vld [vmem:[%s3070 + $0xa8] sm:$0xff]
        %v3118 = vld [vmem:[%s3070 + $0xb0] sm:$0xff]
        %v3119 = vld [vmem:[%s3070 + $0xb8] sm:$0xff]
        %3144 = vrot.lane.b32.xlu0 %v3096, 19
        %v3145 = vpop.permute.xlu0 %3144
        %3146 = vrot.lane.b32.xlu0 %v3097, 19
        %v3147 = vpop.permute.xlu0 %3146
        %3148 = vrot.lane.b32.xlu0 %v3098, 19
        %v3149 = vpop.permute.xlu0 %3148
        %3150 = vrot.lane.b32.xlu0 %v3099, 19
        %v3151 = vpop.permute.xlu0 %3150
        %3152 = vrot.lane.b32.xlu0 %v3100, 19
        %v3153 = vpop.permute.xlu0 %3152
        %3154 = vrot.lane.b32.xlu0 %v3101, 19
        %v3155 = vpop.permute.xlu0 %3154
        %3156 = vrot.lane.b32.xlu0 %v3102, 19
        %v3157 = vpop.permute.xlu0 %3156
        %3158 = vrot.lane.b32.xlu0 %v3103, 19
        %v3159 = vpop.permute.xlu0 %3158
        %3160 = vrot.lane.b32.xlu0 %v3104, 19
        %v3161 = vpop.permute.xlu0 %3160
        %3162 = vrot.lane.b32.xlu0 %v3105, 19
        %v3163 = vpop.permute.xlu0 %3162
        %3164 = vrot.lane.b32.xlu0 %v3106, 19
        %v3165 = vpop.permute.xlu0 %3164
        %3166 = vrot.lane.b32.xlu0 %v3107, 19
        %v3167 = vpop.permute.xlu0 %3166
        %3168 = vrot.lane.b32.xlu0 %v3108, 19
        %v3169 = vpop.permute.xlu0 %3168
        %3170 = vrot.lane.b32.xlu0 %v3109, 19
        %v3171 = vpop.permute.xlu0 %3170
        %3172 = vrot.lane.b32.xlu0 %v3110, 19
        %v3173 = vpop.permute.xlu0 %3172
        %3174 = vrot.lane.b32.xlu0 %v3111, 19
        %v3175 = vpop.permute.xlu0 %3174
        %3176 = vrot.lane.b32.xlu0 %v3112, 19
        %v3177 = vpop.permute.xlu0 %3176
        %3178 = vrot.lane.b32.xlu0 %v3113, 19
        %v3179 = vpop.permute.xlu0 %3178
        %3180 = vrot.lane.b32.xlu0 %v3114, 19
        %v3181 = vpop.permute.xlu0 %3180
        %3182 = vrot.lane.b32.xlu0 %v3115, 19
        %v3183 = vpop.permute.xlu0 %3182
        %3184 = vrot.lane.b32.xlu0 %v3116, 19
        %v3185 = vpop.permute.xlu0 %3184
        %3186 = vrot.lane.b32.xlu0 %v3117, 19
        %v3187 = vpop.permute.xlu0 %3186
        %3188 = vrot.lane.b32.xlu0 %v3118, 19
        %v3189 = vpop.permute.xlu0 %3188
        %3190 = vrot.lane.b32.xlu0 %v3119, 19
        %v3191 = vpop.permute.xlu0 %3190
        %v3192 = vsel %vm1342, %v3145, %v3147
        %v3193 = vsel %vm1342, %v3147, %v3149
        %v3194 = vsel %vm1342, %v3149, %v3151
        %v3195 = vsel %vm1342, %v3151, %v3153
        %v3196 = vsel %vm1342, %v3153, %v3155
        %v3197 = vsel %vm1342, %v3157, %v3159
        %v3198 = vsel %vm1342, %v3159, %v3161
        %v3199 = vsel %vm1342, %v3161, %v3163
        %v3200 = vsel %vm1342, %v3163, %v3165
        %v3201 = vsel %vm1342, %v3165, %v3167
        %v3202 = vsel %vm1342, %v3169, %v3171
        %v3203 = vsel %vm1342, %v3171, %v3173
        %v3204 = vsel %vm1342, %v3173, %v3175
        %v3205 = vsel %vm1342, %v3175, %v3177
        %v3206 = vsel %vm1342, %v3177, %v3179
        %v3207 = vsel %vm1342, %v3181, %v3183
        %v3208 = vsel %vm1342, %v3183, %v3185
        %v3209 = vsel %vm1342, %v3185, %v3187
        %v3210 = vsel %vm1342, %v3187, %v3189
        %v3211 = vsel %vm1342, %v3189, %v3191
        %v3233 = vsel %vm395, 0, %v3145
        %v3236 = vsel %vm395, 0, %v3157
        %v3239 = vsel %vm395, 0, %v3169
        %v3242 = vsel %vm395, 0, %v3181
        %3244 = vrot.lane.b32.xlu0 %v3096, 18
        %v3245 = vpop.permute.xlu0 %3244
        %3246 = vrot.lane.b32.xlu0 %v3097, 18
        %v3247 = vpop.permute.xlu0 %3246
        %3248 = vrot.lane.b32.xlu0 %v3098, 18
        %v3249 = vpop.permute.xlu0 %3248
        %3250 = vrot.lane.b32.xlu0 %v3099, 18
        %v3251 = vpop.permute.xlu0 %3250
        %3252 = vrot.lane.b32.xlu0 %v3100, 18
        %v3253 = vpop.permute.xlu0 %3252
        %3254 = vrot.lane.b32.xlu0 %v3101, 18
        %v3255 = vpop.permute.xlu0 %3254
        %3256 = vrot.lane.b32.xlu0 %v3102, 18
        %v3257 = vpop.permute.xlu0 %3256
        %3258 = vrot.lane.b32.xlu0 %v3103, 18
        %v3259 = vpop.permute.xlu0 %3258
        %3260 = vrot.lane.b32.xlu0 %v3104, 18
        %v3261 = vpop.permute.xlu0 %3260
        %3262 = vrot.lane.b32.xlu0 %v3105, 18
        %v3263 = vpop.permute.xlu0 %3262
        %3264 = vrot.lane.b32.xlu0 %v3106, 18
        %v3265 = vpop.permute.xlu0 %3264
        %3266 = vrot.lane.b32.xlu0 %v3107, 18
        %v3267 = vpop.permute.xlu0 %3266
        %3268 = vrot.lane.b32.xlu0 %v3108, 18
        %v3269 = vpop.permute.xlu0 %3268
        %3270 = vrot.lane.b32.xlu0 %v3109, 18
        %v3271 = vpop.permute.xlu0 %3270
        %3272 = vrot.lane.b32.xlu0 %v3110, 18
        %v3273 = vpop.permute.xlu0 %3272
        %3274 = vrot.lane.b32.xlu0 %v3111, 18
        %v3275 = vpop.permute.xlu0 %3274
        %3276 = vrot.lane.b32.xlu0 %v3112, 18
        %v3277 = vpop.permute.xlu0 %3276
        %3278 = vrot.lane.b32.xlu0 %v3113, 18
        %v3279 = vpop.permute.xlu0 %3278
        %3280 = vrot.lane.b32.xlu0 %v3114, 18
        %v3281 = vpop.permute.xlu0 %3280
        %3282 = vrot.lane.b32.xlu0 %v3115, 18
        %v3283 = vpop.permute.xlu0 %3282
        %3284 = vrot.lane.b32.xlu0 %v3116, 18
        %v3285 = vpop.permute.xlu0 %3284
        %3286 = vrot.lane.b32.xlu0 %v3117, 18
        %v3287 = vpop.permute.xlu0 %3286
        %3288 = vrot.lane.b32.xlu0 %v3118, 18
        %v3289 = vpop.permute.xlu0 %3288
        %3290 = vrot.lane.b32.xlu0 %v3119, 18
        %v3291 = vpop.permute.xlu0 %3290
        %v3292 = vsel %vm1444, %v3245, %v3247
        %v3293 = vsel %vm1444, %v3247, %v3249
        %v3294 = vsel %vm1444, %v3249, %v3251
        %v3295 = vsel %vm1444, %v3251, %v3253
        %v3296 = vsel %vm1444, %v3253, %v3255
        %v3297 = vsel %vm1444, %v3257, %v3259
        %v3298 = vsel %vm1444, %v3259, %v3261
        %v3299 = vsel %vm1444, %v3261, %v3263
        %v3300 = vsel %vm1444, %v3263, %v3265
        %v3301 = vsel %vm1444, %v3265, %v3267
        %v3302 = vsel %vm1444, %v3269, %v3271
        %v3303 = vsel %vm1444, %v3271, %v3273
        %v3304 = vsel %vm1444, %v3273, %v3275
        %v3305 = vsel %vm1444, %v3275, %v3277
        %v3306 = vsel %vm1444, %v3277, %v3279
        %v3307 = vsel %vm1444, %v3281, %v3283
        %v3308 = vsel %vm1444, %v3283, %v3285
        %v3309 = vsel %vm1444, %v3285, %v3287
        %v3310 = vsel %vm1444, %v3287, %v3289
        %v3311 = vsel %vm1444, %v3289, %v3291
        %v3333 = vsel %vm420, 0, %v3245
        %v3336 = vsel %vm420, 0, %v3257
        %v3339 = vsel %vm420, 0, %v3269
        %v3342 = vsel %vm420, 0, %v3281
        %3344 = vrot.lane.b32.xlu0 %v3096, 17
        %v3345 = vpop.permute.xlu0 %3344
        %3346 = vrot.lane.b32.xlu0 %v3097, 17
        %v3347 = vpop.permute.xlu0 %3346
        %3348 = vrot.lane.b32.xlu0 %v3098, 17
        %v3349 = vpop.permute.xlu0 %3348
        %3350 = vrot.lane.b32.xlu0 %v3099, 17
        %v3351 = vpop.permute.xlu0 %3350
        %3352 = vrot.lane.b32.xlu0 %v3100, 17
        %v3353 = vpop.permute.xlu0 %3352
        %3354 = vrot.lane.b32.xlu0 %v3101, 17
        %v3355 = vpop.permute.xlu0 %3354
        %3356 = vrot.lane.b32.xlu0 %v3102, 17
        %v3357 = vpop.permute.xlu0 %3356
        %3358 = vrot.lane.b32.xlu0 %v3103, 17
        %v3359 = vpop.permute.xlu0 %3358
        %3360 = vrot.lane.b32.xlu0 %v3104, 17
        %v3361 = vpop.permute.xlu0 %3360
        %3362 = vrot.lane.b32.xlu0 %v3105, 17
        %v3363 = vpop.permute.xlu0 %3362
        %3364 = vrot.lane.b32.xlu0 %v3106, 17
        %v3365 = vpop.permute.xlu0 %3364
        %3366 = vrot.lane.b32.xlu0 %v3107, 17
        %v3367 = vpop.permute.xlu0 %3366
        %3368 = vrot.lane.b32.xlu0 %v3108, 17
        %v3369 = vpop.permute.xlu0 %3368
        %3370 = vrot.lane.b32.xlu0 %v3109, 17
        %v3371 = vpop.permute.xlu0 %3370
        %3372 = vrot.lane.b32.xlu0 %v3110, 17
        %v3373 = vpop.permute.xlu0 %3372
        %3374 = vrot.lane.b32.xlu0 %v3111, 17
        %v3375 = vpop.permute.xlu0 %3374
        %3376 = vrot.lane.b32.xlu0 %v3112, 17
        %v3377 = vpop.permute.xlu0 %3376
        %3378 = vrot.lane.b32.xlu0 %v3113, 17
        %v3379 = vpop.permute.xlu0 %3378
        %3380 = vrot.lane.b32.xlu0 %v3114, 17
        %v3381 = vpop.permute.xlu0 %3380
        %3382 = vrot.lane.b32.xlu0 %v3115, 17
        %v3383 = vpop.permute.xlu0 %3382
        %3384 = vrot.lane.b32.xlu0 %v3116, 17
        %v3385 = vpop.permute.xlu0 %3384
        %3386 = vrot.lane.b32.xlu0 %v3117, 17
        %v3387 = vpop.permute.xlu0 %3386
        %3388 = vrot.lane.b32.xlu0 %v3118, 17
        %v3389 = vpop.permute.xlu0 %3388
        %3390 = vrot.lane.b32.xlu0 %v3119, 17
        %v3391 = vpop.permute.xlu0 %3390
        %v3392 = vsel %vm1545, %v3345, %v3347
        %v3393 = vsel %vm1545, %v3347, %v3349
        %v3394 = vsel %vm1545, %v3349, %v3351
        %v3395 = vsel %vm1545, %v3351, %v3353
        %v3396 = vsel %vm1545, %v3353, %v3355
        %v3397 = vsel %vm1545, %v3357, %v3359
        %v3398 = vsel %vm1545, %v3359, %v3361
        %v3399 = vsel %vm1545, %v3361, %v3363
        %v3400 = vsel %vm1545, %v3363, %v3365
        %v3401 = vsel %vm1545, %v3365, %v3367
        %v3402 = vsel %vm1545, %v3369, %v3371
        %v3403 = vsel %vm1545, %v3371, %v3373
        %v3404 = vsel %vm1545, %v3373, %v3375
        %v3405 = vsel %vm1545, %v3375, %v3377
        %v3406 = vsel %vm1545, %v3377, %v3379
        %v3407 = vsel %vm1545, %v3381, %v3383
        %v3408 = vsel %vm1545, %v3383, %v3385
        %v3409 = vsel %vm1545, %v3385, %v3387
        %v3410 = vsel %vm1545, %v3387, %v3389
        %v3411 = vsel %vm1545, %v3389, %v3391
        %v3433 = vsel %vm440, 0, %v3345
        %v3436 = vsel %vm440, 0, %v3357
        %v3439 = vsel %vm440, 0, %v3369
        %v3442 = vsel %vm440, 0, %v3381
        %3444 = vrot.lane.b32.xlu0 %v3096, 1
        %v3445 = vpop.permute.xlu0 %3444
        %3446 = vrot.lane.b32.xlu0 %v3097, 1
        %v3447 = vpop.permute.xlu0 %3446
        %3448 = vrot.lane.b32.xlu0 %v3098, 1
        %v3449 = vpop.permute.xlu0 %3448
        %3450 = vrot.lane.b32.xlu0 %v3099, 1
        %v3451 = vpop.permute.xlu0 %3450
        %3452 = vrot.lane.b32.xlu0 %v3100, 1
        %v3453 = vpop.permute.xlu0 %3452
        %3454 = vrot.lane.b32.xlu0 %v3101, 1
        %v3455 = vpop.permute.xlu0 %3454
        %3456 = vrot.lane.b32.xlu0 %v3102, 1
        %v3457 = vpop.permute.xlu0 %3456
        %3458 = vrot.lane.b32.xlu0 %v3103, 1
        %v3459 = vpop.permute.xlu0 %3458
        %3460 = vrot.lane.b32.xlu0 %v3104, 1
        %v3461 = vpop.permute.xlu0 %3460
        %3462 = vrot.lane.b32.xlu0 %v3105, 1
        %v3463 = vpop.permute.xlu0 %3462
        %3464 = vrot.lane.b32.xlu0 %v3106, 1
        %v3465 = vpop.permute.xlu0 %3464
        %3466 = vrot.lane.b32.xlu0 %v3107, 1
        %v3467 = vpop.permute.xlu0 %3466
        %3468 = vrot.lane.b32.xlu0 %v3108, 1
        %v3469 = vpop.permute.xlu0 %3468
        %3470 = vrot.lane.b32.xlu0 %v3109, 1
        %v3471 = vpop.permute.xlu0 %3470
        %3472 = vrot.lane.b32.xlu0 %v3110, 1
        %v3473 = vpop.permute.xlu0 %3472
        %3474 = vrot.lane.b32.xlu0 %v3111, 1
        %v3475 = vpop.permute.xlu0 %3474
        %3476 = vrot.lane.b32.xlu0 %v3112, 1
        %v3477 = vpop.permute.xlu0 %3476
        %3478 = vrot.lane.b32.xlu0 %v3113, 1
        %v3479 = vpop.permute.xlu0 %3478
        %3480 = vrot.lane.b32.xlu0 %v3114, 1
        %v3481 = vpop.permute.xlu0 %3480
        %3482 = vrot.lane.b32.xlu0 %v3115, 1
        %v3483 = vpop.permute.xlu0 %3482
        %3484 = vrot.lane.b32.xlu0 %v3116, 1
        %v3485 = vpop.permute.xlu0 %3484
        %3486 = vrot.lane.b32.xlu0 %v3117, 1
        %v3487 = vpop.permute.xlu0 %3486
        %3488 = vrot.lane.b32.xlu0 %v3118, 1
        %v3489 = vpop.permute.xlu0 %3488
        %3490 = vrot.lane.b32.xlu0 %v3119, 1
        %v3491 = vpop.permute.xlu0 %3490
        %v3492 = vsel %vm1646, %v3445, %v3447
        %v3493 = vsel %vm1646, %v3447, %v3449
        %v3494 = vsel %vm1646, %v3449, %v3451
        %v3495 = vsel %vm1646, %v3451, %v3453
        %v3496 = vsel %vm1646, %v3453, %v3455
        %v3497 = vsel %vm1646, %v3457, %v3459
        %v3498 = vsel %vm1646, %v3459, %v3461
        %v3499 = vsel %vm1646, %v3461, %v3463
        %v3500 = vsel %vm1646, %v3463, %v3465
        %v3501 = vsel %vm1646, %v3465, %v3467
        %v3502 = vsel %vm1646, %v3469, %v3471
        %v3503 = vsel %vm1646, %v3471, %v3473
        %v3504 = vsel %vm1646, %v3473, %v3475
        %v3505 = vsel %vm1646, %v3475, %v3477
        %v3506 = vsel %vm1646, %v3477, %v3479
        %v3507 = vsel %vm1646, %v3481, %v3483
        %v3508 = vsel %vm1646, %v3483, %v3485
        %v3509 = vsel %vm1646, %v3485, %v3487
        %v3510 = vsel %vm1646, %v3487, %v3489
        %v3511 = vsel %vm1646, %v3489, %v3491
        %v3533 = vsel %vm460, 0, %v3445
        %v3536 = vsel %vm460, 0, %v3457
        %v3539 = vsel %vm460, 0, %v3469
        %v3542 = vsel %vm460, 0, %v3481
        %3544 = vrot.lane.b32.xlu0 %v3096, 127
        %v3545 = vpop.permute.xlu0 %3544
        %3546 = vrot.lane.b32.xlu0 %v3097, 127
        %v3547 = vpop.permute.xlu0 %3546
        %3548 = vrot.lane.b32.xlu0 %v3098, 127
        %v3549 = vpop.permute.xlu0 %3548
        %3550 = vrot.lane.b32.xlu0 %v3099, 127
        %v3551 = vpop.permute.xlu0 %3550
        %3552 = vrot.lane.b32.xlu0 %v3100, 127
        %v3553 = vpop.permute.xlu0 %3552
        %3554 = vrot.lane.b32.xlu0 %v3101, 127
        %v3555 = vpop.permute.xlu0 %3554
        %3556 = vrot.lane.b32.xlu0 %v3102, 127
        %v3557 = vpop.permute.xlu0 %3556
        %3558 = vrot.lane.b32.xlu0 %v3103, 127
        %v3559 = vpop.permute.xlu0 %3558
        %3560 = vrot.lane.b32.xlu0 %v3104, 127
        %v3561 = vpop.permute.xlu0 %3560
        %3562 = vrot.lane.b32.xlu0 %v3105, 127
        %v3563 = vpop.permute.xlu0 %3562
        %3564 = vrot.lane.b32.xlu0 %v3106, 127
        %v3565 = vpop.permute.xlu0 %3564
        %3566 = vrot.lane.b32.xlu0 %v3107, 127
        %v3567 = vpop.permute.xlu0 %3566
        %3568 = vrot.lane.b32.xlu0 %v3108, 127
        %v3569 = vpop.permute.xlu0 %3568
        %3570 = vrot.lane.b32.xlu0 %v3109, 127
        %v3571 = vpop.permute.xlu0 %3570
        %3572 = vrot.lane.b32.xlu0 %v3110, 127
        %v3573 = vpop.permute.xlu0 %3572
        %3574 = vrot.lane.b32.xlu0 %v3111, 127
        %v3575 = vpop.permute.xlu0 %3574
        %3576 = vrot.lane.b32.xlu0 %v3112, 127
        %v3577 = vpop.permute.xlu0 %3576
        %3578 = vrot.lane.b32.xlu0 %v3113, 127
        %v3579 = vpop.permute.xlu0 %3578
        %3580 = vrot.lane.b32.xlu0 %v3114, 127
        %v3581 = vpop.permute.xlu0 %3580
        %3582 = vrot.lane.b32.xlu0 %v3115, 127
        %v3583 = vpop.permute.xlu0 %3582
        %3584 = vrot.lane.b32.xlu0 %v3116, 127
        %v3585 = vpop.permute.xlu0 %3584
        %3586 = vrot.lane.b32.xlu0 %v3117, 127
        %v3587 = vpop.permute.xlu0 %3586
        %3588 = vrot.lane.b32.xlu0 %v3118, 127
        %v3589 = vpop.permute.xlu0 %3588
        %3590 = vrot.lane.b32.xlu0 %v3119, 127
        %v3591 = vpop.permute.xlu0 %3590
        %v3592 = vsel %vm1747, %v3545, %v3547
        %v3593 = vsel %vm1747, %v3547, %v3549
        %v3594 = vsel %vm1747, %v3549, %v3551
        %v3595 = vsel %vm1747, %v3551, %v3553
        %v3596 = vsel %vm1747, %v3553, %v3555
        %v3597 = vsel %vm1747, %v3557, %v3559
        %v3598 = vsel %vm1747, %v3559, %v3561
        %v3599 = vsel %vm1747, %v3561, %v3563
        %v3600 = vsel %vm1747, %v3563, %v3565
        %v3601 = vsel %vm1747, %v3565, %v3567
        %v3602 = vsel %vm1747, %v3569, %v3571
        %v3603 = vsel %vm1747, %v3571, %v3573
        %v3604 = vsel %vm1747, %v3573, %v3575
        %v3605 = vsel %vm1747, %v3575, %v3577
        %v3606 = vsel %vm1747, %v3577, %v3579
        %v3607 = vsel %vm1747, %v3581, %v3583
        %v3608 = vsel %vm1747, %v3583, %v3585
        %v3609 = vsel %vm1747, %v3585, %v3587
        %v3610 = vsel %vm1747, %v3587, %v3589
        %v3611 = vsel %vm1747, %v3589, %v3591
        %v3633 = vsel %vm480, %v3555, 0
        %v3636 = vsel %vm480, %v3567, 0
        %v3639 = vsel %vm480, %v3579, 0
        %v3642 = vsel %vm480, %v3591, 0
        %3644 = vrot.lane.b32.xlu0 %v3096, 111
        %v3645 = vpop.permute.xlu0 %3644
        %3646 = vrot.lane.b32.xlu0 %v3097, 111
        %v3647 = vpop.permute.xlu0 %3646
        %3648 = vrot.lane.b32.xlu0 %v3098, 111
        %v3649 = vpop.permute.xlu0 %3648
        %3650 = vrot.lane.b32.xlu0 %v3099, 111
        %v3651 = vpop.permute.xlu0 %3650
        %3652 = vrot.lane.b32.xlu0 %v3100, 111
        %v3653 = vpop.permute.xlu0 %3652
        %3654 = vrot.lane.b32.xlu0 %v3101, 111
        %v3655 = vpop.permute.xlu0 %3654
        %3656 = vrot.lane.b32.xlu0 %v3102, 111
        %v3657 = vpop.permute.xlu0 %3656
        %3658 = vrot.lane.b32.xlu0 %v3103, 111
        %v3659 = vpop.permute.xlu0 %3658
        %3660 = vrot.lane.b32.xlu0 %v3104, 111
        %v3661 = vpop.permute.xlu0 %3660
        %3662 = vrot.lane.b32.xlu0 %v3105, 111
        %v3663 = vpop.permute.xlu0 %3662
        %3664 = vrot.lane.b32.xlu0 %v3106, 111
        %v3665 = vpop.permute.xlu0 %3664
        %3666 = vrot.lane.b32.xlu0 %v3107, 111
        %v3667 = vpop.permute.xlu0 %3666
        %3668 = vrot.lane.b32.xlu0 %v3108, 111
        %v3669 = vpop.permute.xlu0 %3668
        %3670 = vrot.lane.b32.xlu0 %v3109, 111
        %v3671 = vpop.permute.xlu0 %3670
        %3672 = vrot.lane.b32.xlu0 %v3110, 111
        %v3673 = vpop.permute.xlu0 %3672
        %3674 = vrot.lane.b32.xlu0 %v3111, 111
        %v3675 = vpop.permute.xlu0 %3674
        %3676 = vrot.lane.b32.xlu0 %v3112, 111
        %v3677 = vpop.permute.xlu0 %3676
        %3678 = vrot.lane.b32.xlu0 %v3113, 111
        %v3679 = vpop.permute.xlu0 %3678
        %3680 = vrot.lane.b32.xlu0 %v3114, 111
        %v3681 = vpop.permute.xlu0 %3680
        %3682 = vrot.lane.b32.xlu0 %v3115, 111
        %v3683 = vpop.permute.xlu0 %3682
        %3684 = vrot.lane.b32.xlu0 %v3116, 111
        %v3685 = vpop.permute.xlu0 %3684
        %3686 = vrot.lane.b32.xlu0 %v3117, 111
        %v3687 = vpop.permute.xlu0 %3686
        %3688 = vrot.lane.b32.xlu0 %v3118, 111
        %v3689 = vpop.permute.xlu0 %3688
        %3690 = vrot.lane.b32.xlu0 %v3119, 111
        %v3691 = vpop.permute.xlu0 %3690
        %v3692 = vsel %vm1848, %v3645, %v3647
        %v3693 = vsel %vm1848, %v3647, %v3649
        %v3694 = vsel %vm1848, %v3649, %v3651
        %v3695 = vsel %vm1848, %v3651, %v3653
        %v3696 = vsel %vm1848, %v3653, %v3655
        %v3697 = vsel %vm1848, %v3657, %v3659
        %v3698 = vsel %vm1848, %v3659, %v3661
        %v3699 = vsel %vm1848, %v3661, %v3663
        %v3700 = vsel %vm1848, %v3663, %v3665
        %v3701 = vsel %vm1848, %v3665, %v3667
        %v3702 = vsel %vm1848, %v3669, %v3671
        %v3703 = vsel %vm1848, %v3671, %v3673
        %v3704 = vsel %vm1848, %v3673, %v3675
        %v3705 = vsel %vm1848, %v3675, %v3677
        %v3706 = vsel %vm1848, %v3677, %v3679
        %v3707 = vsel %vm1848, %v3681, %v3683
        %v3708 = vsel %vm1848, %v3683, %v3685
        %v3709 = vsel %vm1848, %v3685, %v3687
        %v3710 = vsel %vm1848, %v3687, %v3689
        %v3711 = vsel %vm1848, %v3689, %v3691
        %v3733 = vsel %vm500, %v3655, 0
        %v3736 = vsel %vm500, %v3667, 0
        %v3739 = vsel %vm500, %v3679, 0
        %v3742 = vsel %vm500, %v3691, 0
        %3744 = vrot.lane.b32.xlu0 %v3096, 110
        %v3745 = vpop.permute.xlu0 %3744
        %3746 = vrot.lane.b32.xlu0 %v3097, 110
        %v3747 = vpop.permute.xlu0 %3746
        %3748 = vrot.lane.b32.xlu0 %v3098, 110
        %v3749 = vpop.permute.xlu0 %3748
        %3750 = vrot.lane.b32.xlu0 %v3099, 110
        %v3751 = vpop.permute.xlu0 %3750
        %3752 = vrot.lane.b32.xlu0 %v3100, 110
        %v3753 = vpop.permute.xlu0 %3752
        %3754 = vrot.lane.b32.xlu0 %v3101, 110
        %v3755 = vpop.permute.xlu0 %3754
        %3756 = vrot.lane.b32.xlu0 %v3102, 110
        %v3757 = vpop.permute.xlu0 %3756
        %3758 = vrot.lane.b32.xlu0 %v3103, 110
        %v3759 = vpop.permute.xlu0 %3758
        %3760 = vrot.lane.b32.xlu0 %v3104, 110
        %v3761 = vpop.permute.xlu0 %3760
        %3762 = vrot.lane.b32.xlu0 %v3105, 110
        %v3763 = vpop.permute.xlu0 %3762
        %3764 = vrot.lane.b32.xlu0 %v3106, 110
        %v3765 = vpop.permute.xlu0 %3764
        %3766 = vrot.lane.b32.xlu0 %v3107, 110
        %v3767 = vpop.permute.xlu0 %3766
        %3768 = vrot.lane.b32.xlu0 %v3108, 110
        %v3769 = vpop.permute.xlu0 %3768
        %3770 = vrot.lane.b32.xlu0 %v3109, 110
        %v3771 = vpop.permute.xlu0 %3770
        %3772 = vrot.lane.b32.xlu0 %v3110, 110
        %v3773 = vpop.permute.xlu0 %3772
        %3774 = vrot.lane.b32.xlu0 %v3111, 110
        %v3775 = vpop.permute.xlu0 %3774
        %3776 = vrot.lane.b32.xlu0 %v3112, 110
        %v3777 = vpop.permute.xlu0 %3776
        %3778 = vrot.lane.b32.xlu0 %v3113, 110
        %v3779 = vpop.permute.xlu0 %3778
        %3780 = vrot.lane.b32.xlu0 %v3114, 110
        %v3781 = vpop.permute.xlu0 %3780
        %3782 = vrot.lane.b32.xlu0 %v3115, 110
        %v3783 = vpop.permute.xlu0 %3782
        %3784 = vrot.lane.b32.xlu0 %v3116, 110
        %v3785 = vpop.permute.xlu0 %3784
        %3786 = vrot.lane.b32.xlu0 %v3117, 110
        %v3787 = vpop.permute.xlu0 %3786
        %3788 = vrot.lane.b32.xlu0 %v3118, 110
        %v3789 = vpop.permute.xlu0 %3788
        %3790 = vrot.lane.b32.xlu0 %v3119, 110
        %v3791 = vpop.permute.xlu0 %3790
        %v3792 = vsel %vm1949, %v3745, %v3747
        %v3793 = vsel %vm1949, %v3747, %v3749
        %v3794 = vsel %vm1949, %v3749, %v3751
        %v3795 = vsel %vm1949, %v3751, %v3753
        %v3796 = vsel %vm1949, %v3753, %v3755
        %v3797 = vsel %vm1949, %v3757, %v3759
        %v3798 = vsel %vm1949, %v3759, %v3761
        %v3799 = vsel %vm1949, %v3761, %v3763
        %v3800 = vsel %vm1949, %v3763, %v3765
        %v3801 = vsel %vm1949, %v3765, %v3767
        %v3802 = vsel %vm1949, %v3769, %v3771
        %v3803 = vsel %vm1949, %v3771, %v3773
        %v3804 = vsel %vm1949, %v3773, %v3775
        %v3805 = vsel %vm1949, %v3775, %v3777
        %v3806 = vsel %vm1949, %v3777, %v3779
        %v3807 = vsel %vm1949, %v3781, %v3783
        %v3808 = vsel %vm1949, %v3783, %v3785
        %v3809 = vsel %vm1949, %v3785, %v3787
        %v3810 = vsel %vm1949, %v3787, %v3789
        %v3811 = vsel %vm1949, %v3789, %v3791
        %v3833 = vsel %vm520, %v3755, 0
        %v3836 = vsel %vm520, %v3767, 0
        %v3839 = vsel %vm520, %v3779, 0
        %v3842 = vsel %vm520, %v3791, 0
        %3844 = vrot.lane.b32.xlu0 %v3096, 109
        %v3845 = vpop.permute.xlu0 %3844
        %3846 = vrot.lane.b32.xlu0 %v3097, 109
        %v3847 = vpop.permute.xlu0 %3846
        %3848 = vrot.lane.b32.xlu0 %v3098, 109
        %v3849 = vpop.permute.xlu0 %3848
        %3850 = vrot.lane.b32.xlu0 %v3099, 109
        %v3851 = vpop.permute.xlu0 %3850
        %3852 = vrot.lane.b32.xlu0 %v3100, 109
        %v3853 = vpop.permute.xlu0 %3852
        %3854 = vrot.lane.b32.xlu0 %v3101, 109
        %v3855 = vpop.permute.xlu0 %3854
        %3856 = vrot.lane.b32.xlu0 %v3102, 109
        %v3857 = vpop.permute.xlu0 %3856
        %3858 = vrot.lane.b32.xlu0 %v3103, 109
        %v3859 = vpop.permute.xlu0 %3858
        %3860 = vrot.lane.b32.xlu0 %v3104, 109
        %v3861 = vpop.permute.xlu0 %3860
        %3862 = vrot.lane.b32.xlu0 %v3105, 109
        %v3863 = vpop.permute.xlu0 %3862
        %3864 = vrot.lane.b32.xlu0 %v3106, 109
        %v3865 = vpop.permute.xlu0 %3864
        %3866 = vrot.lane.b32.xlu0 %v3107, 109
        %v3867 = vpop.permute.xlu0 %3866
        %3868 = vrot.lane.b32.xlu0 %v3108, 109
        %v3869 = vpop.permute.xlu0 %3868
        %3870 = vrot.lane.b32.xlu0 %v3109, 109
        %v3871 = vpop.permute.xlu0 %3870
        %3872 = vrot.lane.b32.xlu0 %v3110, 109
        %v3873 = vpop.permute.xlu0 %3872
        %3874 = vrot.lane.b32.xlu0 %v3111, 109
        %v3875 = vpop.permute.xlu0 %3874
        %3876 = vrot.lane.b32.xlu0 %v3112, 109
        %v3877 = vpop.permute.xlu0 %3876
        %3878 = vrot.lane.b32.xlu0 %v3113, 109
        %v3879 = vpop.permute.xlu0 %3878
        %3880 = vrot.lane.b32.xlu0 %v3114, 109
        %v3881 = vpop.permute.xlu0 %3880
        %3882 = vrot.lane.b32.xlu0 %v3115, 109
        %v3883 = vpop.permute.xlu0 %3882
        %3884 = vrot.lane.b32.xlu0 %v3116, 109
        %v3885 = vpop.permute.xlu0 %3884
        %3886 = vrot.lane.b32.xlu0 %v3117, 109
        %v3887 = vpop.permute.xlu0 %3886
        %3888 = vrot.lane.b32.xlu0 %v3118, 109
        %v3889 = vpop.permute.xlu0 %3888
        %3890 = vrot.lane.b32.xlu0 %v3119, 109
        %v3891 = vpop.permute.xlu0 %3890
        %v3892 = vsel %vm2050, %v3845, %v3847
        %v3893 = vsel %vm2050, %v3847, %v3849
        %v3894 = vsel %vm2050, %v3849, %v3851
        %v3895 = vsel %vm2050, %v3851, %v3853
        %v3896 = vsel %vm2050, %v3853, %v3855
        %v3897 = vsel %vm2050, %v3857, %v3859
        %v3898 = vsel %vm2050, %v3859, %v3861
        %v3899 = vsel %vm2050, %v3861, %v3863
        %v3900 = vsel %vm2050, %v3863, %v3865
        %v3901 = vsel %vm2050, %v3865, %v3867
        %v3902 = vsel %vm2050, %v3869, %v3871
        %v3903 = vsel %vm2050, %v3871, %v3873
        %v3904 = vsel %vm2050, %v3873, %v3875
        %v3905 = vsel %vm2050, %v3875, %v3877
        %v3906 = vsel %vm2050, %v3877, %v3879
        %v3907 = vsel %vm2050, %v3881, %v3883
        %v3908 = vsel %vm2050, %v3883, %v3885
        %v3909 = vsel %vm2050, %v3885, %v3887
        %v3910 = vsel %vm2050, %v3887, %v3889
        %v3911 = vsel %vm2050, %v3889, %v3891
        %v3933 = vsel %vm540, %v3855, 0
        %v3936 = vsel %vm540, %v3867, 0
        %v3939 = vsel %vm540, %v3879, 0
        %v3942 = vsel %vm540, %v3891, 0
        %s3944 = smul.u32 %s3095, 40
        %s3945 = smul.addr %s3944, 4
        %s3946 = scalar_lea.vmem %s3, %s3945
        %v3947 = vld [vmem:[%s3946] sm:$0xff]
        %v3948 = vld [vmem:[%s3946 + $0x8] sm:$0xff]
        %v3949 = vld [vmem:[%s3946 + $0x10] sm:$0xf]
        %v3950 = vld [vmem:[%s3946 + $0x14] sm:$0xff]
        %v3951 = vld [vmem:[%s3946 + $0x1c] sm:$0xff]
        %v3952 = vld [vmem:[%s3946 + $0x24] sm:$0xf]
        %v3953 = vld [vmem:[%s3946 + $0x28] sm:$0xff]
        %v3954 = vld [vmem:[%s3946 + $0x30] sm:$0xff]
        %v3955 = vld [vmem:[%s3946 + $0x38] sm:$0xf]
        %v3956 = vld [vmem:[%s3946 + $0x3c] sm:$0xff]
        %v3957 = vld [vmem:[%s3946 + $0x44] sm:$0xff]
        %v3958 = vld [vmem:[%s3946 + $0x4c] sm:$0xf]
        %v3959 = vld [vmem:[%s3946 + $0x50] sm:$0xff]
        %v3960 = vld [vmem:[%s3946 + $0x58] sm:$0xff]
        %v3961 = vld [vmem:[%s3946 + $0x60] sm:$0xf]
        %v3962 = vld [vmem:[%s3946 + $0x64] sm:$0xff]
        %v3963 = vld [vmem:[%s3946 + $0x6c] sm:$0xff]
        %v3964 = vld [vmem:[%s3946 + $0x74] sm:$0xf]
        %v3965 = vld [vmem:[%s3946 + $0x78] sm:$0xff]
        %v3966 = vld [vmem:[%s3946 + $0x80] sm:$0xff]
        %v3967 = vld [vmem:[%s3946 + $0x88] sm:$0xf]
        %v3968 = vld [vmem:[%s3946 + $0x8c] sm:$0xff]
        %v3969 = vld [vmem:[%s3946 + $0x94] sm:$0xff]
        %v3970 = vld [vmem:[%s3946 + $0x9c] sm:$0xf]
        %s3971 = smul.u32 %s3095, 64
        %s3972 = scalar_lea.vmem %s4, %s3971
        %v3973 = vld [vmem:[%s3972] sm:$0xff]
        %v3974 = vld [vmem:[%s3972 + $0x8] sm:$0xff]
        %v3975 = vld [vmem:[%s3972 + $0x10] sm:$0xff]
        %v3976 = vld [vmem:[%s3972 + $0x18] sm:$0xff]
        %v3977 = vld [vmem:[%s3972 + $0x20] sm:$0xff]
        %v3978 = vld [vmem:[%s3972 + $0x28] sm:$0xff]
        %v3979 = vld [vmem:[%s3972 + $0x30] sm:$0xff]
        %v3980 = vld [vmem:[%s3972 + $0x38] sm:$0xff]
        %3982 = vset.pattern.permute.xlu0 0
        %3983 = vperm.xlu0 %3982, %v3973
        %v3984 = vpop.permute.xlu0 %3983
        %3987 = vset.pattern.permute.xlu0 0
        %3988 = vperm.xlu0 %3987, %v3974
        %v3989 = vpop.permute.xlu0 %3988
        %3992 = vset.pattern.permute.xlu0 0
        %3993 = vperm.xlu0 %3992, %v3975
        %v3994 = vpop.permute.xlu0 %3993
        %3997 = vset.pattern.permute.xlu0 0
        %3998 = vperm.xlu0 %3997, %v3976
        %v3999 = vpop.permute.xlu0 %3998
        %4002 = vset.pattern.permute.xlu0 0
        %4003 = vperm.xlu0 %4002, %v3977
        %v4004 = vpop.permute.xlu0 %4003
        %4007 = vset.pattern.permute.xlu0 0
        %4008 = vperm.xlu0 %4007, %v3978
        %v4009 = vpop.permute.xlu0 %4008
        %4012 = vset.pattern.permute.xlu0 0
        %4013 = vperm.xlu0 %4012, %v3979
        %v4014 = vpop.permute.xlu0 %4013
        %4017 = vset.pattern.permute.xlu0 0
        %4018 = vperm.xlu0 %4017, %v3980
        %v4019 = vpop.permute.xlu0 %4018
        %v4045 = vunpack.c.l.b16 %v3947
        %v4046 = vunpack.c.h.b16 %v3947
        %v4047 = vunpack.c.l.b16 %v3948
        %v4048 = vunpack.c.h.b16 %v3948
        %v4049 = vunpack.c.l.b16 %v3949
        %v4050 = vunpack.c.l.b16 %v3950
        %v4051 = vunpack.c.h.b16 %v3950
        %v4052 = vunpack.c.l.b16 %v3951
        %v4053 = vunpack.c.h.b16 %v3951
        %v4054 = vunpack.c.l.b16 %v3952
        %v4055 = vunpack.c.l.b16 %v3953
        %v4056 = vunpack.c.h.b16 %v3953
        %v4057 = vunpack.c.l.b16 %v3954
        %v4058 = vunpack.c.h.b16 %v3954
        %v4059 = vunpack.c.l.b16 %v3955
        %v4060 = vunpack.c.l.b16 %v3956
        %v4061 = vunpack.c.h.b16 %v3956
        %v4062 = vunpack.c.l.b16 %v3957
        %v4063 = vunpack.c.h.b16 %v3957
        %v4064 = vunpack.c.l.b16 %v3958
        %v4065 = vunpack.c.l.b16 %v3959
        %v4066 = vunpack.c.h.b16 %v3959
        %v4067 = vunpack.c.l.b16 %v3960
        %v4068 = vunpack.c.h.b16 %v3960
        %v4069 = vunpack.c.l.b16 %v3961
        %v4070 = vunpack.c.l.b16 %v3962
        %v4071 = vunpack.c.h.b16 %v3962
        %v4072 = vunpack.c.l.b16 %v3963
        %v4073 = vunpack.c.h.b16 %v3963
        %v4074 = vunpack.c.l.b16 %v3964
        %v4075 = vunpack.c.l.b16 %v3965
        %v4076 = vunpack.c.h.b16 %v3965
        %v4077 = vunpack.c.l.b16 %v3966
        %v4078 = vunpack.c.h.b16 %v3966
        %v4079 = vunpack.c.l.b16 %v3967
        %v4080 = vunpack.c.l.b16 %v3968
        %v4081 = vunpack.c.h.b16 %v3968
        %v4082 = vunpack.c.l.b16 %v3969
        %v4083 = vunpack.c.h.b16 %v3969
        %v4084 = vunpack.c.l.b16 %v3970
        %v4085 = vpack.c.b16 %v4050, %v4045
        %v4086 = vpack.c.b16 %v4051, %v4046
        %v4087 = vpack.c.b16 %v4052, %v4047
        %v4088 = vpack.c.b16 %v4053, %v4048
        %v4089 = vpack.c.b16 %v4054, %v4049
        %v4090 = vpack.c.b16 %v4060, %v4055
        %v4091 = vpack.c.b16 %v4061, %v4056
        %v4092 = vpack.c.b16 %v4062, %v4057
        %v4093 = vpack.c.b16 %v4063, %v4058
        %v4094 = vpack.c.b16 %v4064, %v4059
        %v4095 = vpack.c.b16 %v4070, %v4065
        %v4096 = vpack.c.b16 %v4071, %v4066
        %v4097 = vpack.c.b16 %v4072, %v4067
        %v4098 = vpack.c.b16 %v4073, %v4068
        %v4099 = vpack.c.b16 %v4074, %v4069
        %v4100 = vpack.c.b16 %v4080, %v4075
        %v4101 = vpack.c.b16 %v4081, %v4076
        %v4102 = vpack.c.b16 %v4082, %v4077
        %v4103 = vpack.c.b16 %v4083, %v4078
        %v4104 = vpack.c.b16 %v4084, %v4079
        %v4122 = vsel %vm2280, %v4089, 0
        %v4125 = vsel %vm2280, %v4094, 0
        %v4128 = vsel %vm2280, %v4099, 0
        %v4131 = vsel %vm2280, %v4104, 0
        %4133 = vmatprep.subr.bf16.mxu0 %v3192
        %4134 = vmatpush1.bf16.msra.mxu0 %v3233
        %4135 = vmatprep.subr.bf16.mxu0 %v3197
        %4136 = vmatpush1.bf16.msra.mxu0 %v3236
        %4137 = vmatprep.subr.bf16.mxu0 %v3202
        %4138 = vmatpush1.bf16.msra.mxu0 %v3239
        %4139 = vmatprep.subr.bf16.mxu0 %v3207
        %4140 = vmatpush1.bf16.msra.mxu0 %v3242
        %4141 = vmatprep.subr.bf16.mxu0 %v3292
        %4142 = vmatpush1.bf16.msra.mxu0 %v3333
        %4143 = vmatprep.subr.bf16.mxu0 %v3297
        %4144 = vmatpush1.bf16.msra.mxu0 %v3336
        %4145 = vmatprep.subr.bf16.mxu0 %v3302
        %4146 = vmatpush1.bf16.msra.mxu0 %v3339
        %4147 = vmatprep.subr.bf16.mxu0 %v3307
        %4148 = vmatpush1.bf16.msra.mxu0 %v3342
        %4149 = vmatprep.subr.bf16.mxu0 %v3392
        %4150 = vmatpush1.bf16.msra.mxu0 %v3433
        %4151 = vmatprep.subr.bf16.mxu0 %v3397
        %4152 = vmatpush1.bf16.msra.mxu0 %v3436
        %4153 = vmatprep.subr.bf16.mxu0 %v3402
        %4154 = vmatpush1.bf16.msra.mxu0 %v3439
        %4155 = vmatprep.subr.bf16.mxu0 %v3407
        %4156 = vmatpush1.bf16.msra.mxu0 %v3442
        %4157 = vmatprep.subr.bf16.mxu0 %v3492
        %4158 = vmatpush1.bf16.msra.mxu0 %v3533
        %4159 = vmatprep.subr.bf16.mxu0 %v3497
        %4160 = vmatpush1.bf16.msra.mxu0 %v3536
        %4161 = vmatprep.subr.bf16.mxu0 %v3502
        %4162 = vmatpush1.bf16.msra.mxu0 %v3539
        %4163 = vmatprep.subr.bf16.mxu0 %v3507
        %4164 = vmatpush1.bf16.msra.mxu0 %v3542
        %4165 = vmatprep.mubr.bf16.mxu0 %v4086
        %4166 = vmatmul.mubr.bf16.gmra.mrb[0].mxu0 %v4085
        %v4167 = vpop.f32.mrb[0].mxu0
        %v4168 = vadd.f32 %v3984, %v4167
        %v4169 = vpop.f32.mrb[0].mxu0
        %v4170 = vadd.f32 %v3984, %v4169
        %v4171 = vpop.f32.mrb[0].mxu0
        %v4172 = vadd.f32 %v3989, %v4171
        %v4173 = vpop.f32.mrb[0].mxu0
        %v4174 = vadd.f32 %v3989, %v4173
        %4175 = vmatprep.mubr.bf16.mxu0 %v4091
        %4176 = vmatmul.mubr.bf16.gmra.mrb[0].mxu0 %v4090
        %v4177 = vpop.f32.mrb[0].mxu0
        %v4178 = vadd.f32 %v3994, %v4177
        %v4179 = vpop.f32.mrb[0].mxu0
        %v4180 = vadd.f32 %v3994, %v4179
        %v4181 = vpop.f32.mrb[0].mxu0
        %v4182 = vadd.f32 %v3999, %v4181
        %v4183 = vpop.f32.mrb[0].mxu0
        %v4184 = vadd.f32 %v3999, %v4183
        %4185 = vmatprep.mubr.bf16.mxu0 %v4096
        %4186 = vmatmul.mubr.bf16.gmra.mrb[0].mxu0 %v4095
        %v4187 = vpop.f32.mrb[0].mxu0
        %v4188 = vadd.f32 %v4004, %v4187
        %v4189 = vpop.f32.mrb[0].mxu0
        %v4190 = vadd.f32 %v4004, %v4189
        %v4191 = vpop.f32.mrb[0].mxu0
        %v4192 = vadd.f32 %v4009, %v4191
        %v4193 = vpop.f32.mrb[0].mxu0
        %v4194 = vadd.f32 %v4009, %v4193
        %4195 = vmatprep.mubr.bf16.mxu0 %v4101
        %4196 = vmatmul.mubr.bf16.gmra.mrb[0].mxu0 %v4100
        %v4197 = vpop.f32.mrb[0].mxu0
        %v4198 = vadd.f32 %v4014, %v4197
        %v4199 = vpop.f32.mrb[0].mxu0
        %v4200 = vadd.f32 %v4014, %v4199
        %v4201 = vpop.f32.mrb[0].mxu0
        %v4202 = vadd.f32 %v4019, %v4201
        %v4203 = vpop.f32.mrb[0].mxu0
        %v4204 = vadd.f32 %v4019, %v4203
        %4205 = vdwg.mxu0
        %4206 = vmatprep.subr.bf16.mxu0 %v3097
        %4207 = vmatpush1.bf16.msra.mxu0 %v3096
        %4208 = vmatprep.subr.bf16.mxu0 %v3103
        %4209 = vmatpush1.bf16.msra.mxu0 %v3102
        %4210 = vmatprep.subr.bf16.mxu0 %v3109
        %4211 = vmatpush1.bf16.msra.mxu0 %v3108
        %4212 = vmatprep.subr.bf16.mxu0 %v3115
        %4213 = vmatpush1.bf16.msra.mxu0 %v3114
        %4214 = vmatprep.subr.bf16.mxu0 %v3593
        %4215 = vmatpush1.bf16.msra.mxu0 %v3592
        %4216 = vmatprep.subr.bf16.mxu0 %v3598
        %4217 = vmatpush1.bf16.msra.mxu0 %v3597
        %4218 = vmatprep.subr.bf16.mxu0 %v3603
        %4219 = vmatpush1.bf16.msra.mxu0 %v3602
        %4220 = vmatprep.subr.bf16.mxu0 %v3608
        %4221 = vmatpush1.bf16.msra.mxu0 %v3607
        %4222 = vmatprep.subr.bf16.mxu0 %v3693
        %4223 = vmatpush1.bf16.msra.mxu0 %v3692
        %4224 = vmatprep.subr.bf16.mxu0 %v3698
        %4225 = vmatpush1.bf16.msra.mxu0 %v3697
        %4226 = vmatprep.subr.bf16.mxu0 %v3703
        %4227 = vmatpush1.bf16.msra.mxu0 %v3702
        %4228 = vmatprep.subr.bf16.mxu0 %v3708
        %4229 = vmatpush1.bf16.msra.mxu0 %v3707
        %4230 = vmatprep.subr.bf16.mxu0 %v3793
        %4231 = vmatpush1.bf16.msra.mxu0 %v3792
        %4232 = vmatprep.subr.bf16.mxu0 %v3798
        %4233 = vmatpush1.bf16.msra.mxu0 %v3797
        %4234 = vmatprep.subr.bf16.mxu0 %v3803
        %4235 = vmatpush1.bf16.msra.mxu0 %v3802
        %4236 = vmatprep.subr.bf16.mxu0 %v3808
        %4237 = vmatpush1.bf16.msra.mxu0 %v3807
        %4238 = vmatprep.mubr.bf16.mxu0 %v4088
        %4239 = vmatmul.mubr.bf16.gmra.mrb[0].mxu0 %v4087
        %v4240 = vpop.f32.mrb[0].mxu0
        %v4241 = vadd.f32 %v4168, %v4240
        %v4242 = vpop.f32.mrb[0].mxu0
        %v4243 = vadd.f32 %v4170, %v4242
        %v4244 = vpop.f32.mrb[0].mxu0
        %v4245 = vadd.f32 %v4172, %v4244
        %v4246 = vpop.f32.mrb[0].mxu0
        %v4247 = vadd.f32 %v4174, %v4246
        %4248 = vmatprep.mubr.bf16.mxu0 %v4093
        %4249 = vmatmul.mubr.bf16.gmra.mrb[0].mxu0 %v4092
        %v4250 = vpop.f32.mrb[0].mxu0
        %v4251 = vadd.f32 %v4178, %v4250
        %v4252 = vpop.f32.mrb[0].mxu0
        %v4253 = vadd.f32 %v4180, %v4252
        %v4254 = vpop.f32.mrb[0].mxu0
        %v4255 = vadd.f32 %v4182, %v4254
        %v4256 = vpop.f32.mrb[0].mxu0
        %v4257 = vadd.f32 %v4184, %v4256
        %4258 = vmatprep.mubr.bf16.mxu0 %v4098
        %4259 = vmatmul.mubr.bf16.gmra.mrb[0].mxu0 %v4097
        %v4260 = vpop.f32.mrb[0].mxu0
        %v4261 = vadd.f32 %v4188, %v4260
        %v4262 = vpop.f32.mrb[0].mxu0
        %v4263 = vadd.f32 %v4190, %v4262
        %v4264 = vpop.f32.mrb[0].mxu0
        %v4265 = vadd.f32 %v4192, %v4264
        %v4266 = vpop.f32.mrb[0].mxu0
        %v4267 = vadd.f32 %v4194, %v4266
        %4268 = vmatprep.mubr.bf16.mxu0 %v4103
        %4269 = vmatmul.mubr.bf16.gmra.mrb[0].mxu0 %v4102
        %v4270 = vpop.f32.mrb[0].mxu0
        %v4271 = vadd.f32 %v4198, %v4270
        %v4272 = vpop.f32.mrb[0].mxu0
        %v4273 = vadd.f32 %v4200, %v4272
        %v4274 = vpop.f32.mrb[0].mxu0
        %v4275 = vadd.f32 %v4202, %v4274
        %v4276 = vpop.f32.mrb[0].mxu0
        %v4277 = vadd.f32 %v4204, %v4276
        %4278 = vdwg.mxu0
        %4279 = vmatprep.subr.bf16.mxu0 %v3893
        %4280 = vmatpush1.bf16.msra.mxu0 %v3892
        %4281 = vmatprep.subr.bf16.mxu0 %v3898
        %4282 = vmatpush1.bf16.msra.mxu0 %v3897
        %4283 = vmatprep.subr.bf16.mxu0 %v3903
        %4284 = vmatpush1.bf16.msra.mxu0 %v3902
        %4285 = vmatprep.subr.bf16.mxu0 %v3908
        %4286 = vmatpush1.bf16.msra.mxu0 %v3907
        %4287 = vmatprep.subr.bf16.mxu0 0
        %4288 = vmatpush1.bf16.msra.mxu0 0
        %4289 = vmatprep.subr.bf16.mxu0 0
        %4290 = vmatpush1.bf16.msra.mxu0 0
        %4291 = vmatprep.subr.bf16.mxu0 0
        %4292 = vmatpush1.bf16.msra.mxu0 0
        %4293 = vmatprep.subr.bf16.mxu0 0
        %4294 = vmatpush1.bf16.msra.mxu0 0
        %4295 = vmatprep.subr.bf16.mxu0 0
        %4296 = vmatpush1.bf16.msra.mxu0 0
        %4297 = vmatprep.subr.bf16.mxu0 0
        %4298 = vmatpush1.bf16.msra.mxu0 0
        %4299 = vmatprep.subr.bf16.mxu0 0
        %4300 = vmatpush1.bf16.msra.mxu0 0
        %4301 = vmatprep.subr.bf16.mxu0 0
        %4302 = vmatpush1.bf16.msra.mxu0 0
        %4303 = vmatprep.subr.bf16.mxu0 0
        %4304 = vmatpush1.bf16.msra.mxu0 0
        %4305 = vmatprep.subr.bf16.mxu0 0
        %4306 = vmatpush1.bf16.msra.mxu0 0
        %4307 = vmatprep.subr.bf16.mxu0 0
        %4308 = vmatpush1.bf16.msra.mxu0 0
        %4309 = vmatprep.subr.bf16.mxu0 0
        %4310 = vmatpush1.bf16.msra.mxu0 0
        %4311 = vmatprep.mubr.bf16.mxu0 0
        %4312 = vmatmul.mubr.bf16.gmra.mrb[0].mxu0 %v4122
        %v4313 = vpop.f32.mrb[0].mxu0
        %v4314 = vadd.f32 %v4241, %v4313
        %v4315 = vpop.f32.mrb[0].mxu0
        %v4316 = vadd.f32 %v4243, %v4315
        %v4317 = vpop.f32.mrb[0].mxu0
        %v4318 = vadd.f32 %v4245, %v4317
        %v4319 = vpop.f32.mrb[0].mxu0
        %v4320 = vadd.f32 %v4247, %v4319
        %4321 = vmatprep.mubr.bf16.mxu0 0
        %4322 = vmatmul.mubr.bf16.gmra.mrb[0].mxu0 %v4125
        %v4323 = vpop.f32.mrb[0].mxu0
        %v4324 = vadd.f32 %v4251, %v4323
        %v4325 = vpop.f32.mrb[0].mxu0
        %v4326 = vadd.f32 %v4253, %v4325
        %v4327 = vpop.f32.mrb[0].mxu0
        %v4328 = vadd.f32 %v4255, %v4327
        %v4329 = vpop.f32.mrb[0].mxu0
        %v4330 = vadd.f32 %v4257, %v4329
        %4331 = vmatprep.mubr.bf16.mxu0 0
        %4332 = vmatmul.mubr.bf16.gmra.mrb[0].mxu0 %v4128
        %v4333 = vpop.f32.mrb[0].mxu0
        %v4334 = vadd.f32 %v4261, %v4333
        %v4335 = vpop.f32.mrb[0].mxu0
        %v4336 = vadd.f32 %v4263, %v4335
        %v4337 = vpop.f32.mrb[0].mxu0
        %v4338 = vadd.f32 %v4265, %v4337
        %v4339 = vpop.f32.mrb[0].mxu0
        %v4340 = vadd.f32 %v4267, %v4339
        %4341 = vmatprep.mubr.bf16.mxu0 0
        %4342 = vmatmul.mubr.bf16.gmra.mrb[0].mxu0 %v4131
        %v4343 = vpop.f32.mrb[0].mxu0
        %v4344 = vadd.f32 %v4271, %v4343
        %v4345 = vpop.f32.mrb[0].mxu0
        %v4346 = vadd.f32 %v4273, %v4345
        %v4347 = vpop.f32.mrb[0].mxu0
        %v4348 = vadd.f32 %v4275, %v4347
        %v4349 = vpop.f32.mrb[0].mxu0
        %v4350 = vadd.f32 %v4277, %v4349
        %4351 = vdwg.mxu0
        %4352 = vmatprep.subr.bf16.mxu0 %v3194
        %4353 = vmatpush1.bf16.msra.mxu0 %v3193
        %4354 = vmatprep.subr.bf16.mxu0 %v3199
        %4355 = vmatpush1.bf16.msra.mxu0 %v3198
        %4356 = vmatprep.subr.bf16.mxu0 %v3204
        %4357 = vmatpush1.bf16.msra.mxu0 %v3203
        %4358 = vmatprep.subr.bf16.mxu0 %v3209
        %4359 = vmatpush1.bf16.msra.mxu0 %v3208
        %4360 = vmatprep.subr.bf16.mxu0 %v3294
        %4361 = vmatpush1.bf16.msra.mxu0 %v3293
        %4362 = vmatprep.subr.bf16.mxu0 %v3299
        %4363 = vmatpush1.bf16.msra.mxu0 %v3298
        %4364 = vmatprep.subr.bf16.mxu0 %v3304
        %4365 = vmatpush1.bf16.msra.mxu0 %v3303
        %4366 = vmatprep.subr.bf16.mxu0 %v3309
        %4367 = vmatpush1.bf16.msra.mxu0 %v3308
        %4368 = vmatprep.subr.bf16.mxu0 %v3394
        %4369 = vmatpush1.bf16.msra.mxu0 %v3393
        %4370 = vmatprep.subr.bf16.mxu0 %v3399
        %4371 = vmatpush1.bf16.msra.mxu0 %v3398
        %4372 = vmatprep.subr.bf16.mxu0 %v3404
        %4373 = vmatpush1.bf16.msra.mxu0 %v3403
        %4374 = vmatprep.subr.bf16.mxu0 %v3409
        %4375 = vmatpush1.bf16.msra.mxu0 %v3408
        %4376 = vmatprep.subr.bf16.mxu0 %v3494
        %4377 = vmatpush1.bf16.msra.mxu0 %v3493
        %4378 = vmatprep.subr.bf16.mxu0 %v3499
        %4379 = vmatpush1.bf16.msra.mxu0 %v3498
        %4380 = vmatprep.subr.bf16.mxu0 %v3504
        %4381 = vmatpush1.bf16.msra.mxu0 %v3503
        %4382 = vmatprep.subr.bf16.mxu0 %v3509
        %4383 = vmatpush1.bf16.msra.mxu0 %v3508
        %4384 = vmatprep.mubr.bf16.mxu0 %v4086
        %4385 = vmatmul.mubr.bf16.gmra.mrb[0].mxu0 %v4085
        %v4386 = vpop.f32.mrb[0].mxu0
        %v4387 = vadd.f32 %v3984, %v4386
        %v4388 = vpop.f32.mrb[0].mxu0
        %v4389 = vadd.f32 %v3984, %v4388
        %v4390 = vpop.f32.mrb[0].mxu0
        %v4391 = vadd.f32 %v3989, %v4390
        %v4392 = vpop.f32.mrb[0].mxu0
        %v4393 = vadd.f32 %v3989, %v4392
        %4394 = vmatprep.mubr.bf16.mxu0 %v4091
        %4395 = vmatmul.mubr.bf16.gmra.mrb[0].mxu0 %v4090
        %v4396 = vpop.f32.mrb[0].mxu0
        %v4397 = vadd.f32 %v3994, %v4396
        %v4398 = vpop.f32.mrb[0].mxu0
        %v4399 = vadd.f32 %v3994, %v4398
        %v4400 = vpop.f32.mrb[0].mxu0
        %v4401 = vadd.f32 %v3999, %v4400
        %v4402 = vpop.f32.mrb[0].mxu0
        %v4403 = vadd.f32 %v3999, %v4402
        %4404 = vmatprep.mubr.bf16.mxu0 %v4096
        %4405 = vmatmul.mubr.bf16.gmra.mrb[0].mxu0 %v4095
        %v4406 = vpop.f32.mrb[0].mxu0
        %v4407 = vadd.f32 %v4004, %v4406
        %v4408 = vpop.f32.mrb[0].mxu0
        %v4409 = vadd.f32 %v4004, %v4408
        %v4410 = vpop.f32.mrb[0].mxu0
        %v4411 = vadd.f32 %v4009, %v4410
        %v4412 = vpop.f32.mrb[0].mxu0
        %v4413 = vadd.f32 %v4009, %v4412
        %4414 = vmatprep.mubr.bf16.mxu0 %v4101
        %4415 = vmatmul.mubr.bf16.gmra.mrb[0].mxu0 %v4100
        %v4416 = vpop.f32.mrb[0].mxu0
        %v4417 = vadd.f32 %v4014, %v4416
        %v4418 = vpop.f32.mrb[0].mxu0
        %v4419 = vadd.f32 %v4014, %v4418
        %v4420 = vpop.f32.mrb[0].mxu0
        %v4421 = vadd.f32 %v4019, %v4420
        %v4422 = vpop.f32.mrb[0].mxu0
        %v4423 = vadd.f32 %v4019, %v4422
        %4424 = vdwg.mxu0
        %4425 = vmatprep.subr.bf16.mxu0 %v3099
        %4426 = vmatpush1.bf16.msra.mxu0 %v3098
        %4427 = vmatprep.subr.bf16.mxu0 %v3105
        %4428 = vmatpush1.bf16.msra.mxu0 %v3104
        %4429 = vmatprep.subr.bf16.mxu0 %v3111
        %4430 = vmatpush1.bf16.msra.mxu0 %v3110
        %4431 = vmatprep.subr.bf16.mxu0 %v3117
        %4432 = vmatpush1.bf16.msra.mxu0 %v3116
        %4433 = vmatprep.subr.bf16.mxu0 %v3595
        %4434 = vmatpush1.bf16.msra.mxu0 %v3594
        %4435 = vmatprep.subr.bf16.mxu0 %v3600
        %4436 = vmatpush1.bf16.msra.mxu0 %v3599
        %4437 = vmatprep.subr.bf16.mxu0 %v3605
        %4438 = vmatpush1.bf16.msra.mxu0 %v3604
        %4439 = vmatprep.subr.bf16.mxu0 %v3610
        %4440 = vmatpush1.bf16.msra.mxu0 %v3609
        %4441 = vmatprep.subr.bf16.mxu0 %v3695
        %4442 = vmatpush1.bf16.msra.mxu0 %v3694
        %4443 = vmatprep.subr.bf16.mxu0 %v3700
        %4444 = vmatpush1.bf16.msra.mxu0 %v3699
        %4445 = vmatprep.subr.bf16.mxu0 %v3705
        %4446 = vmatpush1.bf16.msra.mxu0 %v3704
        %4447 = vmatprep.subr.bf16.mxu0 %v3710
        %4448 = vmatpush1.bf16.msra.mxu0 %v3709
        %4449 = vmatprep.subr.bf16.mxu0 %v3795
        %4450 = vmatpush1.bf16.msra.mxu0 %v3794
        %4451 = vmatprep.subr.bf16.mxu0 %v3800
        %4452 = vmatpush1.bf16.msra.mxu0 %v3799
        %4453 = vmatprep.subr.bf16.mxu0 %v3805
        %4454 = vmatpush1.bf16.msra.mxu0 %v3804
        %4455 = vmatprep.subr.bf16.mxu0 %v3810
        %4456 = vmatpush1.bf16.msra.mxu0 %v3809
        %4457 = vmatprep.mubr.bf16.mxu0 %v4088
        %4458 = vmatmul.mubr.bf16.gmra.mrb[0].mxu0 %v4087
        %v4459 = vpop.f32.mrb[0].mxu0
        %v4460 = vadd.f32 %v4387, %v4459
        %v4461 = vpop.f32.mrb[0].mxu0
        %v4462 = vadd.f32 %v4389, %v4461
        %v4463 = vpop.f32.mrb[0].mxu0
        %v4464 = vadd.f32 %v4391, %v4463
        %v4465 = vpop.f32.mrb[0].mxu0
        %v4466 = vadd.f32 %v4393, %v4465
        %4467 = vmatprep.mubr.bf16.mxu0 %v4093
        %4468 = vmatmul.mubr.bf16.gmra.mrb[0].mxu0 %v4092
        %v4469 = vpop.f32.mrb[0].mxu0
        %v4470 = vadd.f32 %v4397, %v4469
        %v4471 = vpop.f32.mrb[0].mxu0
        %v4472 = vadd.f32 %v4399, %v4471
        %v4473 = vpop.f32.mrb[0].mxu0
        %v4474 = vadd.f32 %v4401, %v4473
        %v4475 = vpop.f32.mrb[0].mxu0
        %v4476 = vadd.f32 %v4403, %v4475
        %4477 = vmatprep.mubr.bf16.mxu0 %v4098
        %4478 = vmatmul.mubr.bf16.gmra.mrb[0].mxu0 %v4097
        %v4479 = vpop.f32.mrb[0].mxu0
        %v4480 = vadd.f32 %v4407, %v4479
        %v4481 = vpop.f32.mrb[0].mxu0
        %v4482 = vadd.f32 %v4409, %v4481
        %v4483 = vpop.f32.mrb[0].mxu0
        %v4484 = vadd.f32 %v4411, %v4483
        %v4485 = vpop.f32.mrb[0].mxu0
        %v4486 = vadd.f32 %v4413, %v4485
        %4487 = vmatprep.mubr.bf16.mxu0 %v4103
        %4488 = vmatmul.mubr.bf16.gmra.mrb[0].mxu0 %v4102
        %v4489 = vpop.f32.mrb[0].mxu0
        %v4490 = vadd.f32 %v4417, %v4489
        %v4491 = vpop.f32.mrb[0].mxu0
        %v4492 = vadd.f32 %v4419, %v4491
        %v4493 = vpop.f32.mrb[0].mxu0
        %v4494 = vadd.f32 %v4421, %v4493
        %v4495 = vpop.f32.mrb[0].mxu0
        %v4496 = vadd.f32 %v4423, %v4495
        %4497 = vdwg.mxu0
        %4498 = vmatprep.subr.bf16.mxu0 %v3895
        %4499 = vmatpush1.bf16.msra.mxu0 %v3894
        %4500 = vmatprep.subr.bf16.mxu0 %v3900
        %4501 = vmatpush1.bf16.msra.mxu0 %v3899
        %4502 = vmatprep.subr.bf16.mxu0 %v3905
        %4503 = vmatpush1.bf16.msra.mxu0 %v3904
        %4504 = vmatprep.subr.bf16.mxu0 %v3910
        %4505 = vmatpush1.bf16.msra.mxu0 %v3909
        %4506 = vmatprep.subr.bf16.mxu0 0
        %4507 = vmatpush1.bf16.msra.mxu0 0
        %4508 = vmatprep.subr.bf16.mxu0 0
        %4509 = vmatpush1.bf16.msra.mxu0 0
        %4510 = vmatprep.subr.bf16.mxu0 0
        %4511 = vmatpush1.bf16.msra.mxu0 0
        %4512 = vmatprep.subr.bf16.mxu0 0
        %4513 = vmatpush1.bf16.msra.mxu0 0
        %4514 = vmatprep.subr.bf16.mxu0 0
        %4515 = vmatpush1.bf16.msra.mxu0 0
        %4516 = vmatprep.subr.bf16.mxu0 0
        %4517 = vmatpush1.bf16.msra.mxu0 0
        %4518 = vmatprep.subr.bf16.mxu0 0
        %4519 = vmatpush1.bf16.msra.mxu0 0
        %4520 = vmatprep.subr.bf16.mxu0 0
        %4521 = vmatpush1.bf16.msra.mxu0 0
        %4522 = vmatprep.subr.bf16.mxu0 0
        %4523 = vmatpush1.bf16.msra.mxu0 0
        %4524 = vmatprep.subr.bf16.mxu0 0
        %4525 = vmatpush1.bf16.msra.mxu0 0
        %4526 = vmatprep.subr.bf16.mxu0 0
        %4527 = vmatpush1.bf16.msra.mxu0 0
        %4528 = vmatprep.subr.bf16.mxu0 0
        %4529 = vmatpush1.bf16.msra.mxu0 0
        %4530 = vmatprep.mubr.bf16.mxu0 0
        %4531 = vmatmul.mubr.bf16.gmra.mrb[0].mxu0 %v4122
        %v4532 = vpop.f32.mrb[0].mxu0
        %v4533 = vadd.f32 %v4460, %v4532
        %v4534 = vpop.f32.mrb[0].mxu0
        %v4535 = vadd.f32 %v4462, %v4534
        %v4536 = vpop.f32.mrb[0].mxu0
        %v4537 = vadd.f32 %v4464, %v4536
        %v4538 = vpop.f32.mrb[0].mxu0
        %v4539 = vadd.f32 %v4466, %v4538
        %4540 = vmatprep.mubr.bf16.mxu0 0
        %4541 = vmatmul.mubr.bf16.gmra.mrb[0].mxu0 %v4125
        %v4542 = vpop.f32.mrb[0].mxu0
        %v4543 = vadd.f32 %v4470, %v4542
        %v4544 = vpop.f32.mrb[0].mxu0
        %v4545 = vadd.f32 %v4472, %v4544
        %v4546 = vpop.f32.mrb[0].mxu0
        %v4547 = vadd.f32 %v4474, %v4546
        %v4548 = vpop.f32.mrb[0].mxu0
        %v4549 = vadd.f32 %v4476, %v4548
        %4550 = vmatprep.mubr.bf16.mxu0 0
        %4551 = vmatmul.mubr.bf16.gmra.mrb[0].mxu0 %v4128
        %v4552 = vpop.f32.mrb[0].mxu0
        %v4553 = vadd.f32 %v4480, %v4552
        %v4554 = vpop.f32.mrb[0].mxu0
        %v4555 = vadd.f32 %v4482, %v4554
        %v4556 = vpop.f32.mrb[0].mxu0
        %v4557 = vadd.f32 %v4484, %v4556
        %v4558 = vpop.f32.mrb[0].mxu0
        %v4559 = vadd.f32 %v4486, %v4558
        %4560 = vmatprep.mubr.bf16.mxu0 0
        %4561 = vmatmul.mubr.bf16.gmra.mrb[0].mxu0 %v4131
        %v4562 = vpop.f32.mrb[0].mxu0
        %v4563 = vadd.f32 %v4490, %v4562
        %v4564 = vpop.f32.mrb[0].mxu0
        %v4565 = vadd.f32 %v4492, %v4564
        %v4566 = vpop.f32.mrb[0].mxu0
        %v4567 = vadd.f32 %v4494, %v4566
        %v4568 = vpop.f32.mrb[0].mxu0
        %v4569 = vadd.f32 %v4496, %v4568
        %4570 = vdwg.mxu0
        %4571 = vmatprep.subr.bf16.mxu0 %v3196
        %4572 = vmatpush1.bf16.msra.mxu0 %v3195
        %4573 = vmatprep.subr.bf16.mxu0 %v3201
        %4574 = vmatpush1.bf16.msra.mxu0 %v3200
        %4575 = vmatprep.subr.bf16.mxu0 %v3206
        %4576 = vmatpush1.bf16.msra.mxu0 %v3205
        %4577 = vmatprep.subr.bf16.mxu0 %v3211
        %4578 = vmatpush1.bf16.msra.mxu0 %v3210
        %4579 = vmatprep.subr.bf16.mxu0 %v3296
        %4580 = vmatpush1.bf16.msra.mxu0 %v3295
        %4581 = vmatprep.subr.bf16.mxu0 %v3301
        %4582 = vmatpush1.bf16.msra.mxu0 %v3300
        %4583 = vmatprep.subr.bf16.mxu0 %v3306
        %4584 = vmatpush1.bf16.msra.mxu0 %v3305
        %4585 = vmatprep.subr.bf16.mxu0 %v3311
        %4586 = vmatpush1.bf16.msra.mxu0 %v3310
        %4587 = vmatprep.subr.bf16.mxu0 %v3396
        %4588 = vmatpush1.bf16.msra.mxu0 %v3395
        %4589 = vmatprep.subr.bf16.mxu0 %v3401
        %4590 = vmatpush1.bf16.msra.mxu0 %v3400
        %4591 = vmatprep.subr.bf16.mxu0 %v3406
        %4592 = vmatpush1.bf16.msra.mxu0 %v3405
        %4593 = vmatprep.subr.bf16.mxu0 %v3411
        %4594 = vmatpush1.bf16.msra.mxu0 %v3410
        %4595 = vmatprep.subr.bf16.mxu0 %v3496
        %4596 = vmatpush1.bf16.msra.mxu0 %v3495
        %4597 = vmatprep.subr.bf16.mxu0 %v3501
        %4598 = vmatpush1.bf16.msra.mxu0 %v3500
        %4599 = vmatprep.subr.bf16.mxu0 %v3506
        %4600 = vmatpush1.bf16.msra.mxu0 %v3505
        %4601 = vmatprep.subr.bf16.mxu0 %v3511
        %4602 = vmatpush1.bf16.msra.mxu0 %v3510
        %4603 = vmatprep.mubr.bf16.mxu0 %v4086
        %4604 = vmatmul.mubr.bf16.gmra.mrb[0].mxu0 %v4085
        %v4605 = vpop.f32.mrb[0].mxu0
        %v4606 = vadd.f32 %v3984, %v4605
        %v4607 = vpop.f32.mrb[0].mxu0
        %v4608 = vadd.f32 %v3984, %v4607
        %v4609 = vpop.f32.mrb[0].mxu0
        %v4610 = vadd.f32 %v3989, %v4609
        %v4611 = vpop.f32.mrb[0].mxu0
        %v4612 = vadd.f32 %v3989, %v4611
        %4613 = vmatprep.mubr.bf16.mxu0 %v4091
        %4614 = vmatmul.mubr.bf16.gmra.mrb[0].mxu0 %v4090
        %v4615 = vpop.f32.mrb[0].mxu0
        %v4616 = vadd.f32 %v3994, %v4615
        %v4617 = vpop.f32.mrb[0].mxu0
        %v4618 = vadd.f32 %v3994, %v4617
        %v4619 = vpop.f32.mrb[0].mxu0
        %v4620 = vadd.f32 %v3999, %v4619
        %v4621 = vpop.f32.mrb[0].mxu0
        %v4622 = vadd.f32 %v3999, %v4621
        %4623 = vmatprep.mubr.bf16.mxu0 %v4096
        %4624 = vmatmul.mubr.bf16.gmra.mrb[0].mxu0 %v4095
        %v4625 = vpop.f32.mrb[0].mxu0
        %v4626 = vadd.f32 %v4004, %v4625
        %v4627 = vpop.f32.mrb[0].mxu0
        %v4628 = vadd.f32 %v4004, %v4627
        %v4629 = vpop.f32.mrb[0].mxu0
        %v4630 = vadd.f32 %v4009, %v4629
        %v4631 = vpop.f32.mrb[0].mxu0
        %v4632 = vadd.f32 %v4009, %v4631
        %4633 = vmatprep.mubr.bf16.mxu0 %v4101
        %4634 = vmatmul.mubr.bf16.gmra.mrb[0].mxu0 %v4100
        %v4635 = vpop.f32.mrb[0].mxu0
        %v4636 = vadd.f32 %v4014, %v4635
        %v4637 = vpop.f32.mrb[0].mxu0
        %v4638 = vadd.f32 %v4014, %v4637
        %v4639 = vpop.f32.mrb[0].mxu0
        %v4640 = vadd.f32 %v4019, %v4639
        %v4641 = vpop.f32.mrb[0].mxu0
        %v4642 = vadd.f32 %v4019, %v4641
        %4643 = vdwg.mxu0
        %4644 = vmatprep.subr.bf16.mxu0 %v3101
        %4645 = vmatpush1.bf16.msra.mxu0 %v3100
        %4646 = vmatprep.subr.bf16.mxu0 %v3107
        %4647 = vmatpush1.bf16.msra.mxu0 %v3106
        %4648 = vmatprep.subr.bf16.mxu0 %v3113
        %4649 = vmatpush1.bf16.msra.mxu0 %v3112
        %4650 = vmatprep.subr.bf16.mxu0 %v3119
        %4651 = vmatpush1.bf16.msra.mxu0 %v3118
        %4652 = vmatprep.subr.bf16.mxu0 %v3633
        %4653 = vmatpush1.bf16.msra.mxu0 %v3596
        %4654 = vmatprep.subr.bf16.mxu0 %v3636
        %4655 = vmatpush1.bf16.msra.mxu0 %v3601
        %4656 = vmatprep.subr.bf16.mxu0 %v3639
        %4657 = vmatpush1.bf16.msra.mxu0 %v3606
        %4658 = vmatprep.subr.bf16.mxu0 %v3642
        %4659 = vmatpush1.bf16.msra.mxu0 %v3611
        %4660 = vmatprep.subr.bf16.mxu0 %v3733
        %4661 = vmatpush1.bf16.msra.mxu0 %v3696
        %4662 = vmatprep.subr.bf16.mxu0 %v3736
        %4663 = vmatpush1.bf16.msra.mxu0 %v3701
        %4664 = vmatprep.subr.bf16.mxu0 %v3739
        %4665 = vmatpush1.bf16.msra.mxu0 %v3706
        %4666 = vmatprep.subr.bf16.mxu0 %v3742
        %4667 = vmatpush1.bf16.msra.mxu0 %v3711
        %4668 = vmatprep.subr.bf16.mxu0 %v3833
        %4669 = vmatpush1.bf16.msra.mxu0 %v3796
        %4670 = vmatprep.subr.bf16.mxu0 %v3836
        %4671 = vmatpush1.bf16.msra.mxu0 %v3801
        %4672 = vmatprep.subr.bf16.mxu0 %v3839
        %4673 = vmatpush1.bf16.msra.mxu0 %v3806
        %4674 = vmatprep.subr.bf16.mxu0 %v3842
        %4675 = vmatpush1.bf16.msra.mxu0 %v3811
        %4676 = vmatprep.mubr.bf16.mxu0 %v4088
        %4677 = vmatmul.mubr.bf16.gmra.mrb[0].mxu0 %v4087
        %v4678 = vpop.f32.mrb[0].mxu0
        %v4679 = vadd.f32 %v4606, %v4678
        %v4680 = vpop.f32.mrb[0].mxu0
        %v4681 = vadd.f32 %v4608, %v4680
        %v4682 = vpop.f32.mrb[0].mxu0
        %v4683 = vadd.f32 %v4610, %v4682
        %v4684 = vpop.f32.mrb[0].mxu0
        %v4685 = vadd.f32 %v4612, %v4684
        %4686 = vmatprep.mubr.bf16.mxu0 %v4093
        %4687 = vmatmul.mubr.bf16.gmra.mrb[0].mxu0 %v4092
        %v4688 = vpop.f32.mrb[0].mxu0
        %v4689 = vadd.f32 %v4616, %v4688
        %v4690 = vpop.f32.mrb[0].mxu0
        %v4691 = vadd.f32 %v4618, %v4690
        %v4692 = vpop.f32.mrb[0].mxu0
        %v4693 = vadd.f32 %v4620, %v4692
        %v4694 = vpop.f32.mrb[0].mxu0
        %v4695 = vadd.f32 %v4622, %v4694
        %4696 = vmatprep.mubr.bf16.mxu0 %v4098
        %4697 = vmatmul.mubr.bf16.gmra.mrb[0].mxu0 %v4097
        %v4698 = vpop.f32.mrb[0].mxu0
        %v4699 = vadd.f32 %v4626, %v4698
        %v4700 = vpop.f32.mrb[0].mxu0
        %v4701 = vadd.f32 %v4628, %v4700
        %v4702 = vpop.f32.mrb[0].mxu0
        %v4703 = vadd.f32 %v4630, %v4702
        %v4704 = vpop.f32.mrb[0].mxu0
        %v4705 = vadd.f32 %v4632, %v4704
        %4706 = vmatprep.mubr.bf16.mxu0 %v4103
        %4707 = vmatmul.mubr.bf16.gmra.mrb[0].mxu0 %v4102
        %v4708 = vpop.f32.mrb[0].mxu0
        %v4709 = vadd.f32 %v4636, %v4708
        %v4710 = vpop.f32.mrb[0].mxu0
        %v4711 = vadd.f32 %v4638, %v4710
        %v4712 = vpop.f32.mrb[0].mxu0
        %v4713 = vadd.f32 %v4640, %v4712
        %v4714 = vpop.f32.mrb[0].mxu0
        %v4715 = vadd.f32 %v4642, %v4714
        %4716 = vdwg.mxu0
        %4717 = vmatprep.subr.bf16.mxu0 %v3933
        %4718 = vmatpush1.bf16.msra.mxu0 %v3896
        %4719 = vmatprep.subr.bf16.mxu0 %v3936
        %4720 = vmatpush1.bf16.msra.mxu0 %v3901
        %4721 = vmatprep.subr.bf16.mxu0 %v3939
        %4722 = vmatpush1.bf16.msra.mxu0 %v3906
        %4723 = vmatprep.subr.bf16.mxu0 %v3942
        %4724 = vmatpush1.bf16.msra.mxu0 %v3911
        %4725 = vmatprep.subr.bf16.mxu0 0
        %4726 = vmatpush1.bf16.msra.mxu0 0
        %4727 = vmatprep.subr.bf16.mxu0 0
        %4728 = vmatpush1.bf16.msra.mxu0 0
        %4729 = vmatprep.subr.bf16.mxu0 0
        %4730 = vmatpush1.bf16.msra.mxu0 0
        %4731 = vmatprep.subr.bf16.mxu0 0
        %4732 = vmatpush1.bf16.msra.mxu0 0
        %4733 = vmatprep.subr.bf16.mxu0 0
        %4734 = vmatpush1.bf16.msra.mxu0 0
        %4735 = vmatprep.subr.bf16.mxu0 0
        %4736 = vmatpush1.bf16.msra.mxu0 0
        %4737 = vmatprep.subr.bf16.mxu0 0
        %4738 = vmatpush1.bf16.msra.mxu0 0
        %4739 = vmatprep.subr.bf16.mxu0 0
        %4740 = vmatpush1.bf16.msra.mxu0 0
        %4741 = vmatprep.subr.bf16.mxu0 0
        %4742 = vmatpush1.bf16.msra.mxu0 0
        %4743 = vmatprep.subr.bf16.mxu0 0
        %4744 = vmatpush1.bf16.msra.mxu0 0
        %4745 = vmatprep.subr.bf16.mxu0 0
        %4746 = vmatpush1.bf16.msra.mxu0 0
        %4747 = vmatprep.subr.bf16.mxu0 0
        %4748 = vmatpush1.bf16.msra.mxu0 0
        %4749 = vmatprep.mubr.bf16.mxu0 0
        %4750 = vmatmul.mubr.bf16.gmra.mrb[0].mxu0 %v4122
        %v4751 = vpop.f32.mrb[0].mxu0
        %v4752 = vadd.f32 %v4679, %v4751
        %v4753 = vpop.f32.mrb[0].mxu0
        %v4754 = vadd.f32 %v4681, %v4753
        %v4755 = vpop.f32.mrb[0].mxu0
        %v4756 = vadd.f32 %v4683, %v4755
        %v4757 = vpop.f32.mrb[0].mxu0
        %v4758 = vadd.f32 %v4685, %v4757
        %4759 = vmatprep.mubr.bf16.mxu0 0
        %4760 = vmatmul.mubr.bf16.gmra.mrb[0].mxu0 %v4125
        %v4761 = vpop.f32.mrb[0].mxu0
        %v4762 = vadd.f32 %v4689, %v4761
        %v4763 = vpop.f32.mrb[0].mxu0
        %v4764 = vadd.f32 %v4691, %v4763
        %v4765 = vpop.f32.mrb[0].mxu0
        %v4766 = vadd.f32 %v4693, %v4765
        %v4767 = vpop.f32.mrb[0].mxu0
        %v4768 = vadd.f32 %v4695, %v4767
        %4769 = vmatprep.mubr.bf16.mxu0 0
        %4770 = vmatmul.mubr.bf16.gmra.mrb[0].mxu0 %v4128
        %v4771 = vpop.f32.mrb[0].mxu0
        %v4772 = vadd.f32 %v4699, %v4771
        %v4773 = vpop.f32.mrb[0].mxu0
        %v4774 = vadd.f32 %v4701, %v4773
        %v4775 = vpop.f32.mrb[0].mxu0
        %v4776 = vadd.f32 %v4703, %v4775
        %v4777 = vpop.f32.mrb[0].mxu0
        %v4778 = vadd.f32 %v4705, %v4777
        %4779 = vmatprep.mubr.bf16.mxu0 0
        %4780 = vmatmul.mubr.bf16.gmra.mrb[0].mxu0 %v4131
        %v4781 = vpop.f32.mrb[0].mxu0
        %v4782 = vadd.f32 %v4709, %v4781
        %v4783 = vpop.f32.mrb[0].mxu0
        %v4784 = vadd.f32 %v4711, %v4783
        %v4785 = vpop.f32.mrb[0].mxu0
        %v4786 = vadd.f32 %v4713, %v4785
        %v4787 = vpop.f32.mrb[0].mxu0
        %v4788 = vadd.f32 %v4715, %v4787
        %4789 = vdwg.mxu0
        %v4790 = vmax.f32 %v4314, 0.0
        %v4791 = vmax.f32 %v4316, 0.0
        %v4792 = vmax.f32 %v4533, 0.0
        %v4793 = vmax.f32 %v4535, 0.0
        %v4794 = vmax.f32 %v4752, 0.0
        %v4795 = vmax.f32 %v4754, 0.0
        %v4796 = vmax.f32 %v4318, 0.0
        %v4797 = vmax.f32 %v4320, 0.0
        %v4798 = vmax.f32 %v4537, 0.0
        %v4799 = vmax.f32 %v4539, 0.0
        %v4800 = vmax.f32 %v4756, 0.0
        %v4801 = vmax.f32 %v4758, 0.0
        %v4802 = vmax.f32 %v4324, 0.0
        %v4803 = vmax.f32 %v4326, 0.0
        %v4804 = vmax.f32 %v4543, 0.0
        %v4805 = vmax.f32 %v4545, 0.0
        %v4806 = vmax.f32 %v4762, 0.0
        %v4807 = vmax.f32 %v4764, 0.0
        %v4808 = vmax.f32 %v4328, 0.0
        %v4809 = vmax.f32 %v4330, 0.0
        %v4810 = vmax.f32 %v4547, 0.0
        %v4811 = vmax.f32 %v4549, 0.0
        %v4812 = vmax.f32 %v4766, 0.0
        %v4813 = vmax.f32 %v4768, 0.0
        %v4814 = vmax.f32 %v4334, 0.0
        %v4815 = vmax.f32 %v4336, 0.0
        %v4816 = vmax.f32 %v4553, 0.0
        %v4817 = vmax.f32 %v4555, 0.0
        %v4818 = vmax.f32 %v4772, 0.0
        %v4819 = vmax.f32 %v4774, 0.0
        %v4820 = vmax.f32 %v4338, 0.0
        %v4821 = vmax.f32 %v4340, 0.0
        %v4822 = vmax.f32 %v4557, 0.0
        %v4823 = vmax.f32 %v4559, 0.0
        %v4824 = vmax.f32 %v4776, 0.0
        %v4825 = vmax.f32 %v4778, 0.0
        %v4826 = vmax.f32 %v4344, 0.0
        %v4827 = vmax.f32 %v4346, 0.0
        %v4828 = vmax.f32 %v4563, 0.0
        %v4829 = vmax.f32 %v4565, 0.0
        %v4830 = vmax.f32 %v4782, 0.0
        %v4831 = vmax.f32 %v4784, 0.0
        %v4832 = vmax.f32 %v4348, 0.0
        %v4833 = vmax.f32 %v4350, 0.0
        %v4834 = vmax.f32 %v4567, 0.0
        %v4835 = vmax.f32 %v4569, 0.0
        %v4836 = vmax.f32 %v4786, 0.0
        %v4837 = vmax.f32 %v4788, 0.0
        %v4838 = vmul.f32 %v4790, %v1116
        %v4839 = vmul.f32 %v4791, %v1120
        %v4840 = vmul.f32 %v4792, %v1124
        %v4841 = vmul.f32 %v4793, %v1128
        %v4842 = vmul.f32 %v4794, %v1132
        %v4843 = vmul.f32 %v4795, %v1136
        %v4844 = vmul.f32 %v4796, %v1116
        %v4845 = vmul.f32 %v4797, %v1120
        %v4846 = vmul.f32 %v4798, %v1124
        %v4847 = vmul.f32 %v4799, %v1128
        %v4848 = vmul.f32 %v4800, %v1132
        %v4849 = vmul.f32 %v4801, %v1136
        %v4850 = vmul.f32 %v4802, %v1116
        %v4851 = vmul.f32 %v4803, %v1120
        %v4852 = vmul.f32 %v4804, %v1124
        %v4853 = vmul.f32 %v4805, %v1128
        %v4854 = vmul.f32 %v4806, %v1132
        %v4855 = vmul.f32 %v4807, %v1136
        %v4856 = vmul.f32 %v4808, %v1116
        %v4857 = vmul.f32 %v4809, %v1120
        %v4858 = vmul.f32 %v4810, %v1124
        %v4859 = vmul.f32 %v4811, %v1128
        %v4860 = vmul.f32 %v4812, %v1132
        %v4861 = vmul.f32 %v4813, %v1136
        %v4862 = vmul.f32 %v4814, %v1116
        %v4863 = vmul.f32 %v4815, %v1120
        %v4864 = vmul.f32 %v4816, %v1124
        %v4865 = vmul.f32 %v4817, %v1128
        %v4866 = vmul.f32 %v4818, %v1132
        %v4867 = vmul.f32 %v4819, %v1136
        %v4868 = vmul.f32 %v4820, %v1116
        %v4869 = vmul.f32 %v4821, %v1120
        %v4870 = vmul.f32 %v4822, %v1124
        %v4871 = vmul.f32 %v4823, %v1128
        %v4872 = vmul.f32 %v4824, %v1132
        %v4873 = vmul.f32 %v4825, %v1136
        %v4874 = vmul.f32 %v4826, %v1116
        %v4875 = vmul.f32 %v4827, %v1120
        %v4876 = vmul.f32 %v4828, %v1124
        %v4877 = vmul.f32 %v4829, %v1128
        %v4878 = vmul.f32 %v4830, %v1132
        %v4879 = vmul.f32 %v4831, %v1136
        %v4880 = vmul.f32 %v4832, %v1116
        %v4881 = vmul.f32 %v4833, %v1120
        %v4882 = vmul.f32 %v4834, %v1124
        %v4883 = vmul.f32 %v4835, %v1128
        %v4884 = vmul.f32 %v4836, %v1132
        %v4885 = vmul.f32 %v4837, %v1136
        %v4886 = vpack.c.bf16 %v4844, %v4838
        %v4887 = vpack.c.bf16 %v4845, %v4839
        %v4888 = vpack.c.bf16 %v4846, %v4840
        %v4889 = vpack.c.bf16 %v4847, %v4841
        %v4890 = vpack.c.bf16 %v4848, %v4842
        %v4891 = vpack.c.bf16 %v4849, %v4843
        %v4892 = vpack.c.bf16 %v4856, %v4850
        %v4893 = vpack.c.bf16 %v4857, %v4851
        %v4894 = vpack.c.bf16 %v4858, %v4852
        %v4895 = vpack.c.bf16 %v4859, %v4853
        %v4896 = vpack.c.bf16 %v4860, %v4854
        %v4897 = vpack.c.bf16 %v4861, %v4855
        %v4898 = vpack.c.bf16 %v4868, %v4862
        %v4899 = vpack.c.bf16 %v4869, %v4863
        %v4900 = vpack.c.bf16 %v4870, %v4864
        %v4901 = vpack.c.bf16 %v4871, %v4865
        %v4902 = vpack.c.bf16 %v4872, %v4866
        %v4903 = vpack.c.bf16 %v4873, %v4867
        %v4904 = vpack.c.bf16 %v4880, %v4874
        %v4905 = vpack.c.bf16 %v4881, %v4875
        %v4906 = vpack.c.bf16 %v4882, %v4876
        %v4907 = vpack.c.bf16 %v4883, %v4877
        %v4908 = vpack.c.bf16 %v4884, %v4878
        %v4909 = vpack.c.bf16 %v4885, %v4879
        %4910 = vst [vmem:[#allocation2] sm:$0xff] %v4886
        %4911 = vst [vmem:[#allocation2 + $0x8] sm:$0xff] %v4887
        %4912 = vst [vmem:[#allocation2 + $0x10] sm:$0xff] %v4888
        %4913 = vst [vmem:[#allocation2 + $0x18] sm:$0xff] %v4889
        %4914 = vst [vmem:[#allocation2 + $0x20] sm:$0xff] %v4890
        %4915 = vst [vmem:[#allocation2 + $0x28] sm:$0xff] %v4891
        %4916 = vst [vmem:[#allocation2 + $0x30] sm:$0xff] %v4892
        %4917 = vst [vmem:[#allocation2 + $0x38] sm:$0xff] %v4893
        %4918 = vst [vmem:[#allocation2 + $0x40] sm:$0xff] %v4894
        %4919 = vst [vmem:[#allocation2 + $0x48] sm:$0xff] %v4895
        %4920 = vst [vmem:[#allocation2 + $0x50] sm:$0xff] %v4896
        %4921 = vst [vmem:[#allocation2 + $0x58] sm:$0xff] %v4897
        %4922 = vst [vmem:[#allocation2 + $0x60] sm:$0xff] %v4898
        %4923 = vst [vmem:[#allocation2 + $0x68] sm:$0xff] %v4899
        %4924 = vst [vmem:[#allocation2 + $0x70] sm:$0xff] %v4900
        %4925 = vst [vmem:[#allocation2 + $0x78] sm:$0xff] %v4901
        %4926 = vst [vmem:[#allocation2 + $0x80] sm:$0xff] %v4902
        %4927 = vst [vmem:[#allocation2 + $0x88] sm:$0xff] %v4903
        %4928 = vst [vmem:[#allocation2 + $0x90] sm:$0xff] %v4904
        %4929 = vst [vmem:[#allocation2 + $0x98] sm:$0xff] %v4905
        %4930 = vst [vmem:[#allocation2 + $0xa0] sm:$0xff] %v4906
        %4931 = vst [vmem:[#allocation2 + $0xa8] sm:$0xff] %v4907
        %4932 = vst [vmem:[#allocation2 + $0xb0] sm:$0xff] %v4908
        %4933 = vst [vmem:[#allocation2 + $0xb8] sm:$0xff] %v4909
      $region65: #{dncnn_forward.1} parent=59 // loop_footer
        %s1244 = sadd.s32 1, %s1240
      $region66: #{dncnn_forward.1} parent=59 // loop_footer_branch
        %1239 = sbr.rel target = $region62
      $region67: #{dncnn_forward.1} parent=59 // loop_exit
        _
      %v4934 = vld [vmem:[#allocation2] sm:$0xff]
      %v4935 = vld [vmem:[#allocation2 + $0x8] sm:$0xff]
      %v4936 = vld [vmem:[#allocation2 + $0x10] sm:$0xff]
      %v4937 = vld [vmem:[#allocation2 + $0x18] sm:$0xff]
      %v4938 = vld [vmem:[#allocation2 + $0x20] sm:$0xff]
      %v4939 = vld [vmem:[#allocation2 + $0x28] sm:$0xff]
      %v4940 = vld [vmem:[#allocation2 + $0x30] sm:$0xff]
      %v4941 = vld [vmem:[#allocation2 + $0x38] sm:$0xff]
      %v4942 = vld [vmem:[#allocation2 + $0x40] sm:$0xff]
      %v4943 = vld [vmem:[#allocation2 + $0x48] sm:$0xff]
      %v4944 = vld [vmem:[#allocation2 + $0x50] sm:$0xff]
      %v4945 = vld [vmem:[#allocation2 + $0x58] sm:$0xff]
      %v4946 = vld [vmem:[#allocation2 + $0x60] sm:$0xff]
      %v4947 = vld [vmem:[#allocation2 + $0x68] sm:$0xff]
      %v4948 = vld [vmem:[#allocation2 + $0x70] sm:$0xff]
      %v4949 = vld [vmem:[#allocation2 + $0x78] sm:$0xff]
      %v4950 = vld [vmem:[#allocation2 + $0x80] sm:$0xff]
      %v4951 = vld [vmem:[#allocation2 + $0x88] sm:$0xff]
      %v4952 = vld [vmem:[#allocation2 + $0x90] sm:$0xff]
      %v4953 = vld [vmem:[#allocation2 + $0x98] sm:$0xff]
      %v4954 = vld [vmem:[#allocation2 + $0xa0] sm:$0xff]
      %v4955 = vld [vmem:[#allocation2 + $0xa8] sm:$0xff]
      %v4956 = vld [vmem:[#allocation2 + $0xb0] sm:$0xff]
      %v4957 = vld [vmem:[#allocation2 + $0xb8] sm:$0xff]
      %4982 = vrot.lane.b32.xlu0 %v4934, 19
      %v4983 = vpop.permute.xlu0 %4982
      %4984 = vrot.lane.b32.xlu0 %v4935, 19
      %v4985 = vpop.permute.xlu0 %4984
      %4986 = vrot.lane.b32.xlu0 %v4936, 19
      %v4987 = vpop.permute.xlu0 %4986
      %4988 = vrot.lane.b32.xlu0 %v4937, 19
      %v4989 = vpop.permute.xlu0 %4988
      %4990 = vrot.lane.b32.xlu0 %v4938, 19
      %v4991 = vpop.permute.xlu0 %4990
      %4992 = vrot.lane.b32.xlu0 %v4939, 19
      %v4993 = vpop.permute.xlu0 %4992
      %4994 = vrot.lane.b32.xlu0 %v4940, 19
      %v4995 = vpop.permute.xlu0 %4994
      %4996 = vrot.lane.b32.xlu0 %v4941, 19
      %v4997 = vpop.permute.xlu0 %4996
      %4998 = vrot.lane.b32.xlu0 %v4942, 19
      %v4999 = vpop.permute.xlu0 %4998
      %5000 = vrot.lane.b32.xlu0 %v4943, 19
      %v5001 = vpop.permute.xlu0 %5000
      %5002 = vrot.lane.b32.xlu0 %v4944, 19
      %v5003 = vpop.permute.xlu0 %5002
      %5004 = vrot.lane.b32.xlu0 %v4945, 19
      %v5005 = vpop.permute.xlu0 %5004
      %5006 = vrot.lane.b32.xlu0 %v4946, 19
      %v5007 = vpop.permute.xlu0 %5006
      %5008 = vrot.lane.b32.xlu0 %v4947, 19
      %v5009 = vpop.permute.xlu0 %5008
      %5010 = vrot.lane.b32.xlu0 %v4948, 19
      %v5011 = vpop.permute.xlu0 %5010
      %5012 = vrot.lane.b32.xlu0 %v4949, 19
      %v5013 = vpop.permute.xlu0 %5012
      %5014 = vrot.lane.b32.xlu0 %v4950, 19
      %v5015 = vpop.permute.xlu0 %5014
      %5016 = vrot.lane.b32.xlu0 %v4951, 19
      %v5017 = vpop.permute.xlu0 %5016
      %5018 = vrot.lane.b32.xlu0 %v4952, 19
      %v5019 = vpop.permute.xlu0 %5018
      %5020 = vrot.lane.b32.xlu0 %v4953, 19
      %v5021 = vpop.permute.xlu0 %5020
      %5022 = vrot.lane.b32.xlu0 %v4954, 19
      %v5023 = vpop.permute.xlu0 %5022
      %5024 = vrot.lane.b32.xlu0 %v4955, 19
      %v5025 = vpop.permute.xlu0 %5024
      %5026 = vrot.lane.b32.xlu0 %v4956, 19
      %v5027 = vpop.permute.xlu0 %5026
      %5028 = vrot.lane.b32.xlu0 %v4957, 19
      %v5029 = vpop.permute.xlu0 %5028
      %vm5030 = vcmask 154624
      %v5031 = vsel %vm5030, %v4983, %v4985
      %v5032 = vsel %vm5030, %v4985, %v4987
      %v5033 = vsel %vm5030, %v4987, %v4989
      %v5034 = vsel %vm5030, %v4989, %v4991
      %v5035 = vsel %vm5030, %v4991, %v4993
      %v5036 = vsel %vm5030, %v4995, %v4997
      %v5037 = vsel %vm5030, %v4997, %v4999
      %v5038 = vsel %vm5030, %v4999, %v5001
      %v5039 = vsel %vm5030, %v5001, %v5003
      %v5040 = vsel %vm5030, %v5003, %v5005
      %v5041 = vsel %vm5030, %v5007, %v5009
      %v5042 = vsel %vm5030, %v5009, %v5011
      %v5043 = vsel %vm5030, %v5011, %v5013
      %v5044 = vsel %vm5030, %v5013, %v5015
      %v5045 = vsel %vm5030, %v5015, %v5017
      %v5046 = vsel %vm5030, %v5019, %v5021
      %v5047 = vsel %vm5030, %v5021, %v5023
      %v5048 = vsel %vm5030, %v5023, %v5025
      %v5049 = vsel %vm5030, %v5025, %v5027
      %v5050 = vsel %vm5030, %v5027, %v5029
      %v5073 = vsel %vm395, 0, %v4983
      %v5076 = vsel %vm395, 0, %v4995
      %v5079 = vsel %vm395, 0, %v5007
      %v5082 = vsel %vm395, 0, %v5019
      %5084 = vrot.lane.b32.xlu0 %v4934, 18
      %v5085 = vpop.permute.xlu0 %5084
      %5086 = vrot.lane.b32.xlu0 %v4935, 18
      %v5087 = vpop.permute.xlu0 %5086
      %5088 = vrot.lane.b32.xlu0 %v4936, 18
      %v5089 = vpop.permute.xlu0 %5088
      %5090 = vrot.lane.b32.xlu0 %v4937, 18
      %v5091 = vpop.permute.xlu0 %5090
      %5092 = vrot.lane.b32.xlu0 %v4938, 18
      %v5093 = vpop.permute.xlu0 %5092
      %5094 = vrot.lane.b32.xlu0 %v4939, 18
      %v5095 = vpop.permute.xlu0 %5094
      %5096 = vrot.lane.b32.xlu0 %v4940, 18
      %v5097 = vpop.permute.xlu0 %5096
      %5098 = vrot.lane.b32.xlu0 %v4941, 18
      %v5099 = vpop.permute.xlu0 %5098
      %5100 = vrot.lane.b32.xlu0 %v4942, 18
      %v5101 = vpop.permute.xlu0 %5100
      %5102 = vrot.lane.b32.xlu0 %v4943, 18
      %v5103 = vpop.permute.xlu0 %5102
      %5104 = vrot.lane.b32.xlu0 %v4944, 18
      %v5105 = vpop.permute.xlu0 %5104
      %5106 = vrot.lane.b32.xlu0 %v4945, 18
      %v5107 = vpop.permute.xlu0 %5106
      %5108 = vrot.lane.b32.xlu0 %v4946, 18
      %v5109 = vpop.permute.xlu0 %5108
      %5110 = vrot.lane.b32.xlu0 %v4947, 18
      %v5111 = vpop.permute.xlu0 %5110
      %5112 = vrot.lane.b32.xlu0 %v4948, 18
      %v5113 = vpop.permute.xlu0 %5112
      %5114 = vrot.lane.b32.xlu0 %v4949, 18
      %v5115 = vpop.permute.xlu0 %5114
      %5116 = vrot.lane.b32.xlu0 %v4950, 18
      %v5117 = vpop.permute.xlu0 %5116
      %5118 = vrot.lane.b32.xlu0 %v4951, 18
      %v5119 = vpop.permute.xlu0 %5118
      %5120 = vrot.lane.b32.xlu0 %v4952, 18
      %v5121 = vpop.permute.xlu0 %5120
      %5122 = vrot.lane.b32.xlu0 %v4953, 18
      %v5123 = vpop.permute.xlu0 %5122
      %5124 = vrot.lane.b32.xlu0 %v4954, 18
      %v5125 = vpop.permute.xlu0 %5124
      %5126 = vrot.lane.b32.xlu0 %v4955, 18
      %v5127 = vpop.permute.xlu0 %5126
      %5128 = vrot.lane.b32.xlu0 %v4956, 18
      %v5129 = vpop.permute.xlu0 %5128
      %5130 = vrot.lane.b32.xlu0 %v4957, 18
      %v5131 = vpop.permute.xlu0 %5130
      %vm5132 = vcmask 146432
      %v5133 = vsel %vm5132, %v5085, %v5087
      %v5134 = vsel %vm5132, %v5087, %v5089
      %v5135 = vsel %vm5132, %v5089, %v5091
      %v5136 = vsel %vm5132, %v5091, %v5093
      %v5137 = vsel %vm5132, %v5093, %v5095
      %v5138 = vsel %vm5132, %v5097, %v5099
      %v5139 = vsel %vm5132, %v5099, %v5101
      %v5140 = vsel %vm5132, %v5101, %v5103
      %v5141 = vsel %vm5132, %v5103, %v5105
      %v5142 = vsel %vm5132, %v5105, %v5107
      %v5143 = vsel %vm5132, %v5109, %v5111
      %v5144 = vsel %vm5132, %v5111, %v5113
      %v5145 = vsel %vm5132, %v5113, %v5115
      %v5146 = vsel %vm5132, %v5115, %v5117
      %v5147 = vsel %vm5132, %v5117, %v5119
      %v5148 = vsel %vm5132, %v5121, %v5123
      %v5149 = vsel %vm5132, %v5123, %v5125
      %v5150 = vsel %vm5132, %v5125, %v5127
      %v5151 = vsel %vm5132, %v5127, %v5129
      %v5152 = vsel %vm5132, %v5129, %v5131
      %v5174 = vsel %vm420, 0, %v5085
      %v5177 = vsel %vm420, 0, %v5097
      %v5180 = vsel %vm420, 0, %v5109
      %v5183 = vsel %vm420, 0, %v5121
      %5185 = vrot.lane.b32.xlu0 %v4934, 17
      %v5186 = vpop.permute.xlu0 %5185
      %5187 = vrot.lane.b32.xlu0 %v4935, 17
      %v5188 = vpop.permute.xlu0 %5187
      %5189 = vrot.lane.b32.xlu0 %v4936, 17
      %v5190 = vpop.permute.xlu0 %5189
      %5191 = vrot.lane.b32.xlu0 %v4937, 17
      %v5192 = vpop.permute.xlu0 %5191
      %5193 = vrot.lane.b32.xlu0 %v4938, 17
      %v5194 = vpop.permute.xlu0 %5193
      %5195 = vrot.lane.b32.xlu0 %v4939, 17
      %v5196 = vpop.permute.xlu0 %5195
      %5197 = vrot.lane.b32.xlu0 %v4940, 17
      %v5198 = vpop.permute.xlu0 %5197
      %5199 = vrot.lane.b32.xlu0 %v4941, 17
      %v5200 = vpop.permute.xlu0 %5199
      %5201 = vrot.lane.b32.xlu0 %v4942, 17
      %v5202 = vpop.permute.xlu0 %5201
      %5203 = vrot.lane.b32.xlu0 %v4943, 17
      %v5204 = vpop.permute.xlu0 %5203
      %5205 = vrot.lane.b32.xlu0 %v4944, 17
      %v5206 = vpop.permute.xlu0 %5205
      %5207 = vrot.lane.b32.xlu0 %v4945, 17
      %v5208 = vpop.permute.xlu0 %5207
      %5209 = vrot.lane.b32.xlu0 %v4946, 17
      %v5210 = vpop.permute.xlu0 %5209
      %5211 = vrot.lane.b32.xlu0 %v4947, 17
      %v5212 = vpop.permute.xlu0 %5211
      %5213 = vrot.lane.b32.xlu0 %v4948, 17
      %v5214 = vpop.permute.xlu0 %5213
      %5215 = vrot.lane.b32.xlu0 %v4949, 17
      %v5216 = vpop.permute.xlu0 %5215
      %5217 = vrot.lane.b32.xlu0 %v4950, 17
      %v5218 = vpop.permute.xlu0 %5217
      %5219 = vrot.lane.b32.xlu0 %v4951, 17
      %v5220 = vpop.permute.xlu0 %5219
      %5221 = vrot.lane.b32.xlu0 %v4952, 17
      %v5222 = vpop.permute.xlu0 %5221
      %5223 = vrot.lane.b32.xlu0 %v4953, 17
      %v5224 = vpop.permute.xlu0 %5223
      %5225 = vrot.lane.b32.xlu0 %v4954, 17
      %v5226 = vpop.permute.xlu0 %5225
      %5227 = vrot.lane.b32.xlu0 %v4955, 17
      %v5228 = vpop.permute.xlu0 %5227
      %5229 = vrot.lane.b32.xlu0 %v4956, 17
      %v5230 = vpop.permute.xlu0 %5229
      %5231 = vrot.lane.b32.xlu0 %v4957, 17
      %v5232 = vpop.permute.xlu0 %5231
      %vm5233 = vcmask 138240
      %v5234 = vsel %vm5233, %v5186, %v5188
      %v5235 = vsel %vm5233, %v5188, %v5190
      %v5236 = vsel %vm5233, %v5190, %v5192
      %v5237 = vsel %vm5233, %v5192, %v5194
      %v5238 = vsel %vm5233, %v5194, %v5196
      %v5239 = vsel %vm5233, %v5198, %v5200
      %v5240 = vsel %vm5233, %v5200, %v5202
      %v5241 = vsel %vm5233, %v5202, %v5204
      %v5242 = vsel %vm5233, %v5204, %v5206
      %v5243 = vsel %vm5233, %v5206, %v5208
      %v5244 = vsel %vm5233, %v5210, %v5212
      %v5245 = vsel %vm5233, %v5212, %v5214
      %v5246 = vsel %vm5233, %v5214, %v5216
      %v5247 = vsel %vm5233, %v5216, %v5218
      %v5248 = vsel %vm5233, %v5218, %v5220
      %v5249 = vsel %vm5233, %v5222, %v5224
      %v5250 = vsel %vm5233, %v5224, %v5226
      %v5251 = vsel %vm5233, %v5226, %v5228
      %v5252 = vsel %vm5233, %v5228, %v5230
      %v5253 = vsel %vm5233, %v5230, %v5232
      %v5275 = vsel %vm440, 0, %v5186
      %v5278 = vsel %vm440, 0, %v5198
      %v5281 = vsel %vm440, 0, %v5210
      %v5284 = vsel %vm440, 0, %v5222
      %5286 = vrot.lane.b32.xlu0 %v4934, 1
      %v5287 = vpop.permute.xlu0 %5286
      %5288 = vrot.lane.b32.xlu0 %v4935, 1
      %v5289 = vpop.permute.xlu0 %5288
      %5290 = vrot.lane.b32.xlu0 %v4936, 1
      %v5291 = vpop.permute.xlu0 %5290
      %5292 = vrot.lane.b32.xlu0 %v4937, 1
      %v5293 = vpop.permute.xlu0 %5292
      %5294 = vrot.lane.b32.xlu0 %v4938, 1
      %v5295 = vpop.permute.xlu0 %5294
      %5296 = vrot.lane.b32.xlu0 %v4939, 1
      %v5297 = vpop.permute.xlu0 %5296
      %5298 = vrot.lane.b32.xlu0 %v4940, 1
      %v5299 = vpop.permute.xlu0 %5298
      %5300 = vrot.lane.b32.xlu0 %v4941, 1
      %v5301 = vpop.permute.xlu0 %5300
      %5302 = vrot.lane.b32.xlu0 %v4942, 1
      %v5303 = vpop.permute.xlu0 %5302
      %5304 = vrot.lane.b32.xlu0 %v4943, 1
      %v5305 = vpop.permute.xlu0 %5304
      %5306 = vrot.lane.b32.xlu0 %v4944, 1
      %v5307 = vpop.permute.xlu0 %5306
      %5308 = vrot.lane.b32.xlu0 %v4945, 1
      %v5309 = vpop.permute.xlu0 %5308
      %5310 = vrot.lane.b32.xlu0 %v4946, 1
      %v5311 = vpop.permute.xlu0 %5310
      %5312 = vrot.lane.b32.xlu0 %v4947, 1
      %v5313 = vpop.permute.xlu0 %5312
      %5314 = vrot.lane.b32.xlu0 %v4948, 1
      %v5315 = vpop.permute.xlu0 %5314
      %5316 = vrot.lane.b32.xlu0 %v4949, 1
      %v5317 = vpop.permute.xlu0 %5316
      %5318 = vrot.lane.b32.xlu0 %v4950, 1
      %v5319 = vpop.permute.xlu0 %5318
      %5320 = vrot.lane.b32.xlu0 %v4951, 1
      %v5321 = vpop.permute.xlu0 %5320
      %5322 = vrot.lane.b32.xlu0 %v4952, 1
      %v5323 = vpop.permute.xlu0 %5322
      %5324 = vrot.lane.b32.xlu0 %v4953, 1
      %v5325 = vpop.permute.xlu0 %5324
      %5326 = vrot.lane.b32.xlu0 %v4954, 1
      %v5327 = vpop.permute.xlu0 %5326
      %5328 = vrot.lane.b32.xlu0 %v4955, 1
      %v5329 = vpop.permute.xlu0 %5328
      %5330 = vrot.lane.b32.xlu0 %v4956, 1
      %v5331 = vpop.permute.xlu0 %5330
      %5332 = vrot.lane.b32.xlu0 %v4957, 1
      %v5333 = vpop.permute.xlu0 %5332
      %vm5334 = vcmask 7168
      %v5335 = vsel %vm5334, %v5287, %v5289
      %v5336 = vsel %vm5334, %v5289, %v5291
      %v5337 = vsel %vm5334, %v5291, %v5293
      %v5338 = vsel %vm5334, %v5293, %v5295
      %v5339 = vsel %vm5334, %v5295, %v5297
      %v5340 = vsel %vm5334, %v5299, %v5301
      %v5341 = vsel %vm5334, %v5301, %v5303
      %v5342 = vsel %vm5334, %v5303, %v5305
      %v5343 = vsel %vm5334, %v5305, %v5307
      %v5344 = vsel %vm5334, %v5307, %v5309
      %v5345 = vsel %vm5334, %v5311, %v5313
      %v5346 = vsel %vm5334, %v5313, %v5315
      %v5347 = vsel %vm5334, %v5315, %v5317
      %v5348 = vsel %vm5334, %v5317, %v5319
      %v5349 = vsel %vm5334, %v5319, %v5321
      %v5350 = vsel %vm5334, %v5323, %v5325
      %v5351 = vsel %vm5334, %v5325, %v5327
      %v5352 = vsel %vm5334, %v5327, %v5329
      %v5353 = vsel %vm5334, %v5329, %v5331
      %v5354 = vsel %vm5334, %v5331, %v5333
      %v5376 = vsel %vm460, 0, %v5287
      %v5379 = vsel %vm460, 0, %v5299
      %v5382 = vsel %vm460, 0, %v5311
      %v5385 = vsel %vm460, 0, %v5323
      %5387 = vrot.lane.b32.xlu0 %v4934, 127
      %v5388 = vpop.permute.xlu0 %5387
      %5389 = vrot.lane.b32.xlu0 %v4935, 127
      %v5390 = vpop.permute.xlu0 %5389
      %5391 = vrot.lane.b32.xlu0 %v4936, 127
      %v5392 = vpop.permute.xlu0 %5391
      %5393 = vrot.lane.b32.xlu0 %v4937, 127
      %v5394 = vpop.permute.xlu0 %5393
      %5395 = vrot.lane.b32.xlu0 %v4938, 127
      %v5396 = vpop.permute.xlu0 %5395
      %5397 = vrot.lane.b32.xlu0 %v4939, 127
      %v5398 = vpop.permute.xlu0 %5397
      %5399 = vrot.lane.b32.xlu0 %v4940, 127
      %v5400 = vpop.permute.xlu0 %5399
      %5401 = vrot.lane.b32.xlu0 %v4941, 127
      %v5402 = vpop.permute.xlu0 %5401
      %5403 = vrot.lane.b32.xlu0 %v4942, 127
      %v5404 = vpop.permute.xlu0 %5403
      %5405 = vrot.lane.b32.xlu0 %v4943, 127
      %v5406 = vpop.permute.xlu0 %5405
      %5407 = vrot.lane.b32.xlu0 %v4944, 127
      %v5408 = vpop.permute.xlu0 %5407
      %5409 = vrot.lane.b32.xlu0 %v4945, 127
      %v5410 = vpop.permute.xlu0 %5409
      %5411 = vrot.lane.b32.xlu0 %v4946, 127
      %v5412 = vpop.permute.xlu0 %5411
      %5413 = vrot.lane.b32.xlu0 %v4947, 127
      %v5414 = vpop.permute.xlu0 %5413
      %5415 = vrot.lane.b32.xlu0 %v4948, 127
      %v5416 = vpop.permute.xlu0 %5415
      %5417 = vrot.lane.b32.xlu0 %v4949, 127
      %v5418 = vpop.permute.xlu0 %5417
      %5419 = vrot.lane.b32.xlu0 %v4950, 127
      %v5420 = vpop.permute.xlu0 %5419
      %5421 = vrot.lane.b32.xlu0 %v4951, 127
      %v5422 = vpop.permute.xlu0 %5421
      %5423 = vrot.lane.b32.xlu0 %v4952, 127
      %v5424 = vpop.permute.xlu0 %5423
      %5425 = vrot.lane.b32.xlu0 %v4953, 127
      %v5426 = vpop.permute.xlu0 %5425
      %5427 = vrot.lane.b32.xlu0 %v4954, 127
      %v5428 = vpop.permute.xlu0 %5427
      %5429 = vrot.lane.b32.xlu0 %v4955, 127
      %v5430 = vpop.permute.xlu0 %5429
      %5431 = vrot.lane.b32.xlu0 %v4956, 127
      %v5432 = vpop.permute.xlu0 %5431
      %5433 = vrot.lane.b32.xlu0 %v4957, 127
      %v5434 = vpop.permute.xlu0 %5433
      %vm5435 = vcmask 1039360
      %v5436 = vsel %vm5435, %v5388, %v5390
      %v5437 = vsel %vm5435, %v5390, %v5392
      %v5438 = vsel %vm5435, %v5392, %v5394
      %v5439 = vsel %vm5435, %v5394, %v5396
      %v5440 = vsel %vm5435, %v5396, %v5398
      %v5441 = vsel %vm5435, %v5400, %v5402
      %v5442 = vsel %vm5435, %v5402, %v5404
      %v5443 = vsel %vm5435, %v5404, %v5406
      %v5444 = vsel %vm5435, %v5406, %v5408
      %v5445 = vsel %vm5435, %v5408, %v5410
      %v5446 = vsel %vm5435, %v5412, %v5414
      %v5447 = vsel %vm5435, %v5414, %v5416
      %v5448 = vsel %vm5435, %v5416, %v5418
      %v5449 = vsel %vm5435, %v5418, %v5420
      %v5450 = vsel %vm5435, %v5420, %v5422
      %v5451 = vsel %vm5435, %v5424, %v5426
      %v5452 = vsel %vm5435, %v5426, %v5428
      %v5453 = vsel %vm5435, %v5428, %v5430
      %v5454 = vsel %vm5435, %v5430, %v5432
      %v5455 = vsel %vm5435, %v5432, %v5434
      %v5477 = vsel %vm480, %v5398, 0
      %v5480 = vsel %vm480, %v5410, 0
      %v5483 = vsel %vm480, %v5422, 0
      %v5486 = vsel %vm480, %v5434, 0
      %5488 = vrot.lane.b32.xlu0 %v4934, 111
      %v5489 = vpop.permute.xlu0 %5488
      %5490 = vrot.lane.b32.xlu0 %v4935, 111
      %v5491 = vpop.permute.xlu0 %5490
      %5492 = vrot.lane.b32.xlu0 %v4936, 111
      %v5493 = vpop.permute.xlu0 %5492
      %5494 = vrot.lane.b32.xlu0 %v4937, 111
      %v5495 = vpop.permute.xlu0 %5494
      %5496 = vrot.lane.b32.xlu0 %v4938, 111
      %v5497 = vpop.permute.xlu0 %5496
      %5498 = vrot.lane.b32.xlu0 %v4939, 111
      %v5499 = vpop.permute.xlu0 %5498
      %5500 = vrot.lane.b32.xlu0 %v4940, 111
      %v5501 = vpop.permute.xlu0 %5500
      %5502 = vrot.lane.b32.xlu0 %v4941, 111
      %v5503 = vpop.permute.xlu0 %5502
      %5504 = vrot.lane.b32.xlu0 %v4942, 111
      %v5505 = vpop.permute.xlu0 %5504
      %5506 = vrot.lane.b32.xlu0 %v4943, 111
      %v5507 = vpop.permute.xlu0 %5506
      %5508 = vrot.lane.b32.xlu0 %v4944, 111
      %v5509 = vpop.permute.xlu0 %5508
      %5510 = vrot.lane.b32.xlu0 %v4945, 111
      %v5511 = vpop.permute.xlu0 %5510
      %5512 = vrot.lane.b32.xlu0 %v4946, 111
      %v5513 = vpop.permute.xlu0 %5512
      %5514 = vrot.lane.b32.xlu0 %v4947, 111
      %v5515 = vpop.permute.xlu0 %5514
      %5516 = vrot.lane.b32.xlu0 %v4948, 111
      %v5517 = vpop.permute.xlu0 %5516
      %5518 = vrot.lane.b32.xlu0 %v4949, 111
      %v5519 = vpop.permute.xlu0 %5518
      %5520 = vrot.lane.b32.xlu0 %v4950, 111
      %v5521 = vpop.permute.xlu0 %5520
      %5522 = vrot.lane.b32.xlu0 %v4951, 111
      %v5523 = vpop.permute.xlu0 %5522
      %5524 = vrot.lane.b32.xlu0 %v4952, 111
      %v5525 = vpop.permute.xlu0 %5524
      %5526 = vrot.lane.b32.xlu0 %v4953, 111
      %v5527 = vpop.permute.xlu0 %5526
      %5528 = vrot.lane.b32.xlu0 %v4954, 111
      %v5529 = vpop.permute.xlu0 %5528
      %5530 = vrot.lane.b32.xlu0 %v4955, 111
      %v5531 = vpop.permute.xlu0 %5530
      %5532 = vrot.lane.b32.xlu0 %v4956, 111
      %v5533 = vpop.permute.xlu0 %5532
      %5534 = vrot.lane.b32.xlu0 %v4957, 111
      %v5535 = vpop.permute.xlu0 %5534
      %vm5536 = vcmask 908288
      %v5537 = vsel %vm5536, %v5489, %v5491
      %v5538 = vsel %vm5536, %v5491, %v5493
      %v5539 = vsel %vm5536, %v5493, %v5495
      %v5540 = vsel %vm5536, %v5495, %v5497
      %v5541 = vsel %vm5536, %v5497, %v5499
      %v5542 = vsel %vm5536, %v5501, %v5503
      %v5543 = vsel %vm5536, %v5503, %v5505
      %v5544 = vsel %vm5536, %v5505, %v5507
      %v5545 = vsel %vm5536, %v5507, %v5509
      %v5546 = vsel %vm5536, %v5509, %v5511
      %v5547 = vsel %vm5536, %v5513, %v5515
      %v5548 = vsel %vm5536, %v5515, %v5517
      %v5549 = vsel %vm5536, %v5517, %v5519
      %v5550 = vsel %vm5536, %v5519, %v5521
      %v5551 = vsel %vm5536, %v5521, %v5523
      %v5552 = vsel %vm5536, %v5525, %v5527
      %v5553 = vsel %vm5536, %v5527, %v5529
      %v5554 = vsel %vm5536, %v5529, %v5531
      %v5555 = vsel %vm5536, %v5531, %v5533
      %v5556 = vsel %vm5536, %v5533, %v5535
      %v5578 = vsel %vm500, %v5499, 0
      %v5581 = vsel %vm500, %v5511, 0
      %v5584 = vsel %vm500, %v5523, 0
      %v5587 = vsel %vm500, %v5535, 0
      %5589 = vrot.lane.b32.xlu0 %v4934, 110
      %v5590 = vpop.permute.xlu0 %5589
      %5591 = vrot.lane.b32.xlu0 %v4935, 110
      %v5592 = vpop.permute.xlu0 %5591
      %5593 = vrot.lane.b32.xlu0 %v4936, 110
      %v5594 = vpop.permute.xlu0 %5593
      %5595 = vrot.lane.b32.xlu0 %v4937, 110
      %v5596 = vpop.permute.xlu0 %5595
      %5597 = vrot.lane.b32.xlu0 %v4938, 110
      %v5598 = vpop.permute.xlu0 %5597
      %5599 = vrot.lane.b32.xlu0 %v4939, 110
      %v5600 = vpop.permute.xlu0 %5599
      %5601 = vrot.lane.b32.xlu0 %v4940, 110
      %v5602 = vpop.permute.xlu0 %5601
      %5603 = vrot.lane.b32.xlu0 %v4941, 110
      %v5604 = vpop.permute.xlu0 %5603
      %5605 = vrot.lane.b32.xlu0 %v4942, 110
      %v5606 = vpop.permute.xlu0 %5605
      %5607 = vrot.lane.b32.xlu0 %v4943, 110
      %v5608 = vpop.permute.xlu0 %5607
      %5609 = vrot.lane.b32.xlu0 %v4944, 110
      %v5610 = vpop.permute.xlu0 %5609
      %5611 = vrot.lane.b32.xlu0 %v4945, 110
      %v5612 = vpop.permute.xlu0 %5611
      %5613 = vrot.lane.b32.xlu0 %v4946, 110
      %v5614 = vpop.permute.xlu0 %5613
      %5615 = vrot.lane.b32.xlu0 %v4947, 110
      %v5616 = vpop.permute.xlu0 %5615
      %5617 = vrot.lane.b32.xlu0 %v4948, 110
      %v5618 = vpop.permute.xlu0 %5617
      %5619 = vrot.lane.b32.xlu0 %v4949, 110
      %v5620 = vpop.permute.xlu0 %5619
      %5621 = vrot.lane.b32.xlu0 %v4950, 110
      %v5622 = vpop.permute.xlu0 %5621
      %5623 = vrot.lane.b32.xlu0 %v4951, 110
      %v5624 = vpop.permute.xlu0 %5623
      %5625 = vrot.lane.b32.xlu0 %v4952, 110
      %v5626 = vpop.permute.xlu0 %5625
      %5627 = vrot.lane.b32.xlu0 %v4953, 110
      %v5628 = vpop.permute.xlu0 %5627
      %5629 = vrot.lane.b32.xlu0 %v4954, 110
      %v5630 = vpop.permute.xlu0 %5629
      %5631 = vrot.lane.b32.xlu0 %v4955, 110
      %v5632 = vpop.permute.xlu0 %5631
      %5633 = vrot.lane.b32.xlu0 %v4956, 110
      %v5634 = vpop.permute.xlu0 %5633
      %5635 = vrot.lane.b32.xlu0 %v4957, 110
      %v5636 = vpop.permute.xlu0 %5635
      %vm5637 = vcmask 900096
      %v5638 = vsel %vm5637, %v5590, %v5592
      %v5639 = vsel %vm5637, %v5592, %v5594
      %v5640 = vsel %vm5637, %v5594, %v5596
      %v5641 = vsel %vm5637, %v5596, %v5598
      %v5642 = vsel %vm5637, %v5598, %v5600
      %v5643 = vsel %vm5637, %v5602, %v5604
      %v5644 = vsel %vm5637, %v5604, %v5606
      %v5645 = vsel %vm5637, %v5606, %v5608
      %v5646 = vsel %vm5637, %v5608, %v5610
      %v5647 = vsel %vm5637, %v5610, %v5612
      %v5648 = vsel %vm5637, %v5614, %v5616
      %v5649 = vsel %vm5637, %v5616, %v5618
      %v5650 = vsel %vm5637, %v5618, %v5620
      %v5651 = vsel %vm5637, %v5620, %v5622
      %v5652 = vsel %vm5637, %v5622, %v5624
      %v5653 = vsel %vm5637, %v5626, %v5628
      %v5654 = vsel %vm5637, %v5628, %v5630
      %v5655 = vsel %vm5637, %v5630, %v5632
      %v5656 = vsel %vm5637, %v5632, %v5634
      %v5657 = vsel %vm5637, %v5634, %v5636
      %v5679 = vsel %vm520, %v5600, 0
      %v5682 = vsel %vm520, %v5612, 0
      %v5685 = vsel %vm520, %v5624, 0
      %v5688 = vsel %vm520, %v5636, 0
      %5690 = vrot.lane.b32.xlu0 %v4934, 109
      %v5691 = vpop.permute.xlu0 %5690
      %5692 = vrot.lane.b32.xlu0 %v4935, 109
      %v5693 = vpop.permute.xlu0 %5692
      %5694 = vrot.lane.b32.xlu0 %v4936, 109
      %v5695 = vpop.permute.xlu0 %5694
      %5696 = vrot.lane.b32.xlu0 %v4937, 109
      %v5697 = vpop.permute.xlu0 %5696
      %5698 = vrot.lane.b32.xlu0 %v4938, 109
      %v5699 = vpop.permute.xlu0 %5698
      %5700 = vrot.lane.b32.xlu0 %v4939, 109
      %v5701 = vpop.permute.xlu0 %5700
      %5702 = vrot.lane.b32.xlu0 %v4940, 109
      %v5703 = vpop.permute.xlu0 %5702
      %5704 = vrot.lane.b32.xlu0 %v4941, 109
      %v5705 = vpop.permute.xlu0 %5704
      %5706 = vrot.lane.b32.xlu0 %v4942, 109
      %v5707 = vpop.permute.xlu0 %5706
      %5708 = vrot.lane.b32.xlu0 %v4943, 109
      %v5709 = vpop.permute.xlu0 %5708
      %5710 = vrot.lane.b32.xlu0 %v4944, 109
      %v5711 = vpop.permute.xlu0 %5710
      %5712 = vrot.lane.b32.xlu0 %v4945, 109
      %v5713 = vpop.permute.xlu0 %5712
      %5714 = vrot.lane.b32.xlu0 %v4946, 109
      %v5715 = vpop.permute.xlu0 %5714
      %5716 = vrot.lane.b32.xlu0 %v4947, 109
      %v5717 = vpop.permute.xlu0 %5716
      %5718 = vrot.lane.b32.xlu0 %v4948, 109
      %v5719 = vpop.permute.xlu0 %5718
      %5720 = vrot.lane.b32.xlu0 %v4949, 109
      %v5721 = vpop.permute.xlu0 %5720
      %5722 = vrot.lane.b32.xlu0 %v4950, 109
      %v5723 = vpop.permute.xlu0 %5722
      %5724 = vrot.lane.b32.xlu0 %v4951, 109
      %v5725 = vpop.permute.xlu0 %5724
      %5726 = vrot.lane.b32.xlu0 %v4952, 109
      %v5727 = vpop.permute.xlu0 %5726
      %5728 = vrot.lane.b32.xlu0 %v4953, 109
      %v5729 = vpop.permute.xlu0 %5728
      %5730 = vrot.lane.b32.xlu0 %v4954, 109
      %v5731 = vpop.permute.xlu0 %5730
      %5732 = vrot.lane.b32.xlu0 %v4955, 109
      %v5733 = vpop.permute.xlu0 %5732
      %5734 = vrot.lane.b32.xlu0 %v4956, 109
      %v5735 = vpop.permute.xlu0 %5734
      %5736 = vrot.lane.b32.xlu0 %v4957, 109
      %v5737 = vpop.permute.xlu0 %5736
      %vm5738 = vcmask 891904
      %v5739 = vsel %vm5738, %v5691, %v5693
      %v5740 = vsel %vm5738, %v5693, %v5695
      %v5741 = vsel %vm5738, %v5695, %v5697
      %v5742 = vsel %vm5738, %v5697, %v5699
      %v5743 = vsel %vm5738, %v5699, %v5701
      %v5744 = vsel %vm5738, %v5703, %v5705
      %v5745 = vsel %vm5738, %v5705, %v5707
      %v5746 = vsel %vm5738, %v5707, %v5709
      %v5747 = vsel %vm5738, %v5709, %v5711
      %v5748 = vsel %vm5738, %v5711, %v5713
      %v5749 = vsel %vm5738, %v5715, %v5717
      %v5750 = vsel %vm5738, %v5717, %v5719
      %v5751 = vsel %vm5738, %v5719, %v5721
      %v5752 = vsel %vm5738, %v5721, %v5723
      %v5753 = vsel %vm5738, %v5723, %v5725
      %v5754 = vsel %vm5738, %v5727, %v5729
      %v5755 = vsel %vm5738, %v5729, %v5731
      %v5756 = vsel %vm5738, %v5731, %v5733
      %v5757 = vsel %vm5738, %v5733, %v5735
      %v5758 = vsel %vm5738, %v5735, %v5737
      %v5780 = vsel %vm540, %v5701, 0
      %v5783 = vsel %vm540, %v5713, 0
      %v5786 = vsel %vm540, %v5725, 0
      %v5789 = vsel %vm540, %v5737, 0
      %v5791 = vld [vmem:[%s5] sm:$0xff]
      %v5792 = vld [vmem:[%s5 + $0x8] sm:$0xff]
      %v5793 = vld [vmem:[%s5 + $0x10] sm:$0xf]
      %v5797 = vunpack.c.l.b16 %v5791
      %v5798 = vunpack.c.h.b16 %v5791
      %v5799 = vunpack.c.l.b16 %v5792
      %v5800 = vunpack.c.h.b16 %v5792
      %v5801 = vunpack.c.l.b16 %v5793
      %v5802 = vpack.c.b16 %v5797, %v5797
      %v5803 = vpack.c.b16 %v5798, %v5798
      %v5804 = vpack.c.b16 %v5799, %v5799
      %v5805 = vpack.c.b16 %v5800, %v5800
      %v5806 = vpack.c.b16 %v5801, %v5801
      %vm5811 = vcmask 523264
      %v5813 = vsel %vm5811, %v5806, 0
      %5815 = vmatprep.subr.bf16.mxu0 %v5031
      %5816 = vmatpush1.bf16.msra.mxu0 %v5073
      %5817 = vmatprep.subr.bf16.mxu0 %v5036
      %5818 = vmatpush1.bf16.msra.mxu0 %v5076
      %5819 = vmatprep.subr.bf16.mxu0 %v5041
      %5820 = vmatpush1.bf16.msra.mxu0 %v5079
      %5821 = vmatprep.subr.bf16.mxu0 %v5046
      %5822 = vmatpush1.bf16.msra.mxu0 %v5082
      %5823 = vmatprep.subr.bf16.mxu0 %v5133
      %5824 = vmatpush1.bf16.msra.mxu0 %v5174
      %5825 = vmatprep.subr.bf16.mxu0 %v5138
      %5826 = vmatpush1.bf16.msra.mxu0 %v5177
      %5827 = vmatprep.subr.bf16.mxu0 %v5143
      %5828 = vmatpush1.bf16.msra.mxu0 %v5180
      %5829 = vmatprep.subr.bf16.mxu0 %v5148
      %5830 = vmatpush1.bf16.msra.mxu0 %v5183
      %5831 = vmatprep.subr.bf16.mxu0 %v5234
      %5832 = vmatpush1.bf16.msra.mxu0 %v5275
      %5833 = vmatprep.subr.bf16.mxu0 %v5239
      %5834 = vmatpush1.bf16.msra.mxu0 %v5278
      %5835 = vmatprep.subr.bf16.mxu0 %v5244
      %5836 = vmatpush1.bf16.msra.mxu0 %v5281
      %5837 = vmatprep.subr.bf16.mxu0 %v5249
      %5838 = vmatpush1.bf16.msra.mxu0 %v5284
      %5839 = vmatprep.subr.bf16.mxu0 %v5335
      %5840 = vmatpush1.bf16.msra.mxu0 %v5376
      %5841 = vmatprep.subr.bf16.mxu0 %v5340
      %5842 = vmatpush1.bf16.msra.mxu0 %v5379
      %5843 = vmatprep.subr.bf16.mxu0 %v5345
      %5844 = vmatpush1.bf16.msra.mxu0 %v5382
      %5845 = vmatprep.subr.bf16.mxu0 %v5350
      %5846 = vmatpush1.bf16.msra.mxu0 %v5385
      %5847 = vmatprep.mubr.bf16.mxu0 %v5803
      %5848 = vmatmul.mubr.bf16.gmra.mrb[0].mxu0 %v5802
      %v5849 = vpop.f32.mrb[0].mxu0
      %v5850 = vadd.f32 0.0, %v5849
      %v5851 = vpop.f32.mrb[0].mxu0
      %v5852 = vadd.f32 0.0, %v5851
      %v5853 = vpop.f32.mrb[0].mxu0
      %v5854 = vpop.f32.mrb[0].mxu0
      %5855 = vdwg.mxu0
      %5856 = vmatprep.subr.bf16.mxu0 %v4935
      %5857 = vmatpush1.bf16.msra.mxu0 %v4934
      %5858 = vmatprep.subr.bf16.mxu0 %v4941
      %5859 = vmatpush1.bf16.msra.mxu0 %v4940
      %5860 = vmatprep.subr.bf16.mxu0 %v4947
      %5861 = vmatpush1.bf16.msra.mxu0 %v4946
      %5862 = vmatprep.subr.bf16.mxu0 %v4953
      %5863 = vmatpush1.bf16.msra.mxu0 %v4952
      %5864 = vmatprep.subr.bf16.mxu0 %v5437
      %5865 = vmatpush1.bf16.msra.mxu0 %v5436
      %5866 = vmatprep.subr.bf16.mxu0 %v5442
      %5867 = vmatpush1.bf16.msra.mxu0 %v5441
      %5868 = vmatprep.subr.bf16.mxu0 %v5447
      %5869 = vmatpush1.bf16.msra.mxu0 %v5446
      %5870 = vmatprep.subr.bf16.mxu0 %v5452
      %5871 = vmatpush1.bf16.msra.mxu0 %v5451
      %5872 = vmatprep.subr.bf16.mxu0 %v5538
      %5873 = vmatpush1.bf16.msra.mxu0 %v5537
      %5874 = vmatprep.subr.bf16.mxu0 %v5543
      %5875 = vmatpush1.bf16.msra.mxu0 %v5542
      %5876 = vmatprep.subr.bf16.mxu0 %v5548
      %5877 = vmatpush1.bf16.msra.mxu0 %v5547
      %5878 = vmatprep.subr.bf16.mxu0 %v5553
      %5879 = vmatpush1.bf16.msra.mxu0 %v5552
      %5880 = vmatprep.subr.bf16.mxu0 %v5639
      %5881 = vmatpush1.bf16.msra.mxu0 %v5638
      %5882 = vmatprep.subr.bf16.mxu0 %v5644
      %5883 = vmatpush1.bf16.msra.mxu0 %v5643
      %5884 = vmatprep.subr.bf16.mxu0 %v5649
      %5885 = vmatpush1.bf16.msra.mxu0 %v5648
      %5886 = vmatprep.subr.bf16.mxu0 %v5654
      %5887 = vmatpush1.bf16.msra.mxu0 %v5653
      %5888 = vmatprep.mubr.bf16.mxu0 %v5805
      %5889 = vmatmul.mubr.bf16.gmra.mrb[0].mxu0 %v5804
      %v5890 = vpop.f32.mrb[0].mxu0
      %v5891 = vadd.f32 %v5850, %v5890
      %v5892 = vpop.f32.mrb[0].mxu0
      %v5893 = vadd.f32 %v5852, %v5892
      %v5894 = vpop.f32.mrb[0].mxu0
      %v5895 = vpop.f32.mrb[0].mxu0
      %5896 = vdwg.mxu0
      %5897 = vmatprep.subr.bf16.mxu0 %v5740
      %5898 = vmatpush1.bf16.msra.mxu0 %v5739
      %5899 = vmatprep.subr.bf16.mxu0 %v5745
      %5900 = vmatpush1.bf16.msra.mxu0 %v5744
      %5901 = vmatprep.subr.bf16.mxu0 %v5750
      %5902 = vmatpush1.bf16.msra.mxu0 %v5749
      %5903 = vmatprep.subr.bf16.mxu0 %v5755
      %5904 = vmatpush1.bf16.msra.mxu0 %v5754
      %5905 = vmatprep.subr.bf16.mxu0 0
      %5906 = vmatpush1.bf16.msra.mxu0 0
      %5907 = vmatprep.subr.bf16.mxu0 0
      %5908 = vmatpush1.bf16.msra.mxu0 0
      %5909 = vmatprep.subr.bf16.mxu0 0
      %5910 = vmatpush1.bf16.msra.mxu0 0
      %5911 = vmatprep.subr.bf16.mxu0 0
      %5912 = vmatpush1.bf16.msra.mxu0 0
      %5913 = vmatprep.subr.bf16.mxu0 0
      %5914 = vmatpush1.bf16.msra.mxu0 0
      %5915 = vmatprep.subr.bf16.mxu0 0
      %5916 = vmatpush1.bf16.msra.mxu0 0
      %5917 = vmatprep.subr.bf16.mxu0 0
      %5918 = vmatpush1.bf16.msra.mxu0 0
      %5919 = vmatprep.subr.bf16.mxu0 0
      %5920 = vmatpush1.bf16.msra.mxu0 0
      %5921 = vmatprep.subr.bf16.mxu0 0
      %5922 = vmatpush1.bf16.msra.mxu0 0
      %5923 = vmatprep.subr.bf16.mxu0 0
      %5924 = vmatpush1.bf16.msra.mxu0 0
      %5925 = vmatprep.subr.bf16.mxu0 0
      %5926 = vmatpush1.bf16.msra.mxu0 0
      %5927 = vmatprep.subr.bf16.mxu0 0
      %5928 = vmatpush1.bf16.msra.mxu0 0
      %5929 = vmatprep.mubr.bf16.mxu0 0
      %5930 = vmatmul.mubr.bf16.gmra.mrb[0].mxu0 %v5813
      %v5931 = vpop.f32.mrb[0].mxu0
      %v5932 = vadd.f32 %v5891, %v5931
      %v5933 = vpop.f32.mrb[0].mxu0
      %v5934 = vadd.f32 %v5893, %v5933
      %v5935 = vpop.f32.mrb[0].mxu0
      %v5936 = vpop.f32.mrb[0].mxu0
      %5937 = vdwg.mxu0
      %5938 = vmatprep.subr.bf16.mxu0 %v5033
      %5939 = vmatpush1.bf16.msra.mxu0 %v5032
      %5940 = vmatprep.subr.bf16.mxu0 %v5038
      %5941 = vmatpush1.bf16.msra.mxu0 %v5037
      %5942 = vmatprep.subr.bf16.mxu0 %v5043
      %5943 = vmatpush1.bf16.msra.mxu0 %v5042
      %5944 = vmatprep.subr.bf16.mxu0 %v5048
      %5945 = vmatpush1.bf16.msra.mxu0 %v5047
      %5946 = vmatprep.subr.bf16.mxu0 %v5135
      %5947 = vmatpush1.bf16.msra.mxu0 %v5134
      %5948 = vmatprep.subr.bf16.mxu0 %v5140
      %5949 = vmatpush1.bf16.msra.mxu0 %v5139
      %5950 = vmatprep.subr.bf16.mxu0 %v5145
      %5951 = vmatpush1.bf16.msra.mxu0 %v5144
      %5952 = vmatprep.subr.bf16.mxu0 %v5150
      %5953 = vmatpush1.bf16.msra.mxu0 %v5149
      %5954 = vmatprep.subr.bf16.mxu0 %v5236
      %5955 = vmatpush1.bf16.msra.mxu0 %v5235
      %5956 = vmatprep.subr.bf16.mxu0 %v5241
      %5957 = vmatpush1.bf16.msra.mxu0 %v5240
      %5958 = vmatprep.subr.bf16.mxu0 %v5246
      %5959 = vmatpush1.bf16.msra.mxu0 %v5245
      %5960 = vmatprep.subr.bf16.mxu0 %v5251
      %5961 = vmatpush1.bf16.msra.mxu0 %v5250
      %5962 = vmatprep.subr.bf16.mxu0 %v5337
      %5963 = vmatpush1.bf16.msra.mxu0 %v5336
      %5964 = vmatprep.subr.bf16.mxu0 %v5342
      %5965 = vmatpush1.bf16.msra.mxu0 %v5341
      %5966 = vmatprep.subr.bf16.mxu0 %v5347
      %5967 = vmatpush1.bf16.msra.mxu0 %v5346
      %5968 = vmatprep.subr.bf16.mxu0 %v5352
      %5969 = vmatpush1.bf16.msra.mxu0 %v5351
      %5970 = vmatprep.mubr.bf16.mxu0 %v5803
      %5971 = vmatmul.mubr.bf16.gmra.mrb[0].mxu0 %v5802
      %v5972 = vpop.f32.mrb[0].mxu0
      %v5973 = vadd.f32 0.0, %v5972
      %v5974 = vpop.f32.mrb[0].mxu0
      %v5975 = vadd.f32 0.0, %v5974
      %v5976 = vpop.f32.mrb[0].mxu0
      %v5977 = vpop.f32.mrb[0].mxu0
      %5978 = vdwg.mxu0
      %5979 = vmatprep.subr.bf16.mxu0 %v4937
      %5980 = vmatpush1.bf16.msra.mxu0 %v4936
      %5981 = vmatprep.subr.bf16.mxu0 %v4943
      %5982 = vmatpush1.bf16.msra.mxu0 %v4942
      %5983 = vmatprep.subr.bf16.mxu0 %v4949
      %5984 = vmatpush1.bf16.msra.mxu0 %v4948
      %5985 = vmatprep.subr.bf16.mxu0 %v4955
      %5986 = vmatpush1.bf16.msra.mxu0 %v4954
      %5987 = vmatprep.subr.bf16.mxu0 %v5439
      %5988 = vmatpush1.bf16.msra.mxu0 %v5438
      %5989 = vmatprep.subr.bf16.mxu0 %v5444
      %5990 = vmatpush1.bf16.msra.mxu0 %v5443
      %5991 = vmatprep.subr.bf16.mxu0 %v5449
      %5992 = vmatpush1.bf16.msra.mxu0 %v5448
      %5993 = vmatprep.subr.bf16.mxu0 %v5454
      %5994 = vmatpush1.bf16.msra.mxu0 %v5453
      %5995 = vmatprep.subr.bf16.mxu0 %v5540
      %5996 = vmatpush1.bf16.msra.mxu0 %v5539
      %5997 = vmatprep.subr.bf16.mxu0 %v5545
      %5998 = vmatpush1.bf16.msra.mxu0 %v5544
      %5999 = vmatprep.subr.bf16.mxu0 %v5550
      %6000 = vmatpush1.bf16.msra.mxu0 %v5549
      %6001 = vmatprep.subr.bf16.mxu0 %v5555
      %6002 = vmatpush1.bf16.msra.mxu0 %v5554
      %6003 = vmatprep.subr.bf16.mxu0 %v5641
      %6004 = vmatpush1.bf16.msra.mxu0 %v5640
      %6005 = vmatprep.subr.bf16.mxu0 %v5646
      %6006 = vmatpush1.bf16.msra.mxu0 %v5645
      %6007 = vmatprep.subr.bf16.mxu0 %v5651
      %6008 = vmatpush1.bf16.msra.mxu0 %v5650
      %6009 = vmatprep.subr.bf16.mxu0 %v5656
      %6010 = vmatpush1.bf16.msra.mxu0 %v5655
      %6011 = vmatprep.mubr.bf16.mxu0 %v5805
      %6012 = vmatmul.mubr.bf16.gmra.mrb[0].mxu0 %v5804
      %v6013 = vpop.f32.mrb[0].mxu0
      %v6014 = vadd.f32 %v5973, %v6013
      %v6015 = vpop.f32.mrb[0].mxu0
      %v6016 = vadd.f32 %v5975, %v6015
      %v6017 = vpop.f32.mrb[0].mxu0
      %v6018 = vpop.f32.mrb[0].mxu0
      %6019 = vdwg.mxu0
      %6020 = vmatprep.subr.bf16.mxu0 %v5742
      %6021 = vmatpush1.bf16.msra.mxu0 %v5741
      %6022 = vmatprep.subr.bf16.mxu0 %v5747
      %6023 = vmatpush1.bf16.msra.mxu0 %v5746
      %6024 = vmatprep.subr.bf16.mxu0 %v5752
      %6025 = vmatpush1.bf16.msra.mxu0 %v5751
      %6026 = vmatprep.subr.bf16.mxu0 %v5757
      %6027 = vmatpush1.bf16.msra.mxu0 %v5756
      %6028 = vmatprep.subr.bf16.mxu0 0
      %6029 = vmatpush1.bf16.msra.mxu0 0
      %6030 = vmatprep.subr.bf16.mxu0 0
      %6031 = vmatpush1.bf16.msra.mxu0 0
      %6032 = vmatprep.subr.bf16.mxu0 0
      %6033 = vmatpush1.bf16.msra.mxu0 0
      %6034 = vmatprep.subr.bf16.mxu0 0
      %6035 = vmatpush1.bf16.msra.mxu0 0
      %6036 = vmatprep.subr.bf16.mxu0 0
      %6037 = vmatpush1.bf16.msra.mxu0 0
      %6038 = vmatprep.subr.bf16.mxu0 0
      %6039 = vmatpush1.bf16.msra.mxu0 0
      %6040 = vmatprep.subr.bf16.mxu0 0
      %6041 = vmatpush1.bf16.msra.mxu0 0
      %6042 = vmatprep.subr.bf16.mxu0 0
      %6043 = vmatpush1.bf16.msra.mxu0 0
      %6044 = vmatprep.subr.bf16.mxu0 0
      %6045 = vmatpush1.bf16.msra.mxu0 0
      %6046 = vmatprep.subr.bf16.mxu0 0
      %6047 = vmatpush1.bf16.msra.mxu0 0
      %6048 = vmatprep.subr.bf16.mxu0 0
      %6049 = vmatpush1.bf16.msra.mxu0 0
      %6050 = vmatprep.subr.bf16.mxu0 0
      %6051 = vmatpush1.bf16.msra.mxu0 0
      %6052 = vmatprep.mubr.bf16.mxu0 0
      %6053 = vmatmul.mubr.bf16.gmra.mrb[0].mxu0 %v5813
      %v6054 = vpop.f32.mrb[0].mxu0
      %v6055 = vadd.f32 %v6014, %v6054
      %v6056 = vpop.f32.mrb[0].mxu0
      %v6057 = vadd.f32 %v6016, %v6056
      %v6058 = vpop.f32.mrb[0].mxu0
      %v6059 = vpop.f32.mrb[0].mxu0
      %6060 = vdwg.mxu0
      %6061 = vmatprep.subr.bf16.mxu0 %v5035
      %6062 = vmatpush1.bf16.msra.mxu0 %v5034
      %6063 = vmatprep.subr.bf16.mxu0 %v5040
      %6064 = vmatpush1.bf16.msra.mxu0 %v5039
      %6065 = vmatprep.subr.bf16.mxu0 %v5045
      %6066 = vmatpush1.bf16.msra.mxu0 %v5044
      %6067 = vmatprep.subr.bf16.mxu0 %v5050
      %6068 = vmatpush1.bf16.msra.mxu0 %v5049
      %6069 = vmatprep.subr.bf16.mxu0 %v5137
      %6070 = vmatpush1.bf16.msra.mxu0 %v5136
      %6071 = vmatprep.subr.bf16.mxu0 %v5142
      %6072 = vmatpush1.bf16.msra.mxu0 %v5141
      %6073 = vmatprep.subr.bf16.mxu0 %v5147
      %6074 = vmatpush1.bf16.msra.mxu0 %v5146
      %6075 = vmatprep.subr.bf16.mxu0 %v5152
      %6076 = vmatpush1.bf16.msra.mxu0 %v5151
      %6077 = vmatprep.subr.bf16.mxu0 %v5238
      %6078 = vmatpush1.bf16.msra.mxu0 %v5237
      %6079 = vmatprep.subr.bf16.mxu0 %v5243
      %6080 = vmatpush1.bf16.msra.mxu0 %v5242
      %6081 = vmatprep.subr.bf16.mxu0 %v5248
      %6082 = vmatpush1.bf16.msra.mxu0 %v5247
      %6083 = vmatprep.subr.bf16.mxu0 %v5253
      %6084 = vmatpush1.bf16.msra.mxu0 %v5252
      %6085 = vmatprep.subr.bf16.mxu0 %v5339
      %6086 = vmatpush1.bf16.msra.mxu0 %v5338
      %6087 = vmatprep.subr.bf16.mxu0 %v5344
      %6088 = vmatpush1.bf16.msra.mxu0 %v5343
      %6089 = vmatprep.subr.bf16.mxu0 %v5349
      %6090 = vmatpush1.bf16.msra.mxu0 %v5348
      %6091 = vmatprep.subr.bf16.mxu0 %v5354
      %6092 = vmatpush1.bf16.msra.mxu0 %v5353
      %6093 = vmatprep.mubr.bf16.mxu0 %v5803
      %6094 = vmatmul.mubr.bf16.gmra.mrb[0].mxu0 %v5802
      %v6095 = vpop.f32.mrb[0].mxu0
      %v6096 = vadd.f32 0.0, %v6095
      %v6097 = vpop.f32.mrb[0].mxu0
      %v6098 = vadd.f32 0.0, %v6097
      %v6099 = vpop.f32.mrb[0].mxu0
      %v6100 = vpop.f32.mrb[0].mxu0
      %6101 = vdwg.mxu0
      %6102 = vmatprep.subr.bf16.mxu0 %v4939
      %6103 = vmatpush1.bf16.msra.mxu0 %v4938
      %6104 = vmatprep.subr.bf16.mxu0 %v4945
      %6105 = vmatpush1.bf16.msra.mxu0 %v4944
      %6106 = vmatprep.subr.bf16.mxu0 %v4951
      %6107 = vmatpush1.bf16.msra.mxu0 %v4950
      %6108 = vmatprep.subr.bf16.mxu0 %v4957
      %6109 = vmatpush1.bf16.msra.mxu0 %v4956
      %6110 = vmatprep.subr.bf16.mxu0 %v5477
      %6111 = vmatpush1.bf16.msra.mxu0 %v5440
      %6112 = vmatprep.subr.bf16.mxu0 %v5480
      %6113 = vmatpush1.bf16.msra.mxu0 %v5445
      %6114 = vmatprep.subr.bf16.mxu0 %v5483
      %6115 = vmatpush1.bf16.msra.mxu0 %v5450
      %6116 = vmatprep.subr.bf16.mxu0 %v5486
      %6117 = vmatpush1.bf16.msra.mxu0 %v5455
      %6118 = vmatprep.subr.bf16.mxu0 %v5578
      %6119 = vmatpush1.bf16.msra.mxu0 %v5541
      %6120 = vmatprep.subr.bf16.mxu0 %v5581
      %6121 = vmatpush1.bf16.msra.mxu0 %v5546
      %6122 = vmatprep.subr.bf16.mxu0 %v5584
      %6123 = vmatpush1.bf16.msra.mxu0 %v5551
      %6124 = vmatprep.subr.bf16.mxu0 %v5587
      %6125 = vmatpush1.bf16.msra.mxu0 %v5556
      %6126 = vmatprep.subr.bf16.mxu0 %v5679
      %6127 = vmatpush1.bf16.msra.mxu0 %v5642
      %6128 = vmatprep.subr.bf16.mxu0 %v5682
      %6129 = vmatpush1.bf16.msra.mxu0 %v5647
      %6130 = vmatprep.subr.bf16.mxu0 %v5685
      %6131 = vmatpush1.bf16.msra.mxu0 %v5652
      %6132 = vmatprep.subr.bf16.mxu0 %v5688
      %6133 = vmatpush1.bf16.msra.mxu0 %v5657
      %6134 = vmatprep.mubr.bf16.mxu0 %v5805
      %6135 = vmatmul.mubr.bf16.gmra.mrb[0].mxu0 %v5804
      %v6136 = vpop.f32.mrb[0].mxu0
      %v6137 = vadd.f32 %v6096, %v6136
      %v6138 = vpop.f32.mrb[0].mxu0
      %v6139 = vadd.f32 %v6098, %v6138
      %v6140 = vpop.f32.mrb[0].mxu0
      %v6141 = vpop.f32.mrb[0].mxu0
      %6142 = vdwg.mxu0
      %6143 = vmatprep.subr.bf16.mxu0 %v5780
      %6144 = vmatpush1.bf16.msra.mxu0 %v5743
      %6145 = vmatprep.subr.bf16.mxu0 %v5783
      %6146 = vmatpush1.bf16.msra.mxu0 %v5748
      %6147 = vmatprep.subr.bf16.mxu0 %v5786
      %6148 = vmatpush1.bf16.msra.mxu0 %v5753
      %6149 = vmatprep.subr.bf16.mxu0 %v5789
      %6150 = vmatpush1.bf16.msra.mxu0 %v5758
      %6151 = vmatprep.subr.bf16.mxu0 0
      %6152 = vmatpush1.bf16.msra.mxu0 0
      %6153 = vmatprep.subr.bf16.mxu0 0
      %6154 = vmatpush1.bf16.msra.mxu0 0
      %6155 = vmatprep.subr.bf16.mxu0 0
      %6156 = vmatpush1.bf16.msra.mxu0 0
      %6157 = vmatprep.subr.bf16.mxu0 0
      %6158 = vmatpush1.bf16.msra.mxu0 0
      %6159 = vmatprep.subr.bf16.mxu0 0
      %6160 = vmatpush1.bf16.msra.mxu0 0
      %6161 = vmatprep.subr.bf16.mxu0 0
      %6162 = vmatpush1.bf16.msra.mxu0 0
      %6163 = vmatprep.subr.bf16.mxu0 0
      %6164 = vmatpush1.bf16.msra.mxu0 0
      %6165 = vmatprep.subr.bf16.mxu0 0
      %6166 = vmatpush1.bf16.msra.mxu0 0
      %6167 = vmatprep.subr.bf16.mxu0 0
      %6168 = vmatpush1.bf16.msra.mxu0 0
      %6169 = vmatprep.subr.bf16.mxu0 0
      %6170 = vmatpush1.bf16.msra.mxu0 0
      %6171 = vmatprep.subr.bf16.mxu0 0
      %6172 = vmatpush1.bf16.msra.mxu0 0
      %6173 = vmatprep.subr.bf16.mxu0 0
      %6174 = vmatpush1.bf16.msra.mxu0 0
      %6175 = vmatprep.mubr.bf16.mxu0 0
      %6176 = vmatmul.mubr.bf16.gmra.mrb[0].mxu0 %v5813
      %v6177 = vpop.f32.mrb[0].mxu0
      %v6178 = vadd.f32 %v6137, %v6177
      %v6179 = vpop.f32.mrb[0].mxu0
      %v6180 = vadd.f32 %v6139, %v6179
      %v6181 = vpop.f32.mrb[0].mxu0
      %v6182 = vpop.f32.mrb[0].mxu0
      %6183 = vdwg.mxu0
      %v6184 = vmul.f32 %v5932, %v1116
      %v6185 = vmul.f32 %v5934, %v1120
      %v6186 = vmul.f32 %v6055, %v1124
      %v6187 = vmul.f32 %v6057, %v1128
      %v6188 = vmul.f32 %v6178, %v1132
      %v6189 = vmul.f32 %v6180, %v1136
      %v6190 = vsel %vm637, %v6184, 0.0
      %v6191 = vrot.slane %v6187, 7
      %vm6192 = vcmask 1041409
      %v6193 = vsel %vm6192, %v6191, %v6190
      %v6194 = vsel %vm637, %v6185, 0.0
      %v6195 = vrot.slane %v6188, 7
      %v6196 = vsel %vm6192, %v6195, %v6194
      %v6197 = vsel %vm637, %v6186, 0.0
      %v6198 = vrot.slane %v6189, 7
      %v6199 = vsel %vm6192, %v6198, %v6197
      %v6200 = vsel %vm644, %v6193, 0.0
      %v6201 = vsel %vm644, %v6196, 0.0
      %v6202 = vadd.f32 %v6200, %v6201
      %v6203 = vsel %vm644, %v6199, 0.0
      %v6204 = vadd.f32 %v6202, %v6203
      %6205 = vadd.xlane.f32.xlu0 %v6204
      %v6206 = vpop.xlane.xlu0 %6205
      %v6207 = vmul.f32 %v6206, 0.00390625
      %v6208 = vld [vmem:[%s6] sm:$0x1]
      %v6210 = vlaneseq
      %v6211 = vshrl.u32 %v6210, 7
      %v6212 = vsub.s32 0, %v6211
      %v6213 = vrot.slane %v6208, %v6212
      %v6215 = vmul.f32 %v6207, %v6213
      %v6216 = vld [vmem:[%s7] sm:$0x1]
      %v6218 = vlaneseq
      %v6219 = vshrl.u32 %v6218, 7
      %v6220 = vsub.s32 0, %v6219
      %v6221 = vrot.slane %v6216, %v6220
      %v6223 = vadd.f32 %v6215, %v6221
      %vm6224 = vcmp.gt.f32.partialorder %v6223, 0.0
      %v6225 = vmul.f32 %v6223, 0.01
      %v6226 = vsel %vm6224, %v6223, %v6225
      %v6227 = vld [vmem:[%s8] sm:$0x1]
      %v6229 = vlaneseq
      %v6230 = vshrl.u32 %v6229, 7
      %v6231 = vsub.s32 0, %v6230
      %v6232 = vrot.slane %v6227, %v6231
      %v6234 = vmul.f32 %v6226, %v6232
      %vm6235 = vcmask 254976
      %v6236 = vsel %vm6235, %v6234, 0.0
      %6237 = vadd.xlane.f32.xlu0 %v6236
      %v6238 = vpop.xlane.xlu0 %6237
      %v6239 = vld [vmem:[#allocation3] sm:$0x1]
      %v6241 = vlaneseq
      %v6242 = vshrl.u32 %v6241, 7
      %v6243 = vsub.s32 0, %v6242
      %v6244 = vrot.slane %v6239, %v6243
      %v6246 = vadd.f32 %v6238, %v6244
      %v6247 = vsub.f32 0.0, %v6246
      %v6248 = vmul.f32 %v6247, 1.442695
      %v6249 = vpow.pop %v6248
      %v6250 = vadd.f32 %v6249, 1.0
      %v6251 = vrcp.pop %v6250
      %v6252 = vmul.f32 4.0, %v6251
      %6254 = vset.pattern.permute.xlu0 0
      %6255 = vperm.xlu0 %6254, %v6252
      %v6256 = vpop.permute.xlu0 %6255
      %v6257 = vlaneseq
      %v6258 = vand.u32 %v6257, 127
      %v6259 = vlaneseq
      %v6260 = vshrl.u32 %v6259, 7
      %v6261 = vsub.s32 %v6258, %v6260
      %v6262 = vrot.slane %v6256, %v6261
      %vm6264 = vcmask 8192
      %6265 = vst.msk [vmem:[%s354] sm:$0x1] %vm6264, %v6262
      %p6266 = scmp.lt.s32.totalorder %s23, 1
      %s6267 = scalar_select %p6266, %s23, 1
      %s6268 = scalar_lea.vmem %s10, %s6267
      // Predicated region
      $region68: #{dncnn_forward.1} parent=59 // pred_check
        %p6269 = pneg %p256
      $region69: #{dncnn_forward.1} parent=59 // pred_check_branch
        %6271 = sbr.rel (%p6269) target = $region71
      $region70: #{dncnn_forward.1} parent=59 // pred_region
        _
      $region71: #{dncnn_forward.1} parent=59 // pred_fallthru
        _
    $region60: #{dncnn_forward.1} parent=5 // pred_fallthru
      _
    %p6272 = scmp.le.s32.totalorder 2, %s18
    // Predicated region
    $region72: #{dncnn_forward.1} parent=5 // pred_check
      %p6273 = pneg %p6272
    $region73: #{dncnn_forward.1} parent=5 // pred_check_branch
      %6275 = sbr.rel (%p6273) target = $region75
    $region74: #{dncnn_forward.1} parent=5 // pred_region
      %s6276 = ssub.s32 %s18, 2
      // Predicated region
      $region76: #{dncnn_forward.1} parent=74 // pred_check
        %p6277 = pneg %p262
      $region77: #{dncnn_forward.1} parent=74 // pred_check_branch
        %6279 = sbr.rel (%p6277) target = $region79
      $region78: #{dncnn_forward.1} parent=74 // pred_region
        %p6280 = scmp.lt.s32.totalorder %s24, 1
        %s6281 = scalar_select %p6280, %s24, 1
        %s6282 = scalar_lea.vmem %s10, %s6281
      $region79: #{dncnn_forward.1} parent=74 // pred_fallthru
        _
    $region75: #{dncnn_forward.1} parent=5 // pred_fallthru
      _
  $region6: #{dncnn_forward.1} parent=0 // loop_footer
    %s22 = sadd.s32 1, %s18
  $region7: #{dncnn_forward.1} parent=0 // loop_footer_branch
    %17 = sbr.rel target = $region3
  $region8: #{dncnn_forward.1} parent=0 // loop_exit
    _

</llo_original>
